<compile_context>
chip_gen: v5e
topology: v5e:2x2
jax: 0.10.0
libtpu: 0.0.40
codegen_flags: <defaults>
</compile_context>

<pallas_src>
import functools

import jax
import jax.numpy as jnp
import numpy as np
from jax.experimental import pallas as pl
from jax.experimental.pallas import tpu as pltpu

# ----------------------------- model dims (scaled-down t5-small) -----------------------------
B = 2            # batch (grow this to fold more forwards per call; everything scales with it)
S = 12           # 1 + 5 + 1 + 5 tokens per batch element
BS = B * S       # flattened token count
D = 32           # d_model
H = 4            # num attention heads
DK = 8           # d_kv per head
INNER = H * DK   # inner attention dim
DFF = 64         # feed-forward dim
L = 3            # n_layers
NUM_BUCKETS = 32
MAX_DISTANCE = 128
RMS_EPS = 1e-6
NEG_INF = -1e9   # additive mask value for cross-batch attention pairs


# ----------------------------- Pallas kernel: full L-layer T5 stack --------------------------
def _rms_norm(x, w):
    # T5LayerNorm: x * rsqrt(mean(x^2) + eps) * w   (no mean subtraction, no bias)
    var = jnp.mean(x * x, axis=-1, keepdims=True)
    return x * jax.lax.rsqrt(var + RMS_EPS) * w


def t5_stack_kernel(ot_ref, or_ref, dt_ref, dr_ref,
                    wqkv_ref, wo_ref, ln_ref, ffw_ref, bias0s_ref, masks_ref,
                    ot_out, or_out, dt_out, dr_out):
    # Assemble the (BS, D) token slab in the group-permuted ordering:
    #   rows [0 : B)      offense_team
    #   rows [B : 6B)     offense_roster
    #   rows [6B: 7B)     defense_team
    #   rows [7B:12B)     defense_roster
    x = jnp.concatenate([ot_ref[...], or_ref[...], dt_ref[...], dr_ref[...]], axis=0)

    for l in range(L):  # fully unrolled at trace time
        # ---------------- self-attention sub-layer ----------------
        h = _rms_norm(x, ln_ref[2 * l])                                       # (BS, D)
        # fused QKV: one matmul per layer
        qkv = jnp.dot(h, wqkv_ref[l], preferred_element_type=jnp.float32)     # (BS, 3*INNER)

        # per-head scores (no 1/sqrt(dk) scaling in T5), stacked along sublanes
        scores = jnp.concatenate([
            jax.lax.dot_general(
                qkv[:, hh * DK:(hh + 1) * DK],                                # q_h (BS, DK)
                qkv[:, INNER + hh * DK:INNER + (hh + 1) * DK],                # k_h (BS, DK)
                (((1,), (1,)), ((), ())),
                preferred_element_type=jnp.float32)
            for hh in range(H)], axis=0)                                      # (H*BS, BS)

        # block 0: rel-pos bias (+ batch mask folded in); later blocks: batch mask only
        scores = scores + (bias0s_ref[...] if l == 0 else masks_ref[...])

        # single softmax pass over the head-stacked array
        m = jnp.max(scores, axis=-1, keepdims=True)
        e = jnp.exp(scores - m)
        denom = jnp.sum(e, axis=-1, keepdims=True)
        p = e * pl.reciprocal(denom, approx=True)                             # (H*BS, BS)

        # per-head context (sublane-group-aligned slices of p), concat along lanes
        ctx = jnp.concatenate([
            jnp.dot(p[hh * BS:(hh + 1) * BS, :],
                    qkv[:, 2 * INNER + hh * DK:2 * INNER + (hh + 1) * DK],    # v_h (BS, DK)
                    preferred_element_type=jnp.float32)
            for hh in range(H)], axis=-1)                                     # (BS, INNER)

        x = x + jnp.dot(ctx, wo_ref[l], preferred_element_type=jnp.float32)

        # ---------------- feed-forward sub-layer ----------------
        h = _rms_norm(x, ln_ref[2 * l + 1])                                   # (BS, D)
        ff = jnp.maximum(
            jnp.dot(h, ffw_ref[2 * l], preferred_element_type=jnp.float32), 0.0)   # (BS, DFF)
        # second FF matmul: weight stored transposed, contract on the shared last dim
        x = x + jax.lax.dot_general(ff, ffw_ref[2 * l + 1],
                                    (((1,), (1,)), ((), ())),
                                    preferred_element_type=jnp.float32)       # (BS, D)

    # emit the four outputs directly (contiguous row groups of the permuted slab)
    ot_out[...] = x[0:B]
    or_out[...] = x[B:6 * B]
    dt_out[...] = x[6 * B:7 * B]
    dr_out[...] = x[7 * B:12 * B]


def run_t5_stack(ot, orr, dt, dr, params):
    """ot/dt: (B, D); orr/dr: (5*B, D) float32; params: dict of packed per-layer weights."""
    full = lambda shape: pl.BlockSpec(shape, lambda i: (0,) * len(shape))
    grid_spec = pltpu.PrefetchScalarGridSpec(
        num_scalar_prefetch=0,
        grid=(1,),                                          # single step: everything resident
        in_specs=[
            full((B, D)),                                   # offense_team
            full((5 * B, D)),                               # offense_roster
            full((B, D)),                                   # defense_team
            full((5 * B, D)),                               # defense_roster
            full((L, D, 3 * INNER)),                        # fused wqkv
            full((L, INNER, D)),                            # wo
            full((2 * L, D)),                               # ln1/ln2 interleaved
            full((2 * L, D, DFF)),                          # wi / wff^T interleaved
            full((H * BS, BS)),                             # layer-0 rel-pos bias + mask, stacked
            full((H * BS, BS)),                             # batch mask, tiled over heads
        ],
        out_specs=[full((B, D)), full((5 * B, D)), full((B, D)), full((5 * B, D))],
    )
    return pl.pallas_call(
        t5_stack_kernel,
        out_shape=(
            jax.ShapeDtypeStruct((B, D), jnp.float32),
            jax.ShapeDtypeStruct((5 * B, D), jnp.float32),
            jax.ShapeDtypeStruct((B, D), jnp.float32),
            jax.ShapeDtypeStruct((5 * B, D), jnp.float32),
        ),
        grid_spec=grid_spec,
        compiler_params=pltpu.CompilerParams(dimension_semantics=("arbitrary",)),
    )(ot, orr, dt, dr, params["wqkv"], params["wo"], params["ln"],
      params["ffw"], params["bias0s"], params["masks"])


# ----------------------------- relative position bias (T5, bidirectional) --------------------
def _relative_position_bucket(relative_position, num_buckets=NUM_BUCKETS, max_distance=MAX_DISTANCE):
    num_buckets //= 2
    relative_buckets = (relative_position > 0).astype(jnp.int32) * num_buckets
    relative_position = jnp.abs(relative_position)
    max_exact = num_buckets // 2
    is_small = relative_position < max_exact
    rp_safe = jnp.maximum(relative_position, 1).astype(jnp.float32)
    rp_if_large = max_exact + (
        jnp.log(rp_safe / max_exact) / np.log(max_distance / max_exact) * (num_buckets - max_exact)
    ).astype(jnp.int32)
    rp_if_large = jnp.minimum(rp_if_large, num_buckets - 1)
    relative_buckets = relative_buckets + jnp.where(is_small, relative_position, rp_if_large)
    return relative_buckets


def _row_maps():
    """Row -> (batch, original sequence position) for the group-permuted token ordering."""
    batch_of_row = np.concatenate([
        np.arange(B),                       # offense_team rows
        np.repeat(np.arange(B), 5),         # offense_roster rows
        np.arange(B),                       # defense_team rows
        np.repeat(np.arange(B), 5),         # defense_roster rows
    ]).astype(np.int32)
    seq_of_row = np.concatenate([
        np.zeros(B, np.int32),              # offense_team -> seq pos 0
        np.tile(np.arange(1, 6), B),        # offense_roster -> 1..5
        np.full(B, 6, np.int32),            # defense_team -> 6
        np.tile(np.arange(7, 12), B),       # defense_roster -> 7..11
    ]).astype(np.int32)
    return batch_of_row, seq_of_row


def make_attention_bias(rel_emb):
    """Returns (both in the permuted row ordering, pre-stacked over heads along sublanes):
       bias0s: (H*BS, BS) = layer-0 T5 rel-pos bias + batch mask
       masks:  (H*BS, BS) = batch mask only (0 within a batch, -1e9 across batches)
    Only block 0 has relative_attention_bias; later blocks (called standalone with
    position_bias=None) use a zero bias, so they only need the batch mask."""
    batch_of_row, seq_of_row = _row_maps()
    seq = jnp.asarray(seq_of_row)
    buckets = _relative_position_bucket(seq[None, :] - seq[:, None])        # (BS, BS)
    bias = jnp.transpose(rel_emb[buckets], (2, 0, 1))                       # (H, BS, BS)

    same_batch = batch_of_row[:, None] == batch_of_row[None, :]
    mask = jnp.where(jnp.asarray(same_batch), 0.0, NEG_INF).astype(jnp.float32)  # (BS, BS)

    bias0s = (bias + mask[None]).reshape(H * BS, BS).astype(jnp.float32)    # (H*BS, BS)
    masks = jnp.tile(mask, (H, 1)).astype(jnp.float32)                      # (H*BS, BS)
    return bias0s, masks


# ----------------------------- deterministic parameter init ----------------------------------
def init_params(key):
    ks = jax.random.split(key, 8)
    scale = 0.02
    wq = scale * jax.random.normal(ks[0], (L, D, INNER), jnp.float32)
    wk = scale * jax.random.normal(ks[1], (L, D, INNER), jnp.float32)
    wv = scale * jax.random.normal(ks[2], (L, D, INNER), jnp.float32)
    wo = scale * jax.random.normal(ks[3], (L, INNER, D), jnp.float32)
    wi = scale * jax.random.normal(ks[4], (L, D, DFF), jnp.float32)
    wff = scale * jax.random.normal(ks[5], (L, DFF, D), jnp.float32)
    ln1 = jnp.ones((L, D), jnp.float32)
    ln2 = jnp.ones((L, D), jnp.float32)
    rel_emb = scale * jax.random.normal(ks[6], (NUM_BUCKETS, H), jnp.float32)

    bias0s, masks = make_attention_bias(rel_emb)
    params = {
        "wqkv": jnp.concatenate([wq, wk, wv], axis=-1),                        # (L, D, 3*INNER)
        "wo": wo,                                                              # (L, INNER, D)
        "ln": jnp.stack([ln1, ln2], axis=1).reshape(2 * L, D),                 # (2L, D)
        "ffw": jnp.stack([wi, jnp.transpose(wff, (0, 2, 1))],
                         axis=1).reshape(2 * L, D, DFF),                       # (2L, D, DFF)
        "bias0s": bias0s,                                                      # (H*BS, BS)
        "masks": masks,                                                        # (H*BS, BS)
    }
    return params


# ----------------------------- module wrapper -------------------------------------------------
@functools.partial(jax.jit, static_argnames=("add_upsampled",))
def transformer_backbone_forward(offense_roster, defense_roster, offense_team, defense_team,
                                 params, add_upsampled=False):
    # The kernel assembles the permuted (BS, D) slab itself; these reshapes are bitcasts.
    ot = offense_team.astype(jnp.float32).reshape(B, D)
    orr = offense_roster.astype(jnp.float32).reshape(5 * B, D)
    dt = defense_team.astype(jnp.float32).reshape(B, D)
    dr = defense_roster.astype(jnp.float32).reshape(5 * B, D)

    ot_o, or_o, dt_o, dr_o = run_t5_stack(ot, orr, dt, dr, params)

    off_team_out = ot_o.reshape(B, 1, D)
    off_roster_out = or_o.reshape(B, 5, D)
    def_team_out = dt_o.reshape(B, 1, D)
    def_roster_out = dr_o.reshape(B, 5, D)
    if add_upsampled:
        off_team_out = offense_team + off_team_out
        off_roster_out = offense_roster + off_roster_out
        def_team_out = defense_team + def_team_out
        def_roster_out = defense_roster + def_roster_out
    return off_roster_out, def_roster_out, off_team_out, def_team_out


# ----------------------------- main ------------------------------------------------------------
if __name__ == "__main__":
    key = jax.random.PRNGKey(0)
    k_p, k1, k2, k3, k4 = jax.random.split(key, 5)
    params = init_params(k_p)

    offense_roster = jax.random.normal(k1, (B, 5, D), jnp.float32)
    defense_roster = jax.random.normal(k2, (B, 5, D), jnp.float32)
    offense_team = jax.random.normal(k3, (B, 1, D), jnp.float32)
    defense_team = jax.random.normal(k4, (B, 1, D), jnp.float32)

    out = transformer_backbone_forward(offense_roster, defense_roster, offense_team, defense_team,
                                       params, add_upsampled=False)
    out = jax.block_until_ready(out)

    # sanity on shapes
    assert out[0].shape == (B, 5, D) and out[1].shape == (B, 5, D)
    assert out[2].shape == (B, 1, D) and out[3].shape == (B, 1, D)
    # outputs must be finite (mask / softmax / approx-reciprocal sanity)
    assert all(bool(jnp.all(jnp.isfinite(o))) for o in out)
    print("KERNEL_OK")
</pallas_src>

<mosaic_0001>
module attributes {stable_mosaic.version = 11 : i64} {
  func.func @t5_stack_kernel(%arg0: i32, %arg1: memref<2x32xf32, #tpu.memory_space<vmem>>, %arg2: memref<10x32xf32, #tpu.memory_space<vmem>>, %arg3: memref<2x32xf32, #tpu.memory_space<vmem>>, %arg4: memref<10x32xf32, #tpu.memory_space<vmem>>, %arg5: memref<3x32x96xf32, #tpu.memory_space<vmem>>, %arg6: memref<3x32x32xf32, #tpu.memory_space<vmem>>, %arg7: memref<6x32xf32, #tpu.memory_space<vmem>>, %arg8: memref<6x32x64xf32, #tpu.memory_space<vmem>>, %arg9: memref<96x24xf32, #tpu.memory_space<vmem>>, %arg10: memref<96x24xf32, #tpu.memory_space<vmem>>, %arg11: memref<2x32xf32, #tpu.memory_space<vmem>>, %arg12: memref<10x32xf32, #tpu.memory_space<vmem>>, %arg13: memref<2x32xf32, #tpu.memory_space<vmem>>, %arg14: memref<10x32xf32, #tpu.memory_space<vmem>>) attributes {dimension_semantics = [#tpu.dimension_semantics<arbitrary>], iteration_bounds = array<i64: 1>, scalar_prefetch = 0 : i64, scratch_operands = 0 : i64, tpu.core_type = #tpu.core_type<tc>, window_params = [{pipeline_mode = #tpu.pipeline_mode<synchronous>, transform_indices = @transform_0, window_bounds = array<i64: 2, 32>}, {pipeline_mode = #tpu.pipeline_mode<synchronous>, transform_indices = @transform_1, window_bounds = array<i64: 10, 32>}, {pipeline_mode = #tpu.pipeline_mode<synchronous>, transform_indices = @transform_2, window_bounds = array<i64: 2, 32>}, {pipeline_mode = #tpu.pipeline_mode<synchronous>, transform_indices = @transform_3, window_bounds = array<i64: 10, 32>}, {pipeline_mode = #tpu.pipeline_mode<synchronous>, transform_indices = @transform_4, window_bounds = array<i64: 3, 32, 96>}, {pipeline_mode = #tpu.pipeline_mode<synchronous>, transform_indices = @transform_5, window_bounds = array<i64: 3, 32, 32>}, {pipeline_mode = #tpu.pipeline_mode<synchronous>, transform_indices = @transform_6, window_bounds = array<i64: 6, 32>}, {pipeline_mode = #tpu.pipeline_mode<synchronous>, transform_indices = @transform_7, window_bounds = array<i64: 6, 32, 64>}, {pipeline_mode = #tpu.pipeline_mode<synchronous>, transform_indices = @transform_8, window_bounds = array<i64: 96, 24>}, {pipeline_mode = #tpu.pipeline_mode<synchronous>, transform_indices = @transform_9, window_bounds = array<i64: 96, 24>}, {pipeline_mode = #tpu.pipeline_mode<synchronous>, transform_indices = @transform_10, window_bounds = array<i64: 2, 32>}, {pipeline_mode = #tpu.pipeline_mode<synchronous>, transform_indices = @transform_11, window_bounds = array<i64: 10, 32>}, {pipeline_mode = #tpu.pipeline_mode<synchronous>, transform_indices = @transform_12, window_bounds = array<i64: 2, 32>}, {pipeline_mode = #tpu.pipeline_mode<synchronous>, transform_indices = @transform_13, window_bounds = array<i64: 10, 32>}]} {
    %c0 = arith.constant 0 : index
    %c0_0 = arith.constant 0 : index
    %0 = vector.load %arg1[%c0, %c0_0] : memref<2x32xf32, #tpu.memory_space<vmem>>, vector<2x32xf32>
    %c0_1 = arith.constant 0 : index
    %c0_2 = arith.constant 0 : index
    %1 = vector.load %arg2[%c0_1, %c0_2] : memref<10x32xf32, #tpu.memory_space<vmem>>, vector<10x32xf32>
    %c0_3 = arith.constant 0 : index
    %c0_4 = arith.constant 0 : index
    %2 = vector.load %arg3[%c0_3, %c0_4] : memref<2x32xf32, #tpu.memory_space<vmem>>, vector<2x32xf32>
    %c0_5 = arith.constant 0 : index
    %c0_6 = arith.constant 0 : index
    %3 = vector.load %arg4[%c0_5, %c0_6] : memref<10x32xf32, #tpu.memory_space<vmem>>, vector<10x32xf32>
    %4 = tpu.concatenate %0, %1, %2, %3 in 0 : vector<2x32xf32>, vector<10x32xf32>, vector<2x32xf32>, vector<10x32xf32> -> vector<24x32xf32>
    %c0_7 = arith.constant 0 : index
    %c0_8 = arith.constant 0 : index
    %5 = vector.load %arg7[%c0_7, %c0_8] : memref<6x32xf32, #tpu.memory_space<vmem>>, vector<1x32xf32>
    %6 = vector.shape_cast %5 : vector<1x32xf32> to vector<32xf32>
    %7 = arith.mulf %4, %4 : vector<24x32xf32>
    %cst = arith.constant dense<0.000000e+00> : vector<24xf32>
    %8 = vector.multi_reduction <add>, %7, %cst [1] : vector<24x32xf32> to vector<24xf32>
    %9 = vector.shape_cast %8 : vector<24xf32> to vector<24x1xf32>
    %cst_9 = arith.constant 3.200000e+01 : f32
    %10 = vector.broadcast %cst_9 : f32 to vector<24x1xf32>
    %11 = arith.divf %9, %10 : vector<24x1xf32>
    %cst_10 = arith.constant 9.99999997E-7 : f32
    %12 = vector.broadcast %cst_10 : f32 to vector<24x1xf32>
    %13 = arith.addf %11, %12 : vector<24x1xf32>
    %14 = math.rsqrt %13 : vector<24x1xf32>
    %15 = vector.broadcast %14 : vector<24x1xf32> to vector<24x32xf32>
    %16 = arith.mulf %4, %15 : vector<24x32xf32>
    %17 = vector.shape_cast %6 : vector<32xf32> to vector<1x32xf32>
    %18 = vector.broadcast %17 : vector<1x32xf32> to vector<24x32xf32>
    %19 = arith.mulf %16, %18 : vector<24x32xf32>
    %c0_11 = arith.constant 0 : index
    %c0_12 = arith.constant 0 : index
    %c0_13 = arith.constant 0 : index
    %20 = vector.load %arg5[%c0_11, %c0_12, %c0_13] : memref<3x32x96xf32, #tpu.memory_space<vmem>>, vector<1x32x96xf32>
    %21 = vector.shape_cast %20 : vector<1x32x96xf32> to vector<32x96xf32>
    %cst_14 = arith.constant dense<0.000000e+00> : vector<24x96xf32>
    %22 = tpu.matmul %19, %21, %cst_14 {dimension_numbers = #tpu.dot_dimension_numbers<[1], [0], [0], [1], [0, 0, 1, 1], [], []>} : vector<24x32xf32>, vector<32x96xf32>, vector<24x96xf32> -> vector<24x96xf32>
    %23 = vector.extract_strided_slice %22 {offsets = [0, 0], sizes = [24, 8], strides = [1, 1]} : vector<24x96xf32> to vector<24x8xf32>
    %24 = vector.extract_strided_slice %22 {offsets = [0, 32], sizes = [24, 8], strides = [1, 1]} : vector<24x96xf32> to vector<24x8xf32>
    %cst_15 = arith.constant dense<0.000000e+00> : vector<24x24xf32>
    %25 = tpu.matmul %23, %24, %cst_15 {dimension_numbers = #tpu.dot_dimension_numbers<[1], [1], [0], [0], [0, 0, 1, 0], [], []>} : vector<24x8xf32>, vector<24x8xf32>, vector<24x24xf32> -> vector<24x24xf32>
    %26 = vector.extract_strided_slice %22 {offsets = [0, 8], sizes = [24, 8], strides = [1, 1]} : vector<24x96xf32> to vector<24x8xf32>
    %27 = vector.extract_strided_slice %22 {offsets = [0, 40], sizes = [24, 8], strides = [1, 1]} : vector<24x96xf32> to vector<24x8xf32>
    %cst_16 = arith.constant dense<0.000000e+00> : vector<24x24xf32>
    %28 = tpu.matmul %26, %27, %cst_16 {dimension_numbers = #tpu.dot_dimension_numbers<[1], [1], [0], [0], [0, 0, 1, 0], [], []>} : vector<24x8xf32>, vector<24x8xf32>, vector<24x24xf32> -> vector<24x24xf32>
    %29 = vector.extract_strided_slice %22 {offsets = [0, 16], sizes = [24, 8], strides = [1, 1]} : vector<24x96xf32> to vector<24x8xf32>
    %30 = vector.extract_strided_slice %22 {offsets = [0, 48], sizes = [24, 8], strides = [1, 1]} : vector<24x96xf32> to vector<24x8xf32>
    %cst_17 = arith.constant dense<0.000000e+00> : vector<24x24xf32>
    %31 = tpu.matmul %29, %30, %cst_17 {dimension_numbers = #tpu.dot_dimension_numbers<[1], [1], [0], [0], [0, 0, 1, 0], [], []>} : vector<24x8xf32>, vector<24x8xf32>, vector<24x24xf32> -> vector<24x24xf32>
    %32 = vector.extract_strided_slice %22 {offsets = [0, 24], sizes = [24, 8], strides = [1, 1]} : vector<24x96xf32> to vector<24x8xf32>
    %33 = vector.extract_strided_slice %22 {offsets = [0, 56], sizes = [24, 8], strides = [1, 1]} : vector<24x96xf32> to vector<24x8xf32>
    %cst_18 = arith.constant dense<0.000000e+00> : vector<24x24xf32>
    %34 = tpu.matmul %32, %33, %cst_18 {dimension_numbers = #tpu.dot_dimension_numbers<[1], [1], [0], [0], [0, 0, 1, 0], [], []>} : vector<24x8xf32>, vector<24x8xf32>, vector<24x24xf32> -> vector<24x24xf32>
    %35 = tpu.concatenate %25, %28, %31, %34 in 0 : vector<24x24xf32>, vector<24x24xf32>, vector<24x24xf32>, vector<24x24xf32> -> vector<96x24xf32>
    %c0_19 = arith.constant 0 : index
    %c0_20 = arith.constant 0 : index
    %36 = vector.load %arg9[%c0_19, %c0_20] : memref<96x24xf32, #tpu.memory_space<vmem>>, vector<96x24xf32>
    %37 = arith.addf %35, %36 : vector<96x24xf32>
    %cst_21 = arith.constant dense<0xFF800000> : vector<96xf32>
    %38 = vector.multi_reduction <maximumf>, %37, %cst_21 [1] : vector<96x24xf32> to vector<96xf32>
    %39 = vector.shape_cast %38 : vector<96xf32> to vector<96x1xf32>
    %40 = vector.broadcast %39 : vector<96x1xf32> to vector<96x24xf32>
    %41 = arith.subf %37, %40 : vector<96x24xf32>
    %42 = math.exp %41 : vector<96x24xf32>
    %cst_22 = arith.constant dense<0.000000e+00> : vector<96xf32>
    %43 = vector.multi_reduction <add>, %42, %cst_22 [1] : vector<96x24xf32> to vector<96xf32>
    %44 = vector.shape_cast %43 : vector<96xf32> to vector<96x1xf32>
    %45 = tpu.reciprocal %44 {approx = true} : vector<96x1xf32> -> vector<96x1xf32>
    %46 = vector.broadcast %45 : vector<96x1xf32> to vector<96x24xf32>
    %47 = arith.mulf %42, %46 : vector<96x24xf32>
    %48 = vector.extract_strided_slice %47 {offsets = [0, 0], sizes = [24, 24], strides = [1, 1]} : vector<96x24xf32> to vector<24x24xf32>
    %49 = vector.extract_strided_slice %22 {offsets = [0, 64], sizes = [24, 8], strides = [1, 1]} : vector<24x96xf32> to vector<24x8xf32>
    %cst_23 = arith.constant dense<0.000000e+00> : vector<24x8xf32>
    %50 = tpu.matmul %48, %49, %cst_23 {dimension_numbers = #tpu.dot_dimension_numbers<[1], [0], [0], [1], [0, 0, 1, 1], [], []>} : vector<24x24xf32>, vector<24x8xf32>, vector<24x8xf32> -> vector<24x8xf32>
    %51 = vector.extract_strided_slice %47 {offsets = [24, 0], sizes = [24, 24], strides = [1, 1]} : vector<96x24xf32> to vector<24x24xf32>
    %52 = vector.extract_strided_slice %22 {offsets = [0, 72], sizes = [24, 8], strides = [1, 1]} : vector<24x96xf32> to vector<24x8xf32>
    %cst_24 = arith.constant dense<0.000000e+00> : vector<24x8xf32>
    %53 = tpu.matmul %51, %52, %cst_24 {dimension_numbers = #tpu.dot_dimension_numbers<[1], [0], [0], [1], [0, 0, 1, 1], [], []>} : vector<24x24xf32>, vector<24x8xf32>, vector<24x8xf32> -> vector<24x8xf32>
    %54 = vector.extract_strided_slice %47 {offsets = [48, 0], sizes = [24, 24], strides = [1, 1]} : vector<96x24xf32> to vector<24x24xf32>
    %55 = vector.extract_strided_slice %22 {offsets = [0, 80], sizes = [24, 8], strides = [1, 1]} : vector<24x96xf32> to vector<24x8xf32>
    %cst_25 = arith.constant dense<0.000000e+00> : vector<24x8xf32>
    %56 = tpu.matmul %54, %55, %cst_25 {dimension_numbers = #tpu.dot_dimension_numbers<[1], [0], [0], [1], [0, 0, 1, 1], [], []>} : vector<24x24xf32>, vector<24x8xf32>, vector<24x8xf32> -> vector<24x8xf32>
    %57 = vector.extract_strided_slice %47 {offsets = [72, 0], sizes = [24, 24], strides = [1, 1]} : vector<96x24xf32> to vector<24x24xf32>
    %58 = vector.extract_strided_slice %22 {offsets = [0, 88], sizes = [24, 8], strides = [1, 1]} : vector<24x96xf32> to vector<24x8xf32>
    %cst_26 = arith.constant dense<0.000000e+00> : vector<24x8xf32>
    %59 = tpu.matmul %57, %58, %cst_26 {dimension_numbers = #tpu.dot_dimension_numbers<[1], [0], [0], [1], [0, 0, 1, 1], [], []>} : vector<24x24xf32>, vector<24x8xf32>, vector<24x8xf32> -> vector<24x8xf32>
    %60 = tpu.concatenate %50, %53, %56, %59 in 1 : vector<24x8xf32>, vector<24x8xf32>, vector<24x8xf32>, vector<24x8xf32> -> vector<24x32xf32>
    %c0_27 = arith.constant 0 : index
    %c0_28 = arith.constant 0 : index
    %c0_29 = arith.constant 0 : index
    %61 = vector.load %arg6[%c0_27, %c0_28, %c0_29] : memref<3x32x32xf32, #tpu.memory_space<vmem>>, vector<1x32x32xf32>
    %62 = vector.shape_cast %61 : vector<1x32x32xf32> to vector<32x32xf32>
    %cst_30 = arith.constant dense<0.000000e+00> : vector<24x32xf32>
    %63 = tpu.matmul %60, %62, %cst_30 {dimension_numbers = #tpu.dot_dimension_numbers<[1], [0], [0], [1], [0, 0, 1, 1], [], []>} : vector<24x32xf32>, vector<32x32xf32>, vector<24x32xf32> -> vector<24x32xf32>
    %64 = arith.addf %4, %63 : vector<24x32xf32>
    %c1 = arith.constant 1 : index
    %c0_31 = arith.constant 0 : index
    %65 = vector.load %arg7[%c1, %c0_31] : memref<6x32xf32, #tpu.memory_space<vmem>>, vector<1x32xf32>
    %66 = vector.shape_cast %65 : vector<1x32xf32> to vector<32xf32>
    %67 = arith.mulf %64, %64 : vector<24x32xf32>
    %cst_32 = arith.constant dense<0.000000e+00> : vector<24xf32>
    %68 = vector.multi_reduction <add>, %67, %cst_32 [1] : vector<24x32xf32> to vector<24xf32>
    %69 = vector.shape_cast %68 : vector<24xf32> to vector<24x1xf32>
    %cst_33 = arith.constant 3.200000e+01 : f32
    %70 = vector.broadcast %cst_33 : f32 to vector<24x1xf32>
    %71 = arith.divf %69, %70 : vector<24x1xf32>
    %cst_34 = arith.constant 9.99999997E-7 : f32
    %72 = vector.broadcast %cst_34 : f32 to vector<24x1xf32>
    %73 = arith.addf %71, %72 : vector<24x1xf32>
    %74 = math.rsqrt %73 : vector<24x1xf32>
    %75 = vector.broadcast %74 : vector<24x1xf32> to vector<24x32xf32>
    %76 = arith.mulf %64, %75 : vector<24x32xf32>
    %77 = vector.shape_cast %66 : vector<32xf32> to vector<1x32xf32>
    %78 = vector.broadcast %77 : vector<1x32xf32> to vector<24x32xf32>
    %79 = arith.mulf %76, %78 : vector<24x32xf32>
    %c0_35 = arith.constant 0 : index
    %c0_36 = arith.constant 0 : index
    %c0_37 = arith.constant 0 : index
    %80 = vector.load %arg8[%c0_35, %c0_36, %c0_37] : memref<6x32x64xf32, #tpu.memory_space<vmem>>, vector<1x32x64xf32>
    %81 = vector.shape_cast %80 : vector<1x32x64xf32> to vector<32x64xf32>
    %cst_38 = arith.constant dense<0.000000e+00> : vector<24x64xf32>
    %82 = tpu.matmul %79, %81, %cst_38 {dimension_numbers = #tpu.dot_dimension_numbers<[1], [0], [0], [1], [0, 0, 1, 1], [], []>} : vector<24x32xf32>, vector<32x64xf32>, vector<24x64xf32> -> vector<24x64xf32>
    %cst_39 = arith.constant 0.000000e+00 : f32
    %83 = vector.broadcast %cst_39 : f32 to vector<24x64xf32>
    %84 = arith.maximumf %82, %83 : vector<24x64xf32>
    %c1_40 = arith.constant 1 : index
    %c0_41 = arith.constant 0 : index
    %c0_42 = arith.constant 0 : index
    %85 = vector.load %arg8[%c1_40, %c0_41, %c0_42] : memref<6x32x64xf32, #tpu.memory_space<vmem>>, vector<1x32x64xf32>
    %86 = vector.shape_cast %85 : vector<1x32x64xf32> to vector<32x64xf32>
    %cst_43 = arith.constant dense<0.000000e+00> : vector<24x32xf32>
    %87 = tpu.matmul %84, %86, %cst_43 {dimension_numbers = #tpu.dot_dimension_numbers<[1], [1], [0], [0], [0, 0, 1, 0], [], []>} : vector<24x64xf32>, vector<32x64xf32>, vector<24x32xf32> -> vector<24x32xf32>
    %88 = arith.addf %64, %87 : vector<24x32xf32>
    %c2 = arith.constant 2 : index
    %c0_44 = arith.constant 0 : index
    %89 = vector.load %arg7[%c2, %c0_44] : memref<6x32xf32, #tpu.memory_space<vmem>>, vector<1x32xf32>
    %90 = vector.shape_cast %89 : vector<1x32xf32> to vector<32xf32>
    %91 = arith.mulf %88, %88 : vector<24x32xf32>
    %cst_45 = arith.constant dense<0.000000e+00> : vector<24xf32>
    %92 = vector.multi_reduction <add>, %91, %cst_45 [1] : vector<24x32xf32> to vector<24xf32>
    %93 = vector.shape_cast %92 : vector<24xf32> to vector<24x1xf32>
    %cst_46 = arith.constant 3.200000e+01 : f32
    %94 = vector.broadcast %cst_46 : f32 to vector<24x1xf32>
    %95 = arith.divf %93, %94 : vector<24x1xf32>
    %cst_47 = arith.constant 9.99999997E-7 : f32
    %96 = vector.broadcast %cst_47 : f32 to vector<24x1xf32>
    %97 = arith.addf %95, %96 : vector<24x1xf32>
    %98 = math.rsqrt %97 : vector<24x1xf32>
    %99 = vector.broadcast %98 : vector<24x1xf32> to vector<24x32xf32>
    %100 = arith.mulf %88, %99 : vector<24x32xf32>
    %101 = vector.shape_cast %90 : vector<32xf32> to vector<1x32xf32>
    %102 = vector.broadcast %101 : vector<1x32xf32> to vector<24x32xf32>
    %103 = arith.mulf %100, %102 : vector<24x32xf32>
    %c1_48 = arith.constant 1 : index
    %c0_49 = arith.constant 0 : index
    %c0_50 = arith.constant 0 : index
    %104 = vector.load %arg5[%c1_48, %c0_49, %c0_50] : memref<3x32x96xf32, #tpu.memory_space<vmem>>, vector<1x32x96xf32>
    %105 = vector.shape_cast %104 : vector<1x32x96xf32> to vector<32x96xf32>
    %cst_51 = arith.constant dense<0.000000e+00> : vector<24x96xf32>
    %106 = tpu.matmul %103, %105, %cst_51 {dimension_numbers = #tpu.dot_dimension_numbers<[1], [0], [0], [1], [0, 0, 1, 1], [], []>} : vector<24x32xf32>, vector<32x96xf32>, vector<24x96xf32> -> vector<24x96xf32>
    %107 = vector.extract_strided_slice %106 {offsets = [0, 0], sizes = [24, 8], strides = [1, 1]} : vector<24x96xf32> to vector<24x8xf32>
    %108 = vector.extract_strided_slice %106 {offsets = [0, 32], sizes = [24, 8], strides = [1, 1]} : vector<24x96xf32> to vector<24x8xf32>
    %cst_52 = arith.constant dense<0.000000e+00> : vector<24x24xf32>
    %109 = tpu.matmul %107, %108, %cst_52 {dimension_numbers = #tpu.dot_dimension_numbers<[1], [1], [0], [0], [0, 0, 1, 0], [], []>} : vector<24x8xf32>, vector<24x8xf32>, vector<24x24xf32> -> vector<24x24xf32>
    %110 = vector.extract_strided_slice %106 {offsets = [0, 8], sizes = [24, 8], strides = [1, 1]} : vector<24x96xf32> to vector<24x8xf32>
    %111 = vector.extract_strided_slice %106 {offsets = [0, 40], sizes = [24, 8], strides = [1, 1]} : vector<24x96xf32> to vector<24x8xf32>
    %cst_53 = arith.constant dense<0.000000e+00> : vector<24x24xf32>
    %112 = tpu.matmul %110, %111, %cst_53 {dimension_numbers = #tpu.dot_dimension_numbers<[1], [1], [0], [0], [0, 0, 1, 0], [], []>} : vector<24x8xf32>, vector<24x8xf32>, vector<24x24xf32> -> vector<24x24xf32>
    %113 = vector.extract_strided_slice %106 {offsets = [0, 16], sizes = [24, 8], strides = [1, 1]} : vector<24x96xf32> to vector<24x8xf32>
    %114 = vector.extract_strided_slice %106 {offsets = [0, 48], sizes = [24, 8], strides = [1, 1]} : vector<24x96xf32> to vector<24x8xf32>
    %cst_54 = arith.constant dense<0.000000e+00> : vector<24x24xf32>
    %115 = tpu.matmul %113, %114, %cst_54 {dimension_numbers = #tpu.dot_dimension_numbers<[1], [1], [0], [0], [0, 0, 1, 0], [], []>} : vector<24x8xf32>, vector<24x8xf32>, vector<24x24xf32> -> vector<24x24xf32>
    %116 = vector.extract_strided_slice %106 {offsets = [0, 24], sizes = [24, 8], strides = [1, 1]} : vector<24x96xf32> to vector<24x8xf32>
    %117 = vector.extract_strided_slice %106 {offsets = [0, 56], sizes = [24, 8], strides = [1, 1]} : vector<24x96xf32> to vector<24x8xf32>
    %cst_55 = arith.constant dense<0.000000e+00> : vector<24x24xf32>
    %118 = tpu.matmul %116, %117, %cst_55 {dimension_numbers = #tpu.dot_dimension_numbers<[1], [1], [0], [0], [0, 0, 1, 0], [], []>} : vector<24x8xf32>, vector<24x8xf32>, vector<24x24xf32> -> vector<24x24xf32>
    %119 = tpu.concatenate %109, %112, %115, %118 in 0 : vector<24x24xf32>, vector<24x24xf32>, vector<24x24xf32>, vector<24x24xf32> -> vector<96x24xf32>
    %c0_56 = arith.constant 0 : index
    %c0_57 = arith.constant 0 : index
    %120 = vector.load %arg10[%c0_56, %c0_57] : memref<96x24xf32, #tpu.memory_space<vmem>>, vector<96x24xf32>
    %121 = arith.addf %119, %120 : vector<96x24xf32>
    %cst_58 = arith.constant dense<0xFF800000> : vector<96xf32>
    %122 = vector.multi_reduction <maximumf>, %121, %cst_58 [1] : vector<96x24xf32> to vector<96xf32>
    %123 = vector.shape_cast %122 : vector<96xf32> to vector<96x1xf32>
    %124 = vector.broadcast %123 : vector<96x1xf32> to vector<96x24xf32>
    %125 = arith.subf %121, %124 : vector<96x24xf32>
    %126 = math.exp %125 : vector<96x24xf32>
    %cst_59 = arith.constant dense<0.000000e+00> : vector<96xf32>
    %127 = vector.multi_reduction <add>, %126, %cst_59 [1] : vector<96x24xf32> to vector<96xf32>
    %128 = vector.shape_cast %127 : vector<96xf32> to vector<96x1xf32>
    %129 = tpu.reciprocal %128 {approx = true} : vector<96x1xf32> -> vector<96x1xf32>
    %130 = vector.broadcast %129 : vector<96x1xf32> to vector<96x24xf32>
    %131 = arith.mulf %126, %130 : vector<96x24xf32>
    %132 = vector.extract_strided_slice %131 {offsets = [0, 0], sizes = [24, 24], strides = [1, 1]} : vector<96x24xf32> to vector<24x24xf32>
    %133 = vector.extract_strided_slice %106 {offsets = [0, 64], sizes = [24, 8], strides = [1, 1]} : vector<24x96xf32> to vector<24x8xf32>
    %cst_60 = arith.constant dense<0.000000e+00> : vector<24x8xf32>
    %134 = tpu.matmul %132, %133, %cst_60 {dimension_numbers = #tpu.dot_dimension_numbers<[1], [0], [0], [1], [0, 0, 1, 1], [], []>} : vector<24x24xf32>, vector<24x8xf32>, vector<24x8xf32> -> vector<24x8xf32>
    %135 = vector.extract_strided_slice %131 {offsets = [24, 0], sizes = [24, 24], strides = [1, 1]} : vector<96x24xf32> to vector<24x24xf32>
    %136 = vector.extract_strided_slice %106 {offsets = [0, 72], sizes = [24, 8], strides = [1, 1]} : vector<24x96xf32> to vector<24x8xf32>
    %cst_61 = arith.constant dense<0.000000e+00> : vector<24x8xf32>
    %137 = tpu.matmul %135, %136, %cst_61 {dimension_numbers = #tpu.dot_dimension_numbers<[1], [0], [0], [1], [0, 0, 1, 1], [], []>} : vector<24x24xf32>, vector<24x8xf32>, vector<24x8xf32> -> vector<24x8xf32>
    %138 = vector.extract_strided_slice %131 {offsets = [48, 0], sizes = [24, 24], strides = [1, 1]} : vector<96x24xf32> to vector<24x24xf32>
    %139 = vector.extract_strided_slice %106 {offsets = [0, 80], sizes = [24, 8], strides = [1, 1]} : vector<24x96xf32> to vector<24x8xf32>
    %cst_62 = arith.constant dense<0.000000e+00> : vector<24x8xf32>
    %140 = tpu.matmul %138, %139, %cst_62 {dimension_numbers = #tpu.dot_dimension_numbers<[1], [0], [0], [1], [0, 0, 1, 1], [], []>} : vector<24x24xf32>, vector<24x8xf32>, vector<24x8xf32> -> vector<24x8xf32>
    %141 = vector.extract_strided_slice %131 {offsets = [72, 0], sizes = [24, 24], strides = [1, 1]} : vector<96x24xf32> to vector<24x24xf32>
    %142 = vector.extract_strided_slice %106 {offsets = [0, 88], sizes = [24, 8], strides = [1, 1]} : vector<24x96xf32> to vector<24x8xf32>
    %cst_63 = arith.constant dense<0.000000e+00> : vector<24x8xf32>
    %143 = tpu.matmul %141, %142, %cst_63 {dimension_numbers = #tpu.dot_dimension_numbers<[1], [0], [0], [1], [0, 0, 1, 1], [], []>} : vector<24x24xf32>, vector<24x8xf32>, vector<24x8xf32> -> vector<24x8xf32>
    %144 = tpu.concatenate %134, %137, %140, %143 in 1 : vector<24x8xf32>, vector<24x8xf32>, vector<24x8xf32>, vector<24x8xf32> -> vector<24x32xf32>
    %c1_64 = arith.constant 1 : index
    %c0_65 = arith.constant 0 : index
    %c0_66 = arith.constant 0 : index
    %145 = vector.load %arg6[%c1_64, %c0_65, %c0_66] : memref<3x32x32xf32, #tpu.memory_space<vmem>>, vector<1x32x32xf32>
    %146 = vector.shape_cast %145 : vector<1x32x32xf32> to vector<32x32xf32>
    %cst_67 = arith.constant dense<0.000000e+00> : vector<24x32xf32>
    %147 = tpu.matmul %144, %146, %cst_67 {dimension_numbers = #tpu.dot_dimension_numbers<[1], [0], [0], [1], [0, 0, 1, 1], [], []>} : vector<24x32xf32>, vector<32x32xf32>, vector<24x32xf32> -> vector<24x32xf32>
    %148 = arith.addf %88, %147 : vector<24x32xf32>
    %c3 = arith.constant 3 : index
    %c0_68 = arith.constant 0 : index
    %149 = vector.load %arg7[%c3, %c0_68] : memref<6x32xf32, #tpu.memory_space<vmem>>, vector<1x32xf32>
    %150 = vector.shape_cast %149 : vector<1x32xf32> to vector<32xf32>
    %151 = arith.mulf %148, %148 : vector<24x32xf32>
    %cst_69 = arith.constant dense<0.000000e+00> : vector<24xf32>
    %152 = vector.multi_reduction <add>, %151, %cst_69 [1] : vector<24x32xf32> to vector<24xf32>
    %153 = vector.shape_cast %152 : vector<24xf32> to vector<24x1xf32>
    %cst_70 = arith.constant 3.200000e+01 : f32
    %154 = vector.broadcast %cst_70 : f32 to vector<24x1xf32>
    %155 = arith.divf %153, %154 : vector<24x1xf32>
    %cst_71 = arith.constant 9.99999997E-7 : f32
    %156 = vector.broadcast %cst_71 : f32 to vector<24x1xf32>
    %157 = arith.addf %155, %156 : vector<24x1xf32>
    %158 = math.rsqrt %157 : vector<24x1xf32>
    %159 = vector.broadcast %158 : vector<24x1xf32> to vector<24x32xf32>
    %160 = arith.mulf %148, %159 : vector<24x32xf32>
    %161 = vector.shape_cast %150 : vector<32xf32> to vector<1x32xf32>
    %162 = vector.broadcast %161 : vector<1x32xf32> to vector<24x32xf32>
    %163 = arith.mulf %160, %162 : vector<24x32xf32>
    %c2_72 = arith.constant 2 : index
    %c0_73 = arith.constant 0 : index
    %c0_74 = arith.constant 0 : index
    %164 = vector.load %arg8[%c2_72, %c0_73, %c0_74] : memref<6x32x64xf32, #tpu.memory_space<vmem>>, vector<1x32x64xf32>
    %165 = vector.shape_cast %164 : vector<1x32x64xf32> to vector<32x64xf32>
    %cst_75 = arith.constant dense<0.000000e+00> : vector<24x64xf32>
    %166 = tpu.matmul %163, %165, %cst_75 {dimension_numbers = #tpu.dot_dimension_numbers<[1], [0], [0], [1], [0, 0, 1, 1], [], []>} : vector<24x32xf32>, vector<32x64xf32>, vector<24x64xf32> -> vector<24x64xf32>
    %cst_76 = arith.constant 0.000000e+00 : f32
    %167 = vector.broadcast %cst_76 : f32 to vector<24x64xf32>
    %168 = arith.maximumf %166, %167 : vector<24x64xf32>
    %c3_77 = arith.constant 3 : index
    %c0_78 = arith.constant 0 : index
    %c0_79 = arith.constant 0 : index
    %169 = vector.load %arg8[%c3_77, %c0_78, %c0_79] : memref<6x32x64xf32, #tpu.memory_space<vmem>>, vector<1x32x64xf32>
    %170 = vector.shape_cast %169 : vector<1x32x64xf32> to vector<32x64xf32>
    %cst_80 = arith.constant dense<0.000000e+00> : vector<24x32xf32>
    %171 = tpu.matmul %168, %170, %cst_80 {dimension_numbers = #tpu.dot_dimension_numbers<[1], [1], [0], [0], [0, 0, 1, 0], [], []>} : vector<24x64xf32>, vector<32x64xf32>, vector<24x32xf32> -> vector<24x32xf32>
    %172 = arith.addf %148, %171 : vector<24x32xf32>
    %c4 = arith.constant 4 : index
    %c0_81 = arith.constant 0 : index
    %173 = vector.load %arg7[%c4, %c0_81] : memref<6x32xf32, #tpu.memory_space<vmem>>, vector<1x32xf32>
    %174 = vector.shape_cast %173 : vector<1x32xf32> to vector<32xf32>
    %175 = arith.mulf %172, %172 : vector<24x32xf32>
    %cst_82 = arith.constant dense<0.000000e+00> : vector<24xf32>
    %176 = vector.multi_reduction <add>, %175, %cst_82 [1] : vector<24x32xf32> to vector<24xf32>
    %177 = vector.shape_cast %176 : vector<24xf32> to vector<24x1xf32>
    %cst_83 = arith.constant 3.200000e+01 : f32
    %178 = vector.broadcast %cst_83 : f32 to vector<24x1xf32>
    %179 = arith.divf %177, %178 : vector<24x1xf32>
    %cst_84 = arith.constant 9.99999997E-7 : f32
    %180 = vector.broadcast %cst_84 : f32 to vector<24x1xf32>
    %181 = arith.addf %179, %180 : vector<24x1xf32>
    %182 = math.rsqrt %181 : vector<24x1xf32>
    %183 = vector.broadcast %182 : vector<24x1xf32> to vector<24x32xf32>
    %184 = arith.mulf %172, %183 : vector<24x32xf32>
    %185 = vector.shape_cast %174 : vector<32xf32> to vector<1x32xf32>
    %186 = vector.broadcast %185 : vector<1x32xf32> to vector<24x32xf32>
    %187 = arith.mulf %184, %186 : vector<24x32xf32>
    %c2_85 = arith.constant 2 : index
    %c0_86 = arith.constant 0 : index
    %c0_87 = arith.constant 0 : index
    %188 = vector.load %arg5[%c2_85, %c0_86, %c0_87] : memref<3x32x96xf32, #tpu.memory_space<vmem>>, vector<1x32x96xf32>
    %189 = vector.shape_cast %188 : vector<1x32x96xf32> to vector<32x96xf32>
    %cst_88 = arith.constant dense<0.000000e+00> : vector<24x96xf32>
    %190 = tpu.matmul %187, %189, %cst_88 {dimension_numbers = #tpu.dot_dimension_numbers<[1], [0], [0], [1], [0, 0, 1, 1], [], []>} : vector<24x32xf32>, vector<32x96xf32>, vector<24x96xf32> -> vector<24x96xf32>
    %191 = vector.extract_strided_slice %190 {offsets = [0, 0], sizes = [24, 8], strides = [1, 1]} : vector<24x96xf32> to vector<24x8xf32>
    %192 = vector.extract_strided_slice %190 {offsets = [0, 32], sizes = [24, 8], strides = [1, 1]} : vector<24x96xf32> to vector<24x8xf32>
    %cst_89 = arith.constant dense<0.000000e+00> : vector<24x24xf32>
    %193 = tpu.matmul %191, %192, %cst_89 {dimension_numbers = #tpu.dot_dimension_numbers<[1], [1], [0], [0], [0, 0, 1, 0], [], []>} : vector<24x8xf32>, vector<24x8xf32>, vector<24x24xf32> -> vector<24x24xf32>
    %194 = vector.extract_strided_slice %190 {offsets = [0, 8], sizes = [24, 8], strides = [1, 1]} : vector<24x96xf32> to vector<24x8xf32>
    %195 = vector.extract_strided_slice %190 {offsets = [0, 40], sizes = [24, 8], strides = [1, 1]} : vector<24x96xf32> to vector<24x8xf32>
    %cst_90 = arith.constant dense<0.000000e+00> : vector<24x24xf32>
    %196 = tpu.matmul %194, %195, %cst_90 {dimension_numbers = #tpu.dot_dimension_numbers<[1], [1], [0], [0], [0, 0, 1, 0], [], []>} : vector<24x8xf32>, vector<24x8xf32>, vector<24x24xf32> -> vector<24x24xf32>
    %197 = vector.extract_strided_slice %190 {offsets = [0, 16], sizes = [24, 8], strides = [1, 1]} : vector<24x96xf32> to vector<24x8xf32>
    %198 = vector.extract_strided_slice %190 {offsets = [0, 48], sizes = [24, 8], strides = [1, 1]} : vector<24x96xf32> to vector<24x8xf32>
    %cst_91 = arith.constant dense<0.000000e+00> : vector<24x24xf32>
    %199 = tpu.matmul %197, %198, %cst_91 {dimension_numbers = #tpu.dot_dimension_numbers<[1], [1], [0], [0], [0, 0, 1, 0], [], []>} : vector<24x8xf32>, vector<24x8xf32>, vector<24x24xf32> -> vector<24x24xf32>
    %200 = vector.extract_strided_slice %190 {offsets = [0, 24], sizes = [24, 8], strides = [1, 1]} : vector<24x96xf32> to vector<24x8xf32>
    %201 = vector.extract_strided_slice %190 {offsets = [0, 56], sizes = [24, 8], strides = [1, 1]} : vector<24x96xf32> to vector<24x8xf32>
    %cst_92 = arith.constant dense<0.000000e+00> : vector<24x24xf32>
    %202 = tpu.matmul %200, %201, %cst_92 {dimension_numbers = #tpu.dot_dimension_numbers<[1], [1], [0], [0], [0, 0, 1, 0], [], []>} : vector<24x8xf32>, vector<24x8xf32>, vector<24x24xf32> -> vector<24x24xf32>
    %203 = tpu.concatenate %193, %196, %199, %202 in 0 : vector<24x24xf32>, vector<24x24xf32>, vector<24x24xf32>, vector<24x24xf32> -> vector<96x24xf32>
    %c0_93 = arith.constant 0 : index
    %c0_94 = arith.constant 0 : index
    %204 = vector.load %arg10[%c0_93, %c0_94] : memref<96x24xf32, #tpu.memory_space<vmem>>, vector<96x24xf32>
    %205 = arith.addf %203, %204 : vector<96x24xf32>
    %cst_95 = arith.constant dense<0xFF800000> : vector<96xf32>
    %206 = vector.multi_reduction <maximumf>, %205, %cst_95 [1] : vector<96x24xf32> to vector<96xf32>
    %207 = vector.shape_cast %206 : vector<96xf32> to vector<96x1xf32>
    %208 = vector.broadcast %207 : vector<96x1xf32> to vector<96x24xf32>
    %209 = arith.subf %205, %208 : vector<96x24xf32>
    %210 = math.exp %209 : vector<96x24xf32>
    %cst_96 = arith.constant dense<0.000000e+00> : vector<96xf32>
    %211 = vector.multi_reduction <add>, %210, %cst_96 [1] : vector<96x24xf32> to vector<96xf32>
    %212 = vector.shape_cast %211 : vector<96xf32> to vector<96x1xf32>
    %213 = tpu.reciprocal %212 {approx = true} : vector<96x1xf32> -> vector<96x1xf32>
    %214 = vector.broadcast %213 : vector<96x1xf32> to vector<96x24xf32>
    %215 = arith.mulf %210, %214 : vector<96x24xf32>
    %216 = vector.extract_strided_slice %215 {offsets = [0, 0], sizes = [24, 24], strides = [1, 1]} : vector<96x24xf32> to vector<24x24xf32>
    %217 = vector.extract_strided_slice %190 {offsets = [0, 64], sizes = [24, 8], strides = [1, 1]} : vector<24x96xf32> to vector<24x8xf32>
    %cst_97 = arith.constant dense<0.000000e+00> : vector<24x8xf32>
    %218 = tpu.matmul %216, %217, %cst_97 {dimension_numbers = #tpu.dot_dimension_numbers<[1], [0], [0], [1], [0, 0, 1, 1], [], []>} : vector<24x24xf32>, vector<24x8xf32>, vector<24x8xf32> -> vector<24x8xf32>
    %219 = vector.extract_strided_slice %215 {offsets = [24, 0], sizes = [24, 24], strides = [1, 1]} : vector<96x24xf32> to vector<24x24xf32>
    %220 = vector.extract_strided_slice %190 {offsets = [0, 72], sizes = [24, 8], strides = [1, 1]} : vector<24x96xf32> to vector<24x8xf32>
    %cst_98 = arith.constant dense<0.000000e+00> : vector<24x8xf32>
    %221 = tpu.matmul %219, %220, %cst_98 {dimension_numbers = #tpu.dot_dimension_numbers<[1], [0], [0], [1], [0, 0, 1, 1], [], []>} : vector<24x24xf32>, vector<24x8xf32>, vector<24x8xf32> -> vector<24x8xf32>
    %222 = vector.extract_strided_slice %215 {offsets = [48, 0], sizes = [24, 24], strides = [1, 1]} : vector<96x24xf32> to vector<24x24xf32>
    %223 = vector.extract_strided_slice %190 {offsets = [0, 80], sizes = [24, 8], strides = [1, 1]} : vector<24x96xf32> to vector<24x8xf32>
    %cst_99 = arith.constant dense<0.000000e+00> : vector<24x8xf32>
    %224 = tpu.matmul %222, %223, %cst_99 {dimension_numbers = #tpu.dot_dimension_numbers<[1], [0], [0], [1], [0, 0, 1, 1], [], []>} : vector<24x24xf32>, vector<24x8xf32>, vector<24x8xf32> -> vector<24x8xf32>
    %225 = vector.extract_strided_slice %215 {offsets = [72, 0], sizes = [24, 24], strides = [1, 1]} : vector<96x24xf32> to vector<24x24xf32>
    %226 = vector.extract_strided_slice %190 {offsets = [0, 88], sizes = [24, 8], strides = [1, 1]} : vector<24x96xf32> to vector<24x8xf32>
    %cst_100 = arith.constant dense<0.000000e+00> : vector<24x8xf32>
    %227 = tpu.matmul %225, %226, %cst_100 {dimension_numbers = #tpu.dot_dimension_numbers<[1], [0], [0], [1], [0, 0, 1, 1], [], []>} : vector<24x24xf32>, vector<24x8xf32>, vector<24x8xf32> -> vector<24x8xf32>
    %228 = tpu.concatenate %218, %221, %224, %227 in 1 : vector<24x8xf32>, vector<24x8xf32>, vector<24x8xf32>, vector<24x8xf32> -> vector<24x32xf32>
    %c2_101 = arith.constant 2 : index
    %c0_102 = arith.constant 0 : index
    %c0_103 = arith.constant 0 : index
    %229 = vector.load %arg6[%c2_101, %c0_102, %c0_103] : memref<3x32x32xf32, #tpu.memory_space<vmem>>, vector<1x32x32xf32>
    %230 = vector.shape_cast %229 : vector<1x32x32xf32> to vector<32x32xf32>
    %cst_104 = arith.constant dense<0.000000e+00> : vector<24x32xf32>
    %231 = tpu.matmul %228, %230, %cst_104 {dimension_numbers = #tpu.dot_dimension_numbers<[1], [0], [0], [1], [0, 0, 1, 1], [], []>} : vector<24x32xf32>, vector<32x32xf32>, vector<24x32xf32> -> vector<24x32xf32>
    %232 = arith.addf %172, %231 : vector<24x32xf32>
    %c5 = arith.constant 5 : index
    %c0_105 = arith.constant 0 : index
    %233 = vector.load %arg7[%c5, %c0_105] : memref<6x32xf32, #tpu.memory_space<vmem>>, vector<1x32xf32>
    %234 = vector.shape_cast %233 : vector<1x32xf32> to vector<32xf32>
    %235 = arith.mulf %232, %232 : vector<24x32xf32>
    %cst_106 = arith.constant dense<0.000000e+00> : vector<24xf32>
    %236 = vector.multi_reduction <add>, %235, %cst_106 [1] : vector<24x32xf32> to vector<24xf32>
    %237 = vector.shape_cast %236 : vector<24xf32> to vector<24x1xf32>
    %cst_107 = arith.constant 3.200000e+01 : f32
    %238 = vector.broadcast %cst_107 : f32 to vector<24x1xf32>
    %239 = arith.divf %237, %238 : vector<24x1xf32>
    %cst_108 = arith.constant 9.99999997E-7 : f32
    %240 = vector.broadcast %cst_108 : f32 to vector<24x1xf32>
    %241 = arith.addf %239, %240 : vector<24x1xf32>
    %242 = math.rsqrt %241 : vector<24x1xf32>
    %243 = vector.broadcast %242 : vector<24x1xf32> to vector<24x32xf32>
    %244 = arith.mulf %232, %243 : vector<24x32xf32>
    %245 = vector.shape_cast %234 : vector<32xf32> to vector<1x32xf32>
    %246 = vector.broadcast %245 : vector<1x32xf32> to vector<24x32xf32>
    %247 = arith.mulf %244, %246 : vector<24x32xf32>
    %c4_109 = arith.constant 4 : index
    %c0_110 = arith.constant 0 : index
    %c0_111 = arith.constant 0 : index
    %248 = vector.load %arg8[%c4_109, %c0_110, %c0_111] : memref<6x32x64xf32, #tpu.memory_space<vmem>>, vector<1x32x64xf32>
    %249 = vector.shape_cast %248 : vector<1x32x64xf32> to vector<32x64xf32>
    %cst_112 = arith.constant dense<0.000000e+00> : vector<24x64xf32>
    %250 = tpu.matmul %247, %249, %cst_112 {dimension_numbers = #tpu.dot_dimension_numbers<[1], [0], [0], [1], [0, 0, 1, 1], [], []>} : vector<24x32xf32>, vector<32x64xf32>, vector<24x64xf32> -> vector<24x64xf32>
    %cst_113 = arith.constant 0.000000e+00 : f32
    %251 = vector.broadcast %cst_113 : f32 to vector<24x64xf32>
    %252 = arith.maximumf %250, %251 : vector<24x64xf32>
    %c5_114 = arith.constant 5 : index
    %c0_115 = arith.constant 0 : index
    %c0_116 = arith.constant 0 : index
    %253 = vector.load %arg8[%c5_114, %c0_115, %c0_116] : memref<6x32x64xf32, #tpu.memory_space<vmem>>, vector<1x32x64xf32>
    %254 = vector.shape_cast %253 : vector<1x32x64xf32> to vector<32x64xf32>
    %cst_117 = arith.constant dense<0.000000e+00> : vector<24x32xf32>
    %255 = tpu.matmul %252, %254, %cst_117 {dimension_numbers = #tpu.dot_dimension_numbers<[1], [1], [0], [0], [0, 0, 1, 0], [], []>} : vector<24x64xf32>, vector<32x64xf32>, vector<24x32xf32> -> vector<24x32xf32>
    %256 = arith.addf %232, %255 : vector<24x32xf32>
    %257 = vector.extract_strided_slice %256 {offsets = [0, 0], sizes = [2, 32], strides = [1, 1]} : vector<24x32xf32> to vector<2x32xf32>
    %c0_118 = arith.constant 0 : index
    %c0_119 = arith.constant 0 : index
    %258 = vector.load %arg11[%c0_118, %c0_119] : memref<2x32xf32, #tpu.memory_space<vmem>>, vector<2x32xf32>
    tpu.vector_store %arg11[%c0_118, %c0_119], %257 {strides = array<i32>} : memref<2x32xf32, #tpu.memory_space<vmem>>, vector<2x32xf32>,
    %259 = vector.extract_strided_slice %256 {offsets = [2, 0], sizes = [10, 32], strides = [1, 1]} : vector<24x32xf32> to vector<10x32xf32>
    %c0_120 = arith.constant 0 : index
    %c0_121 = arith.constant 0 : index
    %260 = vector.load %arg12[%c0_120, %c0_121] : memref<10x32xf32, #tpu.memory_space<vmem>>, vector<10x32xf32>
    tpu.vector_store %arg12[%c0_120, %c0_121], %259 {strides = array<i32>} : memref<10x32xf32, #tpu.memory_space<vmem>>, vector<10x32xf32>,
    %261 = vector.extract_strided_slice %256 {offsets = [12, 0], sizes = [2, 32], strides = [1, 1]} : vector<24x32xf32> to vector<2x32xf32>
    %c0_122 = arith.constant 0 : index
    %c0_123 = arith.constant 0 : index
    %262 = vector.load %arg13[%c0_122, %c0_123] : memref<2x32xf32, #tpu.memory_space<vmem>>, vector<2x32xf32>
    tpu.vector_store %arg13[%c0_122, %c0_123], %261 {strides = array<i32>} : memref<2x32xf32, #tpu.memory_space<vmem>>, vector<2x32xf32>,
    %263 = vector.extract_strided_slice %256 {offsets = [14, 0], sizes = [10, 32], strides = [1, 1]} : vector<24x32xf32> to vector<10x32xf32>
    %c0_124 = arith.constant 0 : index
    %c0_125 = arith.constant 0 : index
    %264 = vector.load %arg14[%c0_124, %c0_125] : memref<10x32xf32, #tpu.memory_space<vmem>>, vector<10x32xf32>
    tpu.vector_store %arg14[%c0_124, %c0_125], %263 {strides = array<i32>} : memref<10x32xf32, #tpu.memory_space<vmem>>, vector<10x32xf32>,
    return
  }
  func.func @transform_0(%arg0: i32) -> (i32, i32) {
    %c0_i32 = arith.constant 0 : i32
    %c0_i32_0 = arith.constant 0 : i32
    %c0_i32_1 = arith.constant 0 : i32
    return %c0_i32, %c0_i32_0 : i32, i32
  }
  func.func @transform_1(%arg0: i32) -> (i32, i32) {
    %c0_i32 = arith.constant 0 : i32
    %c0_i32_0 = arith.constant 0 : i32
    %c0_i32_1 = arith.constant 0 : i32
    return %c0_i32, %c0_i32_0 : i32, i32
  }
  func.func @transform_2(%arg0: i32) -> (i32, i32) {
    %c0_i32 = arith.constant 0 : i32
    %c0_i32_0 = arith.constant 0 : i32
    %c0_i32_1 = arith.constant 0 : i32
    return %c0_i32, %c0_i32_0 : i32, i32
  }
  func.func @transform_3(%arg0: i32) -> (i32, i32) {
    %c0_i32 = arith.constant 0 : i32
    %c0_i32_0 = arith.constant 0 : i32
    %c0_i32_1 = arith.constant 0 : i32
    return %c0_i32, %c0_i32_0 : i32, i32
  }
  func.func @transform_4(%arg0: i32) -> (i32, i32, i32) {
    %c0_i32 = arith.constant 0 : i32
    %c0_i32_0 = arith.constant 0 : i32
    %c0_i32_1 = arith.constant 0 : i32
    %c0_i32_2 = arith.constant 0 : i32
    return %c0_i32, %c0_i32_0, %c0_i32_1 : i32, i32, i32
  }
  func.func @transform_5(%arg0: i32) -> (i32, i32, i32) {
    %c0_i32 = arith.constant 0 : i32
    %c0_i32_0 = arith.constant 0 : i32
    %c0_i32_1 = arith.constant 0 : i32
    %c0_i32_2 = arith.constant 0 : i32
    return %c0_i32, %c0_i32_0, %c0_i32_1 : i32, i32, i32
  }
  func.func @transform_6(%arg0: i32) -> (i32, i32) {
    %c0_i32 = arith.constant 0 : i32
    %c0_i32_0 = arith.constant 0 : i32
    %c0_i32_1 = arith.constant 0 : i32
    return %c0_i32, %c0_i32_0 : i32, i32
  }
  func.func @transform_7(%arg0: i32) -> (i32, i32, i32) {
    %c0_i32 = arith.constant 0 : i32
    %c0_i32_0 = arith.constant 0 : i32
    %c0_i32_1 = arith.constant 0 : i32
    %c0_i32_2 = arith.constant 0 : i32
    return %c0_i32, %c0_i32_0, %c0_i32_1 : i32, i32, i32
  }
  func.func @transform_8(%arg0: i32) -> (i32, i32) {
    %c0_i32 = arith.constant 0 : i32
    %c0_i32_0 = arith.constant 0 : i32
    %c0_i32_1 = arith.constant 0 : i32
    return %c0_i32, %c0_i32_0 : i32, i32
  }
  func.func @transform_9(%arg0: i32) -> (i32, i32) {
    %c0_i32 = arith.constant 0 : i32
    %c0_i32_0 = arith.constant 0 : i32
    %c0_i32_1 = arith.constant 0 : i32
    return %c0_i32, %c0_i32_0 : i32, i32
  }
  func.func @transform_10(%arg0: i32) -> (i32, i32) {
    %c0_i32 = arith.constant 0 : i32
    %c0_i32_0 = arith.constant 0 : i32
    %c0_i32_1 = arith.constant 0 : i32
    return %c0_i32, %c0_i32_0 : i32, i32
  }
  func.func @transform_11(%arg0: i32) -> (i32, i32) {
    %c0_i32 = arith.constant 0 : i32
    %c0_i32_0 = arith.constant 0 : i32
    %c0_i32_1 = arith.constant 0 : i32
    return %c0_i32, %c0_i32_0 : i32, i32
  }
  func.func @transform_12(%arg0: i32) -> (i32, i32) {
    %c0_i32 = arith.constant 0 : i32
    %c0_i32_0 = arith.constant 0 : i32
    %c0_i32_1 = arith.constant 0 : i32
    return %c0_i32, %c0_i32_0 : i32, i32
  }
  func.func @transform_13(%arg0: i32) -> (i32, i32) {
    %c0_i32 = arith.constant 0 : i32
    %c0_i32_0 = arith.constant 0 : i32
    %c0_i32_1 = arith.constant 0 : i32
    return %c0_i32, %c0_i32_0 : i32, i32
  }
}

</mosaic_0001>

<llo_original>
// kernel: transformer_backbone_forward.1
$region0: #{transformer_backbone_forward.1}
  #allocation0 [shape = 'u32[]', space=smem, size = 0x4, offset = 0x4, fixed_abs, tag = 'smem constant byte address 0x4 - core index']
  #allocation1 [shape = 'u32[72,128]{1,0:T(1,128)}', space=vmem, size = 0x9000, scoped, tag = 'internal scratch']
  %s0 = inlined_call_operand.vmem [shape: f32[2,32], index: 0, kind: input, shape index: {}]
  %s1 = inlined_call_operand.vmem [shape: f32[10,32], index: 1, kind: input, shape index: {}]
  %s2 = inlined_call_operand.vmem [shape: f32[2,32], index: 2, kind: input, shape index: {}]
  %s3 = inlined_call_operand.vmem [shape: f32[10,32], index: 3, kind: input, shape index: {}]
  %s4 = inlined_call_operand.hbm [shape: f32[3,32,96], index: 4, kind: input, shape index: {}]
  %s5 = inlined_call_operand.hbm [shape: f32[3,32,32], index: 5, kind: input, shape index: {}]
  %s6 = inlined_call_operand.vmem [shape: f32[6,32], index: 6, kind: input, shape index: {}]
  %s7 = inlined_call_operand.vmem [shape: f32[6,32,64], index: 7, kind: input, shape index: {}]
  %s8 = inlined_call_operand.vmem [shape: f32[96,24], index: 8, kind: input, shape index: {}]
  %s9 = inlined_call_operand.vmem [shape: f32[96,24], index: 9, kind: input, shape index: {}]
  %s10 = inlined_call_operand.hbm [shape: f32[2,32], index: 10, kind: output, shape index: {0}]
  %s11 = inlined_call_operand.vmem [shape: f32[10,32], index: 11, kind: output, shape index: {1}]
  %s12 = inlined_call_operand.hbm [shape: f32[2,32], index: 12, kind: output, shape index: {2}]
  %s13 = inlined_call_operand.vmem [shape: f32[10,32], index: 13, kind: output, shape index: {3}]
  %14 = xla_tuple %s10, %s11, %s12, %s13
  %s15 = sld [smem:[#allocation0]]
  $region82: #{transformer_backbone_forward.1} parent=0
    _
  %s17 = ssub.s32 1, %s15
  %s18 = scalar_select 0, %s17, %s15
  $region1: #{transformer_backbone_forward.1} parent=0
    #allocation2 [shape = 'u8[49152]{0}', space=vmem, size = 0xc000, scoped, tag = 'input window, operand 4, single buffered']
    #allocation3 [shape = 's32[1]{0}', space=sflag, size = 0x4, scoped, tag = 'scoped memory for transformer_backbone_forward.1']
    #allocation4 [shape = 's32[1]{0}', space=sflag, size = 0x4, scoped, tag = 'scoped memory for transformer_backbone_forward.1']
    #allocation5 [shape = 'u8[49152]{0}', space=vmem, size = 0xc000, scoped, tag = 'input window, operand 5, single buffered']
    #allocation6 [shape = 's32[1]{0}', space=sflag, size = 0x4, scoped, tag = 'scoped memory for transformer_backbone_forward.1']
    #allocation7 [shape = 'u8[1024]{0}', space=vmem, size = 0x400, scoped, tag = 'output window, operand 0, single buffered']
    #allocation8 [shape = 'u8[1024]{0}', space=vmem, size = 0x400, scoped, tag = 'output window, operand 2, single buffered']
    #allocation9 [shape = 's32[1]{0}', space=sflag, size = 0x4, scoped, tag = 'scoped memory for transformer_backbone_forward.1']
    %19 = vsyncpa [#allocation3], 0
    %20 = vsyncpa [#allocation6], 0
    %21 = vsyncpa [#allocation4], 0
    %22 = vsyncpa [#allocation9], 0
    // Predicated region
    $region2: #{transformer_backbone_forward.1} parent=1 // pred_check
      _
    $region3: #{transformer_backbone_forward.1} parent=1 // pred_check_branch
      %24 = sbr.rel (0) target = $region5
    $region4: #{transformer_backbone_forward.1} parent=1 // pred_region
      _
    $region5: #{transformer_backbone_forward.1} parent=1 // pred_fallthru
      _
    // Predicated region
    $region6: #{transformer_backbone_forward.1} parent=1 // pred_check
      _
    $region7: #{transformer_backbone_forward.1} parent=1 // pred_check_branch
      %26 = sbr.rel (0) target = $region9
    $region8: #{transformer_backbone_forward.1} parent=1 // pred_region
      _
    $region9: #{transformer_backbone_forward.1} parent=1 // pred_fallthru
      _
    // Predicated region
    $region10: #{transformer_backbone_forward.1} parent=1 // pred_check
      _
    $region11: #{transformer_backbone_forward.1} parent=1 // pred_check_branch
      %28 = sbr.rel (0) target = $region13
    $region12: #{transformer_backbone_forward.1} parent=1 // pred_region
      _
    $region13: #{transformer_backbone_forward.1} parent=1 // pred_fallthru
      _
    // Predicated region
    $region14: #{transformer_backbone_forward.1} parent=1 // pred_check
      _
    $region15: #{transformer_backbone_forward.1} parent=1 // pred_check_branch
      %30 = sbr.rel (0) target = $region17
    $region16: #{transformer_backbone_forward.1} parent=1 // pred_region
      _
    $region17: #{transformer_backbone_forward.1} parent=1 // pred_fallthru
      _
    // Predicated region
    $region18: #{transformer_backbone_forward.1} parent=1 // pred_check
      _
    $region19: #{transformer_backbone_forward.1} parent=1 // pred_check_branch
      %32 = sbr.rel (0) target = $region21
    $region20: #{transformer_backbone_forward.1} parent=1 // pred_region
      %34 = vsyncadd [#allocation3], 0
      %s35 = sshll.u32 %s4, 4
      %s36 = int_to_ptr.hbm [resolvable:$true] %s35
      %s37 = sshll.u32 [#allocation2], 4
      %s38 = int_to_ptr.vmem [resolvable:$true] %s37
      %43 = dma.hbm_to_vmem [thread:$0]  %s36, 1536, %s38, [#allocation3], 128, 128, 8
    $region21: #{transformer_backbone_forward.1} parent=1 // pred_fallthru
      _
    // Predicated region
    $region22: #{transformer_backbone_forward.1} parent=1 // pred_check
      _
    $region23: #{transformer_backbone_forward.1} parent=1 // pred_check_branch
      %45 = sbr.rel (0) target = $region25
    $region24: #{transformer_backbone_forward.1} parent=1 // pred_region
      %47 = vsyncadd [#allocation6], 0
      %s48 = sshll.u32 %s5, 4
      %s49 = int_to_ptr.hbm [resolvable:$true] %s48
      %s50 = sshll.u32 [#allocation5], 4
      %s51 = int_to_ptr.vmem [resolvable:$true] %s50
      %56 = dma.hbm_to_vmem [thread:$0]  %s49, 1536, %s51, [#allocation6], 128, 128, 8
    $region25: #{transformer_backbone_forward.1} parent=1 // pred_fallthru
      _
    // Predicated region
    $region26: #{transformer_backbone_forward.1} parent=1 // pred_check
      _
    $region27: #{transformer_backbone_forward.1} parent=1 // pred_check_branch
      %58 = sbr.rel (0) target = $region29
    $region28: #{transformer_backbone_forward.1} parent=1 // pred_region
      _
    $region29: #{transformer_backbone_forward.1} parent=1 // pred_fallthru
      _
    // Predicated region
    $region30: #{transformer_backbone_forward.1} parent=1 // pred_check
      _
    $region31: #{transformer_backbone_forward.1} parent=1 // pred_check_branch
      %60 = sbr.rel (0) target = $region33
    $region32: #{transformer_backbone_forward.1} parent=1 // pred_region
      _
    $region33: #{transformer_backbone_forward.1} parent=1 // pred_fallthru
      _
    // Predicated region
    $region34: #{transformer_backbone_forward.1} parent=1 // pred_check
      _
    $region35: #{transformer_backbone_forward.1} parent=1 // pred_check_branch
      %62 = sbr.rel (0) target = $region37
    $region36: #{transformer_backbone_forward.1} parent=1 // pred_region
      _
    $region37: #{transformer_backbone_forward.1} parent=1 // pred_fallthru
      _
    // Predicated region
    $region38: #{transformer_backbone_forward.1} parent=1 // pred_check
      _
    $region39: #{transformer_backbone_forward.1} parent=1 // pred_check_branch
      %64 = sbr.rel (0) target = $region41
    $region40: #{transformer_backbone_forward.1} parent=1 // pred_region
      _
    $region41: #{transformer_backbone_forward.1} parent=1 // pred_fallthru
      _
    // Predicated region
    $region42: #{transformer_backbone_forward.1} parent=1 // pred_check
      _
    $region43: #{transformer_backbone_forward.1} parent=1 // pred_check_branch
      %66 = sbr.rel (0) target = $region45
    $region44: #{transformer_backbone_forward.1} parent=1 // pred_region
      %68 = dma.done [#allocation3], 1536
    $region45: #{transformer_backbone_forward.1} parent=1 // pred_fallthru
      _
    // Predicated region
    $region46: #{transformer_backbone_forward.1} parent=1 // pred_check
      _
    $region47: #{transformer_backbone_forward.1} parent=1 // pred_check_branch
      %70 = sbr.rel (0) target = $region49
    $region48: #{transformer_backbone_forward.1} parent=1 // pred_region
      %72 = dma.done [#allocation6], 1536
    $region49: #{transformer_backbone_forward.1} parent=1 // pred_fallthru
      _
    %v73 = vld [vmem:[%s0] sm:$0x3]
    %v74 = vld [vmem:[%s1] sm:$0xff]
    %v75 = vld [vmem:[%s1 + $0x8] sm:$0x3]
    %v76 = vld [vmem:[%s2] sm:$0x3]
    %v77 = vld [vmem:[%s3] sm:$0xff]
    %v78 = vld [vmem:[%s3 + $0x8] sm:$0x3]
    %vm81 = vcmask 1041408
    %v82 = vrot.slane %v74, 6
    %v83 = vrot.slane %v75, 6
    %v84 = vsel %vm81, %v82, %v83
    %v88 = vrot.slane %v76, 4
    %vm92 = vcmask 1045504
    %v93 = vrot.slane %v77, 2
    %v94 = vrot.slane %v78, 2
    %v95 = vsel %vm92, %v93, %v94
    %v98 = vsel %vm81, %v73, %v82
    %vm99 = vcmask 1043456
    %v100 = vsel %vm99, %v84, %v88
    %v101 = vsel %vm92, %v100, %v93
    %v102 = vld [vmem:[%s6] sm:$0x1]
    %v103 = vmul.f32 %v98, %v98
    %v104 = vmul.f32 %v101, %v101
    %v105 = vmul.f32 %v95, %v95
    %vm106 = vcmask 261120
    %v107 = vsel %vm106, %v103, 0.0
    %108 = vadd.xlane.f32.xlu0 %v107
    %v109 = vpop.xlane.xlu0 %108
    %v110 = vsel %vm106, %v104, 0.0
    %111 = vadd.xlane.f32.xlu0 %v110
    %v112 = vpop.xlane.xlu0 %111
    %v113 = vsel %vm106, %v105, 0.0
    %114 = vadd.xlane.f32.xlu0 %v113
    %v115 = vpop.xlane.xlu0 %114
    %v116 = vrcp.pop 32.0
    %v117 = vmul.f32 32.0, %v116
    %v118 = vsub.f32 1.0, %v117
    %v119 = vmul.f32 %v116, %v118
    %v120 = vadd.f32 %v116, %v119
    %vm121 = vweird.f32 %v116
    %v122 = vsel %vm121, %v116, %v120
    %v123 = vmul.f32 %v109, %v122
    %v124 = vmul.f32 %v112, %v122
    %v125 = vmul.f32 %v115, %v122
    %v126 = vadd.f32 %v123, 1e-06
    %v127 = vadd.f32 %v124, 1e-06
    %v128 = vadd.f32 %v125, 1e-06
    %v129 = vrsqrt.pop %v126
    %v130 = vmul.f32 %v129, %v126
    %v131 = vmul.f32 %v130, %v129
    %v132 = vmul.f32 0.5, %v131
    %v133 = vsub.f32 1.5, %v132
    %v134 = vmul.f32 %v129, %v133
    %vm135 = vweird.f32 %v126
    %vm136 = vweird.f32 %v129
    %vm137 = vmor %vm135, %vm136
    %v138 = vsel %vm137, %v129, %v134
    %v139 = vrsqrt.pop %v127
    %v140 = vmul.f32 %v139, %v127
    %v141 = vmul.f32 %v140, %v139
    %v142 = vmul.f32 0.5, %v141
    %v143 = vsub.f32 1.5, %v142
    %v144 = vmul.f32 %v139, %v143
    %vm145 = vweird.f32 %v127
    %vm146 = vweird.f32 %v139
    %vm147 = vmor %vm145, %vm146
    %v148 = vsel %vm147, %v139, %v144
    %v149 = vrsqrt.pop %v128
    %v150 = vmul.f32 %v149, %v128
    %v151 = vmul.f32 %v150, %v149
    %v152 = vmul.f32 0.5, %v151
    %v153 = vsub.f32 1.5, %v152
    %v154 = vmul.f32 %v149, %v153
    %vm155 = vweird.f32 %v128
    %vm156 = vweird.f32 %v149
    %vm157 = vmor %vm155, %vm156
    %v158 = vsel %vm157, %v149, %v154
    %v159 = vmul.f32 %v98, %v138
    %v160 = vmul.f32 %v101, %v148
    %v161 = vmul.f32 %v95, %v158
    %v162 = vperm.slane %v102, 0
    %v163 = vmul.f32 %v159, %v162
    %v164 = vmul.f32 %v160, %v162
    %v165 = vmul.f32 %v161, %v162
    %v166 = vld [vmem:[#allocation2] sm:$0xff]
    %v167 = vld [vmem:[#allocation2 + $0x8] sm:$0xff]
    %v168 = vld [vmem:[#allocation2 + $0x10] sm:$0xff]
    %v169 = vld [vmem:[#allocation2 + $0x18] sm:$0xff]
    %v171 = vsel %vm106, %v163, 0
    %v174 = vsel %vm106, %v164, 0
    %v177 = vsel %vm106, %v165, 0
    %179 = vmatpush.msra.mxu0 0.0
    %180 = vmatpush.msra.mxu0 0.0
    %181 = vmatpush.msra.mxu0 0.0
    %182 = vmatpush.msra.mxu0 0.0
    %183 = vmatpush.msra.mxu0 0.0
    %184 = vmatpush.msra.mxu0 0.0
    %185 = vmatpush.msra.mxu0 0.0
    %186 = vmatpush.msra.mxu0 0.0
    %187 = vmatpush.msra.mxu0 0.0
    %188 = vmatpush.msra.mxu0 0.0
    %189 = vmatpush.msra.mxu0 0.0
    %190 = vmatpush.msra.mxu0 0.0
    %191 = vmatpush.msra.mxu0 %v169
    %192 = vmatpush.msra.mxu0 %v168
    %193 = vmatpush.msra.mxu0 %v167
    %194 = vmatpush.msra.mxu0 %v166
    %195 = vmatmul.f32.gmra.mxu0 %v171
    %v196 = vpop.f32.mrf.mxu0
    %v197 = vadd.f32 0.0, %v196
    %198 = vmatmul.f32.gmra.mxu0 %v174
    %v199 = vpop.f32.mrf.mxu0
    %v200 = vadd.f32 0.0, %v199
    %201 = vmatmul.f32.gmra.mxu0 %v177
    %v202 = vpop.f32.mrf.mxu0
    %v203 = vadd.f32 0.0, %v202
    %204 = vdwg.mxu0
    %208 = vrot.lane.b32.xlu0 %v197, 96
    %v209 = vpop.permute.xlu0 %208
    %210 = vrot.lane.b32.xlu0 %v200, 96
    %v211 = vpop.permute.xlu0 %210
    %212 = vrot.lane.b32.xlu0 %v203, 96
    %v213 = vpop.permute.xlu0 %212
    %vm214 = vcmask 64512
    %v215 = vsel %vm214, %v197, 0
    %v217 = vsel %vm214, %v200, 0
    %v219 = vsel %vm214, %v203, 0
    %v221 = vsel %vm214, %v209, 0
    %v223 = vsel %vm214, %v211, 0
    %v225 = vsel %vm214, %v213, 0
    %227 = vmatpush.xpose.msra.mxu0 0.0
    %228 = vmatpush.xpose.msra.mxu0 0.0
    %229 = vmatpush.xpose.msra.mxu0 0.0
    %230 = vmatpush.xpose.msra.mxu0 0.0
    %231 = vmatpush.xpose.msra.mxu0 0.0
    %232 = vmatpush.xpose.msra.mxu0 0.0
    %233 = vmatpush.xpose.msra.mxu0 0.0
    %234 = vmatpush.xpose.msra.mxu0 0.0
    %235 = vmatpush.xpose.msra.mxu0 0.0
    %236 = vmatpush.xpose.msra.mxu0 0.0
    %237 = vmatpush.xpose.msra.mxu0 0.0
    %238 = vmatpush.xpose.msra.mxu0 0.0
    %239 = vmatpush.xpose.msra.mxu0 0.0
    %240 = vmatpush.xpose.msra.mxu0 %v225
    %241 = vmatpush.xpose.msra.mxu0 %v223
    %242 = vmatpush.xpose.msra.mxu0 %v221
    %243 = vmatmul.f32.gmra.mxu0 %v215
    %v244 = vpop.f32.mrf.mxu0
    %v245 = vadd.f32 0.0, %v244
    %246 = vmatmul.f32.gmra.mxu0 %v217
    %v247 = vpop.f32.mrf.mxu0
    %v248 = vadd.f32 0.0, %v247
    %249 = vmatmul.f32.gmra.mxu0 %v219
    %v250 = vpop.f32.mrf.mxu0
    %v251 = vadd.f32 0.0, %v250
    %252 = vdwg.mxu0
    %253 = vrot.lane.b32.xlu0 %v197, 120
    %v254 = vpop.permute.xlu0 %253
    %255 = vrot.lane.b32.xlu0 %v200, 120
    %v256 = vpop.permute.xlu0 %255
    %257 = vrot.lane.b32.xlu0 %v203, 120
    %v258 = vpop.permute.xlu0 %257
    %259 = vrot.lane.b32.xlu0 %v197, 88
    %v260 = vpop.permute.xlu0 %259
    %261 = vrot.lane.b32.xlu0 %v200, 88
    %v262 = vpop.permute.xlu0 %261
    %263 = vrot.lane.b32.xlu0 %v203, 88
    %v264 = vpop.permute.xlu0 %263
    %v265 = vsel %vm214, %v254, 0
    %v267 = vsel %vm214, %v256, 0
    %v269 = vsel %vm214, %v258, 0
    %v271 = vsel %vm214, %v260, 0
    %v273 = vsel %vm214, %v262, 0
    %v275 = vsel %vm214, %v264, 0
    %277 = vmatpush.xpose.msra.mxu0 0.0
    %278 = vmatpush.xpose.msra.mxu0 0.0
    %279 = vmatpush.xpose.msra.mxu0 0.0
    %280 = vmatpush.xpose.msra.mxu0 0.0
    %281 = vmatpush.xpose.msra.mxu0 0.0
    %282 = vmatpush.xpose.msra.mxu0 0.0
    %283 = vmatpush.xpose.msra.mxu0 0.0
    %284 = vmatpush.xpose.msra.mxu0 0.0
    %285 = vmatpush.xpose.msra.mxu0 0.0
    %286 = vmatpush.xpose.msra.mxu0 0.0
    %287 = vmatpush.xpose.msra.mxu0 0.0
    %288 = vmatpush.xpose.msra.mxu0 0.0
    %289 = vmatpush.xpose.msra.mxu0 0.0
    %290 = vmatpush.xpose.msra.mxu0 %v275
    %291 = vmatpush.xpose.msra.mxu0 %v273
    %292 = vmatpush.xpose.msra.mxu0 %v271
    %293 = vmatmul.f32.gmra.mxu0 %v265
    %v294 = vpop.f32.mrf.mxu0
    %v295 = vadd.f32 0.0, %v294
    %296 = vmatmul.f32.gmra.mxu0 %v267
    %v297 = vpop.f32.mrf.mxu0
    %v298 = vadd.f32 0.0, %v297
    %299 = vmatmul.f32.gmra.mxu0 %v269
    %v300 = vpop.f32.mrf.mxu0
    %v301 = vadd.f32 0.0, %v300
    %302 = vdwg.mxu0
    %303 = vrot.lane.b32.xlu0 %v197, 112
    %v304 = vpop.permute.xlu0 %303
    %305 = vrot.lane.b32.xlu0 %v200, 112
    %v306 = vpop.permute.xlu0 %305
    %307 = vrot.lane.b32.xlu0 %v203, 112
    %v308 = vpop.permute.xlu0 %307
    %309 = vrot.lane.b32.xlu0 %v197, 80
    %v310 = vpop.permute.xlu0 %309
    %311 = vrot.lane.b32.xlu0 %v200, 80
    %v312 = vpop.permute.xlu0 %311
    %313 = vrot.lane.b32.xlu0 %v203, 80
    %v314 = vpop.permute.xlu0 %313
    %v315 = vsel %vm214, %v304, 0
    %v317 = vsel %vm214, %v306, 0
    %v319 = vsel %vm214, %v308, 0
    %v321 = vsel %vm214, %v310, 0
    %v323 = vsel %vm214, %v312, 0
    %v325 = vsel %vm214, %v314, 0
    %327 = vmatpush.xpose.msra.mxu0 0.0
    %328 = vmatpush.xpose.msra.mxu0 0.0
    %329 = vmatpush.xpose.msra.mxu0 0.0
    %330 = vmatpush.xpose.msra.mxu0 0.0
    %331 = vmatpush.xpose.msra.mxu0 0.0
    %332 = vmatpush.xpose.msra.mxu0 0.0
    %333 = vmatpush.xpose.msra.mxu0 0.0
    %334 = vmatpush.xpose.msra.mxu0 0.0
    %335 = vmatpush.xpose.msra.mxu0 0.0
    %336 = vmatpush.xpose.msra.mxu0 0.0
    %337 = vmatpush.xpose.msra.mxu0 0.0
    %338 = vmatpush.xpose.msra.mxu0 0.0
    %339 = vmatpush.xpose.msra.mxu0 0.0
    %340 = vmatpush.xpose.msra.mxu0 %v325
    %341 = vmatpush.xpose.msra.mxu0 %v323
    %342 = vmatpush.xpose.msra.mxu0 %v321
    %343 = vmatmul.f32.gmra.mxu0 %v315
    %v344 = vpop.f32.mrf.mxu0
    %v345 = vadd.f32 0.0, %v344
    %346 = vmatmul.f32.gmra.mxu0 %v317
    %v347 = vpop.f32.mrf.mxu0
    %v348 = vadd.f32 0.0, %v347
    %349 = vmatmul.f32.gmra.mxu0 %v319
    %v350 = vpop.f32.mrf.mxu0
    %v351 = vadd.f32 0.0, %v350
    %352 = vdwg.mxu0
    %353 = vrot.lane.b32.xlu0 %v197, 104
    %v354 = vpop.permute.xlu0 %353
    %355 = vrot.lane.b32.xlu0 %v200, 104
    %v356 = vpop.permute.xlu0 %355
    %357 = vrot.lane.b32.xlu0 %v203, 104
    %v358 = vpop.permute.xlu0 %357
    %359 = vrot.lane.b32.xlu0 %v197, 72
    %v360 = vpop.permute.xlu0 %359
    %361 = vrot.lane.b32.xlu0 %v200, 72
    %v362 = vpop.permute.xlu0 %361
    %363 = vrot.lane.b32.xlu0 %v203, 72
    %v364 = vpop.permute.xlu0 %363
    %v365 = vsel %vm214, %v354, 0
    %v367 = vsel %vm214, %v356, 0
    %v369 = vsel %vm214, %v358, 0
    %v371 = vsel %vm214, %v360, 0
    %v373 = vsel %vm214, %v362, 0
    %v375 = vsel %vm214, %v364, 0
    %377 = vmatpush.xpose.msra.mxu0 0.0
    %378 = vmatpush.xpose.msra.mxu0 0.0
    %379 = vmatpush.xpose.msra.mxu0 0.0
    %380 = vmatpush.xpose.msra.mxu0 0.0
    %381 = vmatpush.xpose.msra.mxu0 0.0
    %382 = vmatpush.xpose.msra.mxu0 0.0
    %383 = vmatpush.xpose.msra.mxu0 0.0
    %384 = vmatpush.xpose.msra.mxu0 0.0
    %385 = vmatpush.xpose.msra.mxu0 0.0
    %386 = vmatpush.xpose.msra.mxu0 0.0
    %387 = vmatpush.xpose.msra.mxu0 0.0
    %388 = vmatpush.xpose.msra.mxu0 0.0
    %389 = vmatpush.xpose.msra.mxu0 0.0
    %390 = vmatpush.xpose.msra.mxu0 %v375
    %391 = vmatpush.xpose.msra.mxu0 %v373
    %392 = vmatpush.xpose.msra.mxu0 %v371
    %393 = vmatmul.f32.gmra.mxu0 %v365
    %v394 = vpop.f32.mrf.mxu0
    %v395 = vadd.f32 0.0, %v394
    %396 = vmatmul.f32.gmra.mxu0 %v367
    %v397 = vpop.f32.mrf.mxu0
    %v398 = vadd.f32 0.0, %v397
    %399 = vmatmul.f32.gmra.mxu0 %v369
    %v400 = vpop.f32.mrf.mxu0
    %v401 = vadd.f32 0.0, %v400
    %402 = vdwg.mxu0
    %v403 = vld [vmem:[%s8] sm:$0xff]
    %v404 = vld [vmem:[%s8 + $0x8] sm:$0xff]
    %v405 = vld [vmem:[%s8 + $0x10] sm:$0xff]
    %v406 = vld [vmem:[%s8 + $0x18] sm:$0xff]
    %v407 = vld [vmem:[%s8 + $0x20] sm:$0xff]
    %v408 = vld [vmem:[%s8 + $0x28] sm:$0xff]
    %v409 = vld [vmem:[%s8 + $0x30] sm:$0xff]
    %v410 = vld [vmem:[%s8 + $0x38] sm:$0xff]
    %v411 = vld [vmem:[%s8 + $0x40] sm:$0xff]
    %v412 = vld [vmem:[%s8 + $0x48] sm:$0xff]
    %v413 = vld [vmem:[%s8 + $0x50] sm:$0xff]
    %v414 = vld [vmem:[%s8 + $0x58] sm:$0xff]
    %v415 = vadd.f32 %v245, %v403
    %v416 = vadd.f32 %v248, %v404
    %v417 = vadd.f32 %v251, %v405
    %v418 = vadd.f32 %v295, %v406
    %v419 = vadd.f32 %v298, %v407
    %v420 = vadd.f32 %v301, %v408
    %v421 = vadd.f32 %v345, %v409
    %v422 = vadd.f32 %v348, %v410
    %v423 = vadd.f32 %v351, %v411
    %v424 = vadd.f32 %v395, %v412
    %v425 = vadd.f32 %v398, %v413
    %v426 = vadd.f32 %v401, %v414
    %vm427 = vcmask 195584
    %v428 = vsel %vm427, %v415, -inf
    %429 = vmax.xlane.f32.xlu0 %v428
    %v430 = vpop.xlane.xlu0 %429
    %v431 = vsel %vm427, %v416, -inf
    %432 = vmax.xlane.f32.xlu0 %v431
    %v433 = vpop.xlane.xlu0 %432
    %v434 = vsel %vm427, %v417, -inf
    %435 = vmax.xlane.f32.xlu0 %v434
    %v436 = vpop.xlane.xlu0 %435
    %v437 = vsel %vm427, %v418, -inf
    %438 = vmax.xlane.f32.xlu0 %v437
    %v439 = vpop.xlane.xlu0 %438
    %v440 = vsel %vm427, %v419, -inf
    %441 = vmax.xlane.f32.xlu0 %v440
    %v442 = vpop.xlane.xlu0 %441
    %v443 = vsel %vm427, %v420, -inf
    %444 = vmax.xlane.f32.xlu0 %v443
    %v445 = vpop.xlane.xlu0 %444
    %v446 = vsel %vm427, %v421, -inf
    %447 = vmax.xlane.f32.xlu0 %v446
    %v448 = vpop.xlane.xlu0 %447
    %v449 = vsel %vm427, %v422, -inf
    %450 = vmax.xlane.f32.xlu0 %v449
    %v451 = vpop.xlane.xlu0 %450
    %v452 = vsel %vm427, %v423, -inf
    %453 = vmax.xlane.f32.xlu0 %v452
    %v454 = vpop.xlane.xlu0 %453
    %v455 = vsel %vm427, %v424, -inf
    %456 = vmax.xlane.f32.xlu0 %v455
    %v457 = vpop.xlane.xlu0 %456
    %v458 = vsel %vm427, %v425, -inf
    %459 = vmax.xlane.f32.xlu0 %v458
    %v460 = vpop.xlane.xlu0 %459
    %v461 = vsel %vm427, %v426, -inf
    %462 = vmax.xlane.f32.xlu0 %v461
    %v463 = vpop.xlane.xlu0 %462
    %v464 = vsub.f32 %v415, %v430
    %v465 = vsub.f32 %v416, %v433
    %v466 = vsub.f32 %v417, %v436
    %v467 = vsub.f32 %v418, %v439
    %v468 = vsub.f32 %v419, %v442
    %v469 = vsub.f32 %v420, %v445
    %v470 = vsub.f32 %v421, %v448
    %v471 = vsub.f32 %v422, %v451
    %v472 = vsub.f32 %v423, %v454
    %v473 = vsub.f32 %v424, %v457
    %v474 = vsub.f32 %v425, %v460
    %v475 = vsub.f32 %v426, %v463
    %v476 = vmul.f32 %v464, 1.442695
    %v477 = vpow.pop %v476
    %v478 = vmul.f32 %v465, 1.442695
    %v479 = vpow.pop %v478
    %v480 = vmul.f32 %v466, 1.442695
    %v481 = vpow.pop %v480
    %v482 = vmul.f32 %v467, 1.442695
    %v483 = vpow.pop %v482
    %v484 = vmul.f32 %v468, 1.442695
    %v485 = vpow.pop %v484
    %v486 = vmul.f32 %v469, 1.442695
    %v487 = vpow.pop %v486
    %v488 = vmul.f32 %v470, 1.442695
    %v489 = vpow.pop %v488
    %v490 = vmul.f32 %v471, 1.442695
    %v491 = vpow.pop %v490
    %v492 = vmul.f32 %v472, 1.442695
    %v493 = vpow.pop %v492
    %v494 = vmul.f32 %v473, 1.442695
    %v495 = vpow.pop %v494
    %v496 = vmul.f32 %v474, 1.442695
    %v497 = vpow.pop %v496
    %v498 = vmul.f32 %v475, 1.442695
    %v499 = vpow.pop %v498
    %v500 = vsel %vm427, %v477, 0.0
    %501 = vadd.xlane.f32.xlu0 %v500
    %v502 = vpop.xlane.xlu0 %501
    %v503 = vsel %vm427, %v479, 0.0
    %504 = vadd.xlane.f32.xlu0 %v503
    %v505 = vpop.xlane.xlu0 %504
    %v506 = vsel %vm427, %v481, 0.0
    %507 = vadd.xlane.f32.xlu0 %v506
    %v508 = vpop.xlane.xlu0 %507
    %v509 = vsel %vm427, %v483, 0.0
    %510 = vadd.xlane.f32.xlu0 %v509
    %v511 = vpop.xlane.xlu0 %510
    %v512 = vsel %vm427, %v485, 0.0
    %513 = vadd.xlane.f32.xlu0 %v512
    %v514 = vpop.xlane.xlu0 %513
    %v515 = vsel %vm427, %v487, 0.0
    %516 = vadd.xlane.f32.xlu0 %v515
    %v517 = vpop.xlane.xlu0 %516
    %v518 = vsel %vm427, %v489, 0.0
    %519 = vadd.xlane.f32.xlu0 %v518
    %v520 = vpop.xlane.xlu0 %519
    %v521 = vsel %vm427, %v491, 0.0
    %522 = vadd.xlane.f32.xlu0 %v521
    %v523 = vpop.xlane.xlu0 %522
    %v524 = vsel %vm427, %v493, 0.0
    %525 = vadd.xlane.f32.xlu0 %v524
    %v526 = vpop.xlane.xlu0 %525
    %v527 = vsel %vm427, %v495, 0.0
    %528 = vadd.xlane.f32.xlu0 %v527
    %v529 = vpop.xlane.xlu0 %528
    %v530 = vsel %vm427, %v497, 0.0
    %531 = vadd.xlane.f32.xlu0 %v530
    %v532 = vpop.xlane.xlu0 %531
    %v533 = vsel %vm427, %v499, 0.0
    %534 = vadd.xlane.f32.xlu0 %v533
    %v535 = vpop.xlane.xlu0 %534
    %v536 = vrcp.pop %v502
    %v537 = vrcp.pop %v505
    %v538 = vrcp.pop %v508
    %v539 = vrcp.pop %v511
    %v540 = vrcp.pop %v514
    %v541 = vrcp.pop %v517
    %v542 = vrcp.pop %v520
    %v543 = vrcp.pop %v523
    %v544 = vrcp.pop %v526
    %v545 = vrcp.pop %v529
    %v546 = vrcp.pop %v532
    %v547 = vrcp.pop %v535
    %v548 = vmul.f32 %v477, %v536
    %v549 = vmul.f32 %v479, %v537
    %v550 = vmul.f32 %v481, %v538
    %v551 = vmul.f32 %v483, %v539
    %v552 = vmul.f32 %v485, %v540
    %v553 = vmul.f32 %v487, %v541
    %v554 = vmul.f32 %v489, %v542
    %v555 = vmul.f32 %v491, %v543
    %v556 = vmul.f32 %v493, %v544
    %v557 = vmul.f32 %v495, %v545
    %v558 = vmul.f32 %v497, %v546
    %v559 = vmul.f32 %v499, %v547
    %560 = vrot.lane.b32.xlu0 %v197, 64
    %v561 = vpop.permute.xlu0 %560
    %562 = vrot.lane.b32.xlu0 %v200, 64
    %v563 = vpop.permute.xlu0 %562
    %564 = vrot.lane.b32.xlu0 %v203, 64
    %v565 = vpop.permute.xlu0 %564
    %v570 = vsel %vm427, %v548, 0
    %v573 = vsel %vm427, %v549, 0
    %v576 = vsel %vm427, %v550, 0
    %578 = vmatpush.msra.mxu0 0.0
    %579 = vmatpush.msra.mxu0 0.0
    %580 = vmatpush.msra.mxu0 0.0
    %581 = vmatpush.msra.mxu0 0.0
    %582 = vmatpush.msra.mxu0 0.0
    %583 = vmatpush.msra.mxu0 0.0
    %584 = vmatpush.msra.mxu0 0.0
    %585 = vmatpush.msra.mxu0 0.0
    %586 = vmatpush.msra.mxu0 0.0
    %587 = vmatpush.msra.mxu0 0.0
    %588 = vmatpush.msra.mxu0 0.0
    %589 = vmatpush.msra.mxu0 0.0
    %590 = vmatpush.msra.mxu0 0.0
    %591 = vmatpush.msra.mxu0 %v565
    %592 = vmatpush.msra.mxu0 %v563
    %593 = vmatpush.msra.mxu0 %v561
    %594 = vmatmul.f32.gmra.mxu0 %v570
    %v595 = vpop.f32.mrf.mxu0
    %v596 = vadd.f32 0.0, %v595
    %597 = vmatmul.f32.gmra.mxu0 %v573
    %v598 = vpop.f32.mrf.mxu0
    %v599 = vadd.f32 0.0, %v598
    %600 = vmatmul.f32.gmra.mxu0 %v576
    %v601 = vpop.f32.mrf.mxu0
    %v602 = vadd.f32 0.0, %v601
    %603 = vdwg.mxu0
    %604 = vrot.lane.b32.xlu0 %v197, 56
    %v605 = vpop.permute.xlu0 %604
    %606 = vrot.lane.b32.xlu0 %v200, 56
    %v607 = vpop.permute.xlu0 %606
    %608 = vrot.lane.b32.xlu0 %v203, 56
    %v609 = vpop.permute.xlu0 %608
    %v614 = vsel %vm427, %v551, 0
    %v617 = vsel %vm427, %v552, 0
    %v620 = vsel %vm427, %v553, 0
    %622 = vmatpush.msra.mxu0 0.0
    %623 = vmatpush.msra.mxu0 0.0
    %624 = vmatpush.msra.mxu0 0.0
    %625 = vmatpush.msra.mxu0 0.0
    %626 = vmatpush.msra.mxu0 0.0
    %627 = vmatpush.msra.mxu0 0.0
    %628 = vmatpush.msra.mxu0 0.0
    %629 = vmatpush.msra.mxu0 0.0
    %630 = vmatpush.msra.mxu0 0.0
    %631 = vmatpush.msra.mxu0 0.0
    %632 = vmatpush.msra.mxu0 0.0
    %633 = vmatpush.msra.mxu0 0.0
    %634 = vmatpush.msra.mxu0 0.0
    %635 = vmatpush.msra.mxu0 %v609
    %636 = vmatpush.msra.mxu0 %v607
    %637 = vmatpush.msra.mxu0 %v605
    %638 = vmatmul.f32.gmra.mxu0 %v614
    %v639 = vpop.f32.mrf.mxu0
    %v640 = vadd.f32 0.0, %v639
    %641 = vmatmul.f32.gmra.mxu0 %v617
    %v642 = vpop.f32.mrf.mxu0
    %v643 = vadd.f32 0.0, %v642
    %644 = vmatmul.f32.gmra.mxu0 %v620
    %v645 = vpop.f32.mrf.mxu0
    %v646 = vadd.f32 0.0, %v645
    %647 = vdwg.mxu0
    %648 = vrot.lane.b32.xlu0 %v197, 48
    %v649 = vpop.permute.xlu0 %648
    %650 = vrot.lane.b32.xlu0 %v200, 48
    %v651 = vpop.permute.xlu0 %650
    %652 = vrot.lane.b32.xlu0 %v203, 48
    %v653 = vpop.permute.xlu0 %652
    %v658 = vsel %vm427, %v554, 0
    %v661 = vsel %vm427, %v555, 0
    %v664 = vsel %vm427, %v556, 0
    %666 = vmatpush.msra.mxu0 0.0
    %667 = vmatpush.msra.mxu0 0.0
    %668 = vmatpush.msra.mxu0 0.0
    %669 = vmatpush.msra.mxu0 0.0
    %670 = vmatpush.msra.mxu0 0.0
    %671 = vmatpush.msra.mxu0 0.0
    %672 = vmatpush.msra.mxu0 0.0
    %673 = vmatpush.msra.mxu0 0.0
    %674 = vmatpush.msra.mxu0 0.0
    %675 = vmatpush.msra.mxu0 0.0
    %676 = vmatpush.msra.mxu0 0.0
    %677 = vmatpush.msra.mxu0 0.0
    %678 = vmatpush.msra.mxu0 0.0
    %679 = vmatpush.msra.mxu0 %v653
    %680 = vmatpush.msra.mxu0 %v651
    %681 = vmatpush.msra.mxu0 %v649
    %682 = vmatmul.f32.gmra.mxu0 %v658
    %v683 = vpop.f32.mrf.mxu0
    %v684 = vadd.f32 0.0, %v683
    %685 = vmatmul.f32.gmra.mxu0 %v661
    %v686 = vpop.f32.mrf.mxu0
    %v687 = vadd.f32 0.0, %v686
    %688 = vmatmul.f32.gmra.mxu0 %v664
    %v689 = vpop.f32.mrf.mxu0
    %v690 = vadd.f32 0.0, %v689
    %691 = vdwg.mxu0
    %692 = vrot.lane.b32.xlu0 %v197, 40
    %v693 = vpop.permute.xlu0 %692
    %694 = vrot.lane.b32.xlu0 %v200, 40
    %v695 = vpop.permute.xlu0 %694
    %696 = vrot.lane.b32.xlu0 %v203, 40
    %v697 = vpop.permute.xlu0 %696
    %v702 = vsel %vm427, %v557, 0
    %v705 = vsel %vm427, %v558, 0
    %v708 = vsel %vm427, %v559, 0
    %710 = vmatpush.msra.mxu0 0.0
    %711 = vmatpush.msra.mxu0 0.0
    %712 = vmatpush.msra.mxu0 0.0
    %713 = vmatpush.msra.mxu0 0.0
    %714 = vmatpush.msra.mxu0 0.0
    %715 = vmatpush.msra.mxu0 0.0
    %716 = vmatpush.msra.mxu0 0.0
    %717 = vmatpush.msra.mxu0 0.0
    %718 = vmatpush.msra.mxu0 0.0
    %719 = vmatpush.msra.mxu0 0.0
    %720 = vmatpush.msra.mxu0 0.0
    %721 = vmatpush.msra.mxu0 0.0
    %722 = vmatpush.msra.mxu0 0.0
    %723 = vmatpush.msra.mxu0 %v697
    %724 = vmatpush.msra.mxu0 %v695
    %725 = vmatpush.msra.mxu0 %v693
    %726 = vmatmul.f32.gmra.mxu0 %v702
    %v727 = vpop.f32.mrf.mxu0
    %v728 = vadd.f32 0.0, %v727
    %729 = vmatmul.f32.gmra.mxu0 %v705
    %v730 = vpop.f32.mrf.mxu0
    %v731 = vadd.f32 0.0, %v730
    %732 = vmatmul.f32.gmra.mxu0 %v708
    %v733 = vpop.f32.mrf.mxu0
    %v734 = vadd.f32 0.0, %v733
    %735 = vdwg.mxu0
    %739 = vrot.lane.b32.xlu0 %v640, 8
    %v740 = vpop.permute.xlu0 %739
    %741 = vrot.lane.b32.xlu0 %v643, 8
    %v742 = vpop.permute.xlu0 %741
    %743 = vrot.lane.b32.xlu0 %v646, 8
    %v744 = vpop.permute.xlu0 %743
    %751 = vrot.lane.b32.xlu0 %v684, 16
    %v752 = vpop.permute.xlu0 %751
    %753 = vrot.lane.b32.xlu0 %v687, 16
    %v754 = vpop.permute.xlu0 %753
    %755 = vrot.lane.b32.xlu0 %v690, 16
    %v756 = vpop.permute.xlu0 %755
    %763 = vrot.lane.b32.xlu0 %v728, 24
    %v764 = vpop.permute.xlu0 %763
    %765 = vrot.lane.b32.xlu0 %v731, 24
    %v766 = vpop.permute.xlu0 %765
    %767 = vrot.lane.b32.xlu0 %v734, 24
    %v768 = vpop.permute.xlu0 %767
    %v772 = vsel %vm214, %v596, %v740
    %v773 = vsel %vm214, %v599, %v742
    %v774 = vsel %vm214, %v602, %v744
    %vm775 = vcmask 130048
    %v776 = vsel %vm775, %v772, %v752
    %v777 = vsel %vm775, %v773, %v754
    %v778 = vsel %vm775, %v774, %v756
    %v779 = vsel %vm427, %v776, %v764
    %v780 = vsel %vm427, %v777, %v766
    %v781 = vsel %vm427, %v778, %v768
    %v782 = vld [vmem:[#allocation5] sm:$0xff]
    %v783 = vld [vmem:[#allocation5 + $0x8] sm:$0xff]
    %v784 = vld [vmem:[#allocation5 + $0x10] sm:$0xff]
    %v785 = vld [vmem:[#allocation5 + $0x18] sm:$0xff]
    %v787 = vsel %vm106, %v779, 0
    %v790 = vsel %vm106, %v780, 0
    %v793 = vsel %vm106, %v781, 0
    %795 = vmatpush.msra.mxu0 0.0
    %796 = vmatpush.msra.mxu0 0.0
    %797 = vmatpush.msra.mxu0 0.0
    %798 = vmatpush.msra.mxu0 0.0
    %799 = vmatpush.msra.mxu0 0.0
    %800 = vmatpush.msra.mxu0 0.0
    %801 = vmatpush.msra.mxu0 0.0
    %802 = vmatpush.msra.mxu0 0.0
    %803 = vmatpush.msra.mxu0 0.0
    %804 = vmatpush.msra.mxu0 0.0
    %805 = vmatpush.msra.mxu0 0.0
    %806 = vmatpush.msra.mxu0 0.0
    %807 = vmatpush.msra.mxu0 %v785
    %808 = vmatpush.msra.mxu0 %v784
    %809 = vmatpush.msra.mxu0 %v783
    %810 = vmatpush.msra.mxu0 %v782
    %811 = vmatmul.f32.gmra.mxu0 %v787
    %v812 = vpop.f32.mrf.mxu0
    %v813 = vadd.f32 0.0, %v812
    %814 = vmatmul.f32.gmra.mxu0 %v790
    %v815 = vpop.f32.mrf.mxu0
    %v816 = vadd.f32 0.0, %v815
    %817 = vmatmul.f32.gmra.mxu0 %v793
    %v818 = vpop.f32.mrf.mxu0
    %v819 = vadd.f32 0.0, %v818
    %820 = vdwg.mxu0
    %v821 = vadd.f32 %v98, %v813
    %v822 = vadd.f32 %v101, %v816
    %v823 = vadd.f32 %v95, %v819
    %v824 = vld [vmem:[%s6 + $0x1] sm:$0x1]
    %v825 = vmul.f32 %v821, %v821
    %v826 = vmul.f32 %v822, %v822
    %v827 = vmul.f32 %v823, %v823
    %v828 = vsel %vm106, %v825, 0.0
    %829 = vadd.xlane.f32.xlu0 %v828
    %v830 = vpop.xlane.xlu0 %829
    %v831 = vsel %vm106, %v826, 0.0
    %832 = vadd.xlane.f32.xlu0 %v831
    %v833 = vpop.xlane.xlu0 %832
    %v834 = vsel %vm106, %v827, 0.0
    %835 = vadd.xlane.f32.xlu0 %v834
    %v836 = vpop.xlane.xlu0 %835
    %v837 = vmul.f32 %v830, %v122
    %v838 = vmul.f32 %v833, %v122
    %v839 = vmul.f32 %v836, %v122
    %v840 = vadd.f32 %v837, 1e-06
    %v841 = vadd.f32 %v838, 1e-06
    %v842 = vadd.f32 %v839, 1e-06
    %v843 = vrsqrt.pop %v840
    %v844 = vmul.f32 %v843, %v840
    %v845 = vmul.f32 %v844, %v843
    %v846 = vmul.f32 0.5, %v845
    %v847 = vsub.f32 1.5, %v846
    %v848 = vmul.f32 %v843, %v847
    %vm849 = vweird.f32 %v840
    %vm850 = vweird.f32 %v843
    %vm851 = vmor %vm849, %vm850
    %v852 = vsel %vm851, %v843, %v848
    %v853 = vrsqrt.pop %v841
    %v854 = vmul.f32 %v853, %v841
    %v855 = vmul.f32 %v854, %v853
    %v856 = vmul.f32 0.5, %v855
    %v857 = vsub.f32 1.5, %v856
    %v858 = vmul.f32 %v853, %v857
    %vm859 = vweird.f32 %v841
    %vm860 = vweird.f32 %v853
    %vm861 = vmor %vm859, %vm860
    %v862 = vsel %vm861, %v853, %v858
    %v863 = vrsqrt.pop %v842
    %v864 = vmul.f32 %v863, %v842
    %v865 = vmul.f32 %v864, %v863
    %v866 = vmul.f32 0.5, %v865
    %v867 = vsub.f32 1.5, %v866
    %v868 = vmul.f32 %v863, %v867
    %vm869 = vweird.f32 %v842
    %vm870 = vweird.f32 %v863
    %vm871 = vmor %vm869, %vm870
    %v872 = vsel %vm871, %v863, %v868
    %v873 = vmul.f32 %v821, %v852
    %v874 = vmul.f32 %v822, %v862
    %v875 = vmul.f32 %v823, %v872
    %v876 = vperm.slane %v824, 0
    %v877 = vmul.f32 %v873, %v876
    %v878 = vmul.f32 %v874, %v876
    %v879 = vmul.f32 %v875, %v876
    %v880 = vld [vmem:[%s7] sm:$0xff]
    %v881 = vld [vmem:[%s7 + $0x8] sm:$0xff]
    %v882 = vld [vmem:[%s7 + $0x10] sm:$0xff]
    %v883 = vld [vmem:[%s7 + $0x18] sm:$0xff]
    %v885 = vsel %vm106, %v877, 0
    %v888 = vsel %vm106, %v878, 0
    %v891 = vsel %vm106, %v879, 0
    %893 = vmatpush.msra.mxu0 0.0
    %894 = vmatpush.msra.mxu0 0.0
    %895 = vmatpush.msra.mxu0 0.0
    %896 = vmatpush.msra.mxu0 0.0
    %897 = vmatpush.msra.mxu0 0.0
    %898 = vmatpush.msra.mxu0 0.0
    %899 = vmatpush.msra.mxu0 0.0
    %900 = vmatpush.msra.mxu0 0.0
    %901 = vmatpush.msra.mxu0 0.0
    %902 = vmatpush.msra.mxu0 0.0
    %903 = vmatpush.msra.mxu0 0.0
    %904 = vmatpush.msra.mxu0 0.0
    %905 = vmatpush.msra.mxu0 %v883
    %906 = vmatpush.msra.mxu0 %v882
    %907 = vmatpush.msra.mxu0 %v881
    %908 = vmatpush.msra.mxu0 %v880
    %909 = vmatmul.f32.gmra.mxu0 %v885
    %v910 = vpop.f32.mrf.mxu0
    %v911 = vadd.f32 0.0, %v910
    %912 = vmatmul.f32.gmra.mxu0 %v888
    %v913 = vpop.f32.mrf.mxu0
    %v914 = vadd.f32 0.0, %v913
    %915 = vmatmul.f32.gmra.mxu0 %v891
    %v916 = vpop.f32.mrf.mxu0
    %v917 = vadd.f32 0.0, %v916
    %918 = vdwg.mxu0
    %v919 = vmax.f32 %v911, 0.0
    %v920 = vmax.f32 %v914, 0.0
    %v921 = vmax.f32 %v917, 0.0
    %s922 = scalar_lea.vmem %s7, 32
    %v923 = vld [vmem:[%s922] sm:$0xff]
    %v924 = vld [vmem:[%s922 + $0x8] sm:$0xff]
    %v925 = vld [vmem:[%s922 + $0x10] sm:$0xff]
    %v926 = vld [vmem:[%s922 + $0x18] sm:$0xff]
    %vm927 = vcmask 523264
    %v929 = vsel %vm927, %v919, 0
    %v932 = vsel %vm927, %v920, 0
    %v935 = vsel %vm927, %v921, 0
    %v938 = vsel %vm927, %v923, 0
    %v941 = vsel %vm927, %v924, 0
    %v944 = vsel %vm927, %v925, 0
    %v947 = vsel %vm927, %v926, 0
    %949 = vmatpush.xpose.msra.mxu0 0.0
    %950 = vmatpush.xpose.msra.mxu0 0.0
    %951 = vmatpush.xpose.msra.mxu0 0.0
    %952 = vmatpush.xpose.msra.mxu0 0.0
    %953 = vmatpush.xpose.msra.mxu0 0.0
    %954 = vmatpush.xpose.msra.mxu0 0.0
    %955 = vmatpush.xpose.msra.mxu0 0.0
    %956 = vmatpush.xpose.msra.mxu0 0.0
    %957 = vmatpush.xpose.msra.mxu0 0.0
    %958 = vmatpush.xpose.msra.mxu0 0.0
    %959 = vmatpush.xpose.msra.mxu0 0.0
    %960 = vmatpush.xpose.msra.mxu0 0.0
    %961 = vmatpush.xpose.msra.mxu0 %v947
    %962 = vmatpush.xpose.msra.mxu0 %v944
    %963 = vmatpush.xpose.msra.mxu0 %v941
    %964 = vmatpush.xpose.msra.mxu0 %v938
    %965 = vmatmul.f32.gmra.mxu0 %v929
    %v966 = vpop.f32.mrf.mxu0
    %v967 = vadd.f32 0.0, %v966
    %968 = vmatmul.f32.gmra.mxu0 %v932
    %v969 = vpop.f32.mrf.mxu0
    %v970 = vadd.f32 0.0, %v969
    %971 = vmatmul.f32.gmra.mxu0 %v935
    %v972 = vpop.f32.mrf.mxu0
    %v973 = vadd.f32 0.0, %v972
    %974 = vdwg.mxu0
    %v975 = vadd.f32 %v821, %v967
    %v976 = vadd.f32 %v822, %v970
    %v977 = vadd.f32 %v823, %v973
    %v978 = vld [vmem:[%s6 + $0x2] sm:$0x1]
    %v979 = vmul.f32 %v975, %v975
    %v980 = vmul.f32 %v976, %v976
    %v981 = vmul.f32 %v977, %v977
    %v982 = vsel %vm106, %v979, 0.0
    %983 = vadd.xlane.f32.xlu0 %v982
    %v984 = vpop.xlane.xlu0 %983
    %v985 = vsel %vm106, %v980, 0.0
    %986 = vadd.xlane.f32.xlu0 %v985
    %v987 = vpop.xlane.xlu0 %986
    %v988 = vsel %vm106, %v981, 0.0
    %989 = vadd.xlane.f32.xlu0 %v988
    %v990 = vpop.xlane.xlu0 %989
    %v991 = vmul.f32 %v984, %v122
    %v992 = vmul.f32 %v987, %v122
    %v993 = vmul.f32 %v990, %v122
    %v994 = vadd.f32 %v991, 1e-06
    %v995 = vadd.f32 %v992, 1e-06
    %v996 = vadd.f32 %v993, 1e-06
    %v997 = vrsqrt.pop %v994
    %v998 = vmul.f32 %v997, %v994
    %v999 = vmul.f32 %v998, %v997
    %v1000 = vmul.f32 0.5, %v999
    %v1001 = vsub.f32 1.5, %v1000
    %v1002 = vmul.f32 %v997, %v1001
    %vm1003 = vweird.f32 %v994
    %vm1004 = vweird.f32 %v997
    %vm1005 = vmor %vm1003, %vm1004
    %v1006 = vsel %vm1005, %v997, %v1002
    %v1007 = vrsqrt.pop %v995
    %v1008 = vmul.f32 %v1007, %v995
    %v1009 = vmul.f32 %v1008, %v1007
    %v1010 = vmul.f32 0.5, %v1009
    %v1011 = vsub.f32 1.5, %v1010
    %v1012 = vmul.f32 %v1007, %v1011
    %vm1013 = vweird.f32 %v995
    %vm1014 = vweird.f32 %v1007
    %vm1015 = vmor %vm1013, %vm1014
    %v1016 = vsel %vm1015, %v1007, %v1012
    %v1017 = vrsqrt.pop %v996
    %v1018 = vmul.f32 %v1017, %v996
    %v1019 = vmul.f32 %v1018, %v1017
    %v1020 = vmul.f32 0.5, %v1019
    %v1021 = vsub.f32 1.5, %v1020
    %v1022 = vmul.f32 %v1017, %v1021
    %vm1023 = vweird.f32 %v996
    %vm1024 = vweird.f32 %v1017
    %vm1025 = vmor %vm1023, %vm1024
    %v1026 = vsel %vm1025, %v1017, %v1022
    %v1027 = vmul.f32 %v975, %v1006
    %v1028 = vmul.f32 %v976, %v1016
    %v1029 = vmul.f32 %v977, %v1026
    %v1030 = vperm.slane %v978, 0
    %v1031 = vmul.f32 %v1027, %v1030
    %v1032 = vmul.f32 %v1028, %v1030
    %v1033 = vmul.f32 %v1029, %v1030
    %s1034 = scalar_lea.vmem [#allocation2], 32
    %v1035 = vld [vmem:[%s1034] sm:$0xff]
    %v1036 = vld [vmem:[%s1034 + $0x8] sm:$0xff]
    %v1037 = vld [vmem:[%s1034 + $0x10] sm:$0xff]
    %v1038 = vld [vmem:[%s1034 + $0x18] sm:$0xff]
    %v1040 = vsel %vm106, %v1031, 0
    %v1043 = vsel %vm106, %v1032, 0
    %v1046 = vsel %vm106, %v1033, 0
    %1048 = vmatpush.msra.mxu0 0.0
    %1049 = vmatpush.msra.mxu0 0.0
    %1050 = vmatpush.msra.mxu0 0.0
    %1051 = vmatpush.msra.mxu0 0.0
    %1052 = vmatpush.msra.mxu0 0.0
    %1053 = vmatpush.msra.mxu0 0.0
    %1054 = vmatpush.msra.mxu0 0.0
    %1055 = vmatpush.msra.mxu0 0.0
    %1056 = vmatpush.msra.mxu0 0.0
    %1057 = vmatpush.msra.mxu0 0.0
    %1058 = vmatpush.msra.mxu0 0.0
    %1059 = vmatpush.msra.mxu0 0.0
    %1060 = vmatpush.msra.mxu0 %v1038
    %1061 = vmatpush.msra.mxu0 %v1037
    %1062 = vmatpush.msra.mxu0 %v1036
    %1063 = vmatpush.msra.mxu0 %v1035
    %1064 = vmatmul.f32.gmra.mxu0 %v1040
    %v1065 = vpop.f32.mrf.mxu0
    %v1066 = vadd.f32 0.0, %v1065
    %1067 = vmatmul.f32.gmra.mxu0 %v1043
    %v1068 = vpop.f32.mrf.mxu0
    %v1069 = vadd.f32 0.0, %v1068
    %1070 = vmatmul.f32.gmra.mxu0 %v1046
    %v1071 = vpop.f32.mrf.mxu0
    %v1072 = vadd.f32 0.0, %v1071
    %1073 = vdwg.mxu0
    %1077 = vrot.lane.b32.xlu0 %v1066, 96
    %v1078 = vpop.permute.xlu0 %1077
    %1079 = vrot.lane.b32.xlu0 %v1069, 96
    %v1080 = vpop.permute.xlu0 %1079
    %1081 = vrot.lane.b32.xlu0 %v1072, 96
    %v1082 = vpop.permute.xlu0 %1081
    %v1083 = vsel %vm214, %v1066, 0
    %v1085 = vsel %vm214, %v1069, 0
    %v1087 = vsel %vm214, %v1072, 0
    %v1089 = vsel %vm214, %v1078, 0
    %v1091 = vsel %vm214, %v1080, 0
    %v1093 = vsel %vm214, %v1082, 0
    %1095 = vmatpush.xpose.msra.mxu0 0.0
    %1096 = vmatpush.xpose.msra.mxu0 0.0
    %1097 = vmatpush.xpose.msra.mxu0 0.0
    %1098 = vmatpush.xpose.msra.mxu0 0.0
    %1099 = vmatpush.xpose.msra.mxu0 0.0
    %1100 = vmatpush.xpose.msra.mxu0 0.0
    %1101 = vmatpush.xpose.msra.mxu0 0.0
    %1102 = vmatpush.xpose.msra.mxu0 0.0
    %1103 = vmatpush.xpose.msra.mxu0 0.0
    %1104 = vmatpush.xpose.msra.mxu0 0.0
    %1105 = vmatpush.xpose.msra.mxu0 0.0
    %1106 = vmatpush.xpose.msra.mxu0 0.0
    %1107 = vmatpush.xpose.msra.mxu0 0.0
    %1108 = vmatpush.xpose.msra.mxu0 %v1093
    %1109 = vmatpush.xpose.msra.mxu0 %v1091
    %1110 = vmatpush.xpose.msra.mxu0 %v1089
    %1111 = vmatmul.f32.gmra.mxu0 %v1083
    %v1112 = vpop.f32.mrf.mxu0
    %v1113 = vadd.f32 0.0, %v1112
    %1114 = vmatmul.f32.gmra.mxu0 %v1085
    %v1115 = vpop.f32.mrf.mxu0
    %v1116 = vadd.f32 0.0, %v1115
    %1117 = vmatmul.f32.gmra.mxu0 %v1087
    %v1118 = vpop.f32.mrf.mxu0
    %v1119 = vadd.f32 0.0, %v1118
    %1120 = vdwg.mxu0
    %1121 = vrot.lane.b32.xlu0 %v1066, 120
    %v1122 = vpop.permute.xlu0 %1121
    %1123 = vrot.lane.b32.xlu0 %v1069, 120
    %v1124 = vpop.permute.xlu0 %1123
    %1125 = vrot.lane.b32.xlu0 %v1072, 120
    %v1126 = vpop.permute.xlu0 %1125
    %1127 = vrot.lane.b32.xlu0 %v1066, 88
    %v1128 = vpop.permute.xlu0 %1127
    %1129 = vrot.lane.b32.xlu0 %v1069, 88
    %v1130 = vpop.permute.xlu0 %1129
    %1131 = vrot.lane.b32.xlu0 %v1072, 88
    %v1132 = vpop.permute.xlu0 %1131
    %v1133 = vsel %vm214, %v1122, 0
    %v1135 = vsel %vm214, %v1124, 0
    %v1137 = vsel %vm214, %v1126, 0
    %v1139 = vsel %vm214, %v1128, 0
    %v1141 = vsel %vm214, %v1130, 0
    %v1143 = vsel %vm214, %v1132, 0
    %1145 = vmatpush.xpose.msra.mxu0 0.0
    %1146 = vmatpush.xpose.msra.mxu0 0.0
    %1147 = vmatpush.xpose.msra.mxu0 0.0
    %1148 = vmatpush.xpose.msra.mxu0 0.0
    %1149 = vmatpush.xpose.msra.mxu0 0.0
    %1150 = vmatpush.xpose.msra.mxu0 0.0
    %1151 = vmatpush.xpose.msra.mxu0 0.0
    %1152 = vmatpush.xpose.msra.mxu0 0.0
    %1153 = vmatpush.xpose.msra.mxu0 0.0
    %1154 = vmatpush.xpose.msra.mxu0 0.0
    %1155 = vmatpush.xpose.msra.mxu0 0.0
    %1156 = vmatpush.xpose.msra.mxu0 0.0
    %1157 = vmatpush.xpose.msra.mxu0 0.0
    %1158 = vmatpush.xpose.msra.mxu0 %v1143
    %1159 = vmatpush.xpose.msra.mxu0 %v1141
    %1160 = vmatpush.xpose.msra.mxu0 %v1139
    %1161 = vmatmul.f32.gmra.mxu0 %v1133
    %v1162 = vpop.f32.mrf.mxu0
    %v1163 = vadd.f32 0.0, %v1162
    %1164 = vmatmul.f32.gmra.mxu0 %v1135
    %v1165 = vpop.f32.mrf.mxu0
    %v1166 = vadd.f32 0.0, %v1165
    %1167 = vmatmul.f32.gmra.mxu0 %v1137
    %v1168 = vpop.f32.mrf.mxu0
    %v1169 = vadd.f32 0.0, %v1168
    %1170 = vdwg.mxu0
    %1171 = vrot.lane.b32.xlu0 %v1066, 112
    %v1172 = vpop.permute.xlu0 %1171
    %1173 = vrot.lane.b32.xlu0 %v1069, 112
    %v1174 = vpop.permute.xlu0 %1173
    %1175 = vrot.lane.b32.xlu0 %v1072, 112
    %v1176 = vpop.permute.xlu0 %1175
    %1177 = vrot.lane.b32.xlu0 %v1066, 80
    %v1178 = vpop.permute.xlu0 %1177
    %1179 = vrot.lane.b32.xlu0 %v1069, 80
    %v1180 = vpop.permute.xlu0 %1179
    %1181 = vrot.lane.b32.xlu0 %v1072, 80
    %v1182 = vpop.permute.xlu0 %1181
    %v1183 = vsel %vm214, %v1172, 0
    %v1185 = vsel %vm214, %v1174, 0
    %v1187 = vsel %vm214, %v1176, 0
    %v1189 = vsel %vm214, %v1178, 0
    %v1191 = vsel %vm214, %v1180, 0
    %v1193 = vsel %vm214, %v1182, 0
    %1195 = vmatpush.xpose.msra.mxu0 0.0
    %1196 = vmatpush.xpose.msra.mxu0 0.0
    %1197 = vmatpush.xpose.msra.mxu0 0.0
    %1198 = vmatpush.xpose.msra.mxu0 0.0
    %1199 = vmatpush.xpose.msra.mxu0 0.0
    %1200 = vmatpush.xpose.msra.mxu0 0.0
    %1201 = vmatpush.xpose.msra.mxu0 0.0
    %1202 = vmatpush.xpose.msra.mxu0 0.0
    %1203 = vmatpush.xpose.msra.mxu0 0.0
    %1204 = vmatpush.xpose.msra.mxu0 0.0
    %1205 = vmatpush.xpose.msra.mxu0 0.0
    %1206 = vmatpush.xpose.msra.mxu0 0.0
    %1207 = vmatpush.xpose.msra.mxu0 0.0
    %1208 = vmatpush.xpose.msra.mxu0 %v1193
    %1209 = vmatpush.xpose.msra.mxu0 %v1191
    %1210 = vmatpush.xpose.msra.mxu0 %v1189
    %1211 = vmatmul.f32.gmra.mxu0 %v1183
    %v1212 = vpop.f32.mrf.mxu0
    %v1213 = vadd.f32 0.0, %v1212
    %1214 = vmatmul.f32.gmra.mxu0 %v1185
    %v1215 = vpop.f32.mrf.mxu0
    %v1216 = vadd.f32 0.0, %v1215
    %1217 = vmatmul.f32.gmra.mxu0 %v1187
    %v1218 = vpop.f32.mrf.mxu0
    %v1219 = vadd.f32 0.0, %v1218
    %1220 = vdwg.mxu0
    %1221 = vrot.lane.b32.xlu0 %v1066, 104
    %v1222 = vpop.permute.xlu0 %1221
    %1223 = vrot.lane.b32.xlu0 %v1069, 104
    %v1224 = vpop.permute.xlu0 %1223
    %1225 = vrot.lane.b32.xlu0 %v1072, 104
    %v1226 = vpop.permute.xlu0 %1225
    %1227 = vrot.lane.b32.xlu0 %v1066, 72
    %v1228 = vpop.permute.xlu0 %1227
    %1229 = vrot.lane.b32.xlu0 %v1069, 72
    %v1230 = vpop.permute.xlu0 %1229
    %1231 = vrot.lane.b32.xlu0 %v1072, 72
    %v1232 = vpop.permute.xlu0 %1231
    %v1233 = vsel %vm214, %v1222, 0
    %v1235 = vsel %vm214, %v1224, 0
    %v1237 = vsel %vm214, %v1226, 0
    %v1239 = vsel %vm214, %v1228, 0
    %v1241 = vsel %vm214, %v1230, 0
    %v1243 = vsel %vm214, %v1232, 0
    %1245 = vmatpush.xpose.msra.mxu0 0.0
    %1246 = vmatpush.xpose.msra.mxu0 0.0
    %1247 = vmatpush.xpose.msra.mxu0 0.0
    %1248 = vmatpush.xpose.msra.mxu0 0.0
    %1249 = vmatpush.xpose.msra.mxu0 0.0
    %1250 = vmatpush.xpose.msra.mxu0 0.0
    %1251 = vmatpush.xpose.msra.mxu0 0.0
    %1252 = vmatpush.xpose.msra.mxu0 0.0
    %1253 = vmatpush.xpose.msra.mxu0 0.0
    %1254 = vmatpush.xpose.msra.mxu0 0.0
    %1255 = vmatpush.xpose.msra.mxu0 0.0
    %1256 = vmatpush.xpose.msra.mxu0 0.0
    %1257 = vmatpush.xpose.msra.mxu0 0.0
    %1258 = vmatpush.xpose.msra.mxu0 %v1243
    %1259 = vmatpush.xpose.msra.mxu0 %v1241
    %1260 = vmatpush.xpose.msra.mxu0 %v1239
    %1261 = vmatmul.f32.gmra.mxu0 %v1233
    %v1262 = vpop.f32.mrf.mxu0
    %v1263 = vadd.f32 0.0, %v1262
    %1264 = vmatmul.f32.gmra.mxu0 %v1235
    %v1265 = vpop.f32.mrf.mxu0
    %v1266 = vadd.f32 0.0, %v1265
    %1267 = vmatmul.f32.gmra.mxu0 %v1237
    %v1268 = vpop.f32.mrf.mxu0
    %v1269 = vadd.f32 0.0, %v1268
    %1270 = vdwg.mxu0
    %v1271 = vld [vmem:[%s9] sm:$0xff]
    %v1272 = vld [vmem:[%s9 + $0x8] sm:$0xff]
    %v1273 = vld [vmem:[%s9 + $0x10] sm:$0xff]
    %v1274 = vld [vmem:[%s9 + $0x18] sm:$0xff]
    %v1275 = vld [vmem:[%s9 + $0x20] sm:$0xff]
    %v1276 = vld [vmem:[%s9 + $0x28] sm:$0xff]
    %v1277 = vld [vmem:[%s9 + $0x30] sm:$0xff]
    %v1278 = vld [vmem:[%s9 + $0x38] sm:$0xff]
    %v1279 = vld [vmem:[%s9 + $0x40] sm:$0xff]
    %v1280 = vld [vmem:[%s9 + $0x48] sm:$0xff]
    %v1281 = vld [vmem:[%s9 + $0x50] sm:$0xff]
    %v1282 = vld [vmem:[%s9 + $0x58] sm:$0xff]
    %v1283 = vadd.f32 %v1113, %v1271
    %v1284 = vadd.f32 %v1116, %v1272
    %v1285 = vadd.f32 %v1119, %v1273
    %v1286 = vadd.f32 %v1163, %v1274
    %v1287 = vadd.f32 %v1166, %v1275
    %v1288 = vadd.f32 %v1169, %v1276
    %v1289 = vadd.f32 %v1213, %v1277
    %v1290 = vadd.f32 %v1216, %v1278
    %v1291 = vadd.f32 %v1219, %v1279
    %v1292 = vadd.f32 %v1263, %v1280
    %v1293 = vadd.f32 %v1266, %v1281
    %v1294 = vadd.f32 %v1269, %v1282
    %v1295 = vsel %vm427, %v1283, -inf
    %1296 = vmax.xlane.f32.xlu0 %v1295
    %v1297 = vpop.xlane.xlu0 %1296
    %v1298 = vsel %vm427, %v1284, -inf
    %1299 = vmax.xlane.f32.xlu0 %v1298
    %v1300 = vpop.xlane.xlu0 %1299
    %v1301 = vsel %vm427, %v1285, -inf
    %1302 = vmax.xlane.f32.xlu0 %v1301
    %v1303 = vpop.xlane.xlu0 %1302
    %v1304 = vsel %vm427, %v1286, -inf
    %1305 = vmax.xlane.f32.xlu0 %v1304
    %v1306 = vpop.xlane.xlu0 %1305
    %v1307 = vsel %vm427, %v1287, -inf
    %1308 = vmax.xlane.f32.xlu0 %v1307
    %v1309 = vpop.xlane.xlu0 %1308
    %v1310 = vsel %vm427, %v1288, -inf
    %1311 = vmax.xlane.f32.xlu0 %v1310
    %v1312 = vpop.xlane.xlu0 %1311
    %v1313 = vsel %vm427, %v1289, -inf
    %1314 = vmax.xlane.f32.xlu0 %v1313
    %v1315 = vpop.xlane.xlu0 %1314
    %v1316 = vsel %vm427, %v1290, -inf
    %1317 = vmax.xlane.f32.xlu0 %v1316
    %v1318 = vpop.xlane.xlu0 %1317
    %v1319 = vsel %vm427, %v1291, -inf
    %1320 = vmax.xlane.f32.xlu0 %v1319
    %v1321 = vpop.xlane.xlu0 %1320
    %v1322 = vsel %vm427, %v1292, -inf
    %1323 = vmax.xlane.f32.xlu0 %v1322
    %v1324 = vpop.xlane.xlu0 %1323
    %v1325 = vsel %vm427, %v1293, -inf
    %1326 = vmax.xlane.f32.xlu0 %v1325
    %v1327 = vpop.xlane.xlu0 %1326
    %v1328 = vsel %vm427, %v1294, -inf
    %1329 = vmax.xlane.f32.xlu0 %v1328
    %v1330 = vpop.xlane.xlu0 %1329
    %v1331 = vsub.f32 %v1283, %v1297
    %v1332 = vsub.f32 %v1284, %v1300
    %v1333 = vsub.f32 %v1285, %v1303
    %v1334 = vsub.f32 %v1286, %v1306
    %v1335 = vsub.f32 %v1287, %v1309
    %v1336 = vsub.f32 %v1288, %v1312
    %v1337 = vsub.f32 %v1289, %v1315
    %v1338 = vsub.f32 %v1290, %v1318
    %v1339 = vsub.f32 %v1291, %v1321
    %v1340 = vsub.f32 %v1292, %v1324
    %v1341 = vsub.f32 %v1293, %v1327
    %v1342 = vsub.f32 %v1294, %v1330
    %v1343 = vmul.f32 %v1331, 1.442695
    %v1344 = vpow.pop %v1343
    %v1345 = vmul.f32 %v1332, 1.442695
    %v1346 = vpow.pop %v1345
    %v1347 = vmul.f32 %v1333, 1.442695
    %v1348 = vpow.pop %v1347
    %v1349 = vmul.f32 %v1334, 1.442695
    %v1350 = vpow.pop %v1349
    %v1351 = vmul.f32 %v1335, 1.442695
    %v1352 = vpow.pop %v1351
    %v1353 = vmul.f32 %v1336, 1.442695
    %v1354 = vpow.pop %v1353
    %v1355 = vmul.f32 %v1337, 1.442695
    %v1356 = vpow.pop %v1355
    %v1357 = vmul.f32 %v1338, 1.442695
    %v1358 = vpow.pop %v1357
    %v1359 = vmul.f32 %v1339, 1.442695
    %v1360 = vpow.pop %v1359
    %v1361 = vmul.f32 %v1340, 1.442695
    %v1362 = vpow.pop %v1361
    %v1363 = vmul.f32 %v1341, 1.442695
    %v1364 = vpow.pop %v1363
    %v1365 = vmul.f32 %v1342, 1.442695
    %v1366 = vpow.pop %v1365
    %v1367 = vsel %vm427, %v1344, 0.0
    %1368 = vadd.xlane.f32.xlu0 %v1367
    %v1369 = vpop.xlane.xlu0 %1368
    %v1370 = vsel %vm427, %v1346, 0.0
    %1371 = vadd.xlane.f32.xlu0 %v1370
    %v1372 = vpop.xlane.xlu0 %1371
    %v1373 = vsel %vm427, %v1348, 0.0
    %1374 = vadd.xlane.f32.xlu0 %v1373
    %v1375 = vpop.xlane.xlu0 %1374
    %v1376 = vsel %vm427, %v1350, 0.0
    %1377 = vadd.xlane.f32.xlu0 %v1376
    %v1378 = vpop.xlane.xlu0 %1377
    %v1379 = vsel %vm427, %v1352, 0.0
    %1380 = vadd.xlane.f32.xlu0 %v1379
    %v1381 = vpop.xlane.xlu0 %1380
    %v1382 = vsel %vm427, %v1354, 0.0
    %1383 = vadd.xlane.f32.xlu0 %v1382
    %v1384 = vpop.xlane.xlu0 %1383
    %v1385 = vsel %vm427, %v1356, 0.0
    %1386 = vadd.xlane.f32.xlu0 %v1385
    %v1387 = vpop.xlane.xlu0 %1386
    %v1388 = vsel %vm427, %v1358, 0.0
    %1389 = vadd.xlane.f32.xlu0 %v1388
    %v1390 = vpop.xlane.xlu0 %1389
    %v1391 = vsel %vm427, %v1360, 0.0
    %1392 = vadd.xlane.f32.xlu0 %v1391
    %v1393 = vpop.xlane.xlu0 %1392
    %v1394 = vsel %vm427, %v1362, 0.0
    %1395 = vadd.xlane.f32.xlu0 %v1394
    %v1396 = vpop.xlane.xlu0 %1395
    %v1397 = vsel %vm427, %v1364, 0.0
    %1398 = vadd.xlane.f32.xlu0 %v1397
    %v1399 = vpop.xlane.xlu0 %1398
    %v1400 = vsel %vm427, %v1366, 0.0
    %1401 = vadd.xlane.f32.xlu0 %v1400
    %v1402 = vpop.xlane.xlu0 %1401
    %v1403 = vrcp.pop %v1369
    %v1404 = vrcp.pop %v1372
    %v1405 = vrcp.pop %v1375
    %v1406 = vrcp.pop %v1378
    %v1407 = vrcp.pop %v1381
    %v1408 = vrcp.pop %v1384
    %v1409 = vrcp.pop %v1387
    %v1410 = vrcp.pop %v1390
    %v1411 = vrcp.pop %v1393
    %v1412 = vrcp.pop %v1396
    %v1413 = vrcp.pop %v1399
    %v1414 = vrcp.pop %v1402
    %v1415 = vmul.f32 %v1344, %v1403
    %v1416 = vmul.f32 %v1346, %v1404
    %v1417 = vmul.f32 %v1348, %v1405
    %v1418 = vmul.f32 %v1350, %v1406
    %v1419 = vmul.f32 %v1352, %v1407
    %v1420 = vmul.f32 %v1354, %v1408
    %v1421 = vmul.f32 %v1356, %v1409
    %v1422 = vmul.f32 %v1358, %v1410
    %v1423 = vmul.f32 %v1360, %v1411
    %v1424 = vmul.f32 %v1362, %v1412
    %v1425 = vmul.f32 %v1364, %v1413
    %v1426 = vmul.f32 %v1366, %v1414
    %1427 = vrot.lane.b32.xlu0 %v1066, 64
    %v1428 = vpop.permute.xlu0 %1427
    %1429 = vrot.lane.b32.xlu0 %v1069, 64
    %v1430 = vpop.permute.xlu0 %1429
    %1431 = vrot.lane.b32.xlu0 %v1072, 64
    %v1432 = vpop.permute.xlu0 %1431
    %v1437 = vsel %vm427, %v1415, 0
    %v1440 = vsel %vm427, %v1416, 0
    %v1443 = vsel %vm427, %v1417, 0
    %1445 = vmatpush.msra.mxu0 0.0
    %1446 = vmatpush.msra.mxu0 0.0
    %1447 = vmatpush.msra.mxu0 0.0
    %1448 = vmatpush.msra.mxu0 0.0
    %1449 = vmatpush.msra.mxu0 0.0
    %1450 = vmatpush.msra.mxu0 0.0
    %1451 = vmatpush.msra.mxu0 0.0
    %1452 = vmatpush.msra.mxu0 0.0
    %1453 = vmatpush.msra.mxu0 0.0
    %1454 = vmatpush.msra.mxu0 0.0
    %1455 = vmatpush.msra.mxu0 0.0
    %1456 = vmatpush.msra.mxu0 0.0
    %1457 = vmatpush.msra.mxu0 0.0
    %1458 = vmatpush.msra.mxu0 %v1432
    %1459 = vmatpush.msra.mxu0 %v1430
    %1460 = vmatpush.msra.mxu0 %v1428
    %1461 = vmatmul.f32.gmra.mxu0 %v1437
    %v1462 = vpop.f32.mrf.mxu0
    %v1463 = vadd.f32 0.0, %v1462
    %1464 = vmatmul.f32.gmra.mxu0 %v1440
    %v1465 = vpop.f32.mrf.mxu0
    %v1466 = vadd.f32 0.0, %v1465
    %1467 = vmatmul.f32.gmra.mxu0 %v1443
    %v1468 = vpop.f32.mrf.mxu0
    %v1469 = vadd.f32 0.0, %v1468
    %1470 = vdwg.mxu0
    %1471 = vrot.lane.b32.xlu0 %v1066, 56
    %v1472 = vpop.permute.xlu0 %1471
    %1473 = vrot.lane.b32.xlu0 %v1069, 56
    %v1474 = vpop.permute.xlu0 %1473
    %1475 = vrot.lane.b32.xlu0 %v1072, 56
    %v1476 = vpop.permute.xlu0 %1475
    %v1481 = vsel %vm427, %v1418, 0
    %v1484 = vsel %vm427, %v1419, 0
    %v1487 = vsel %vm427, %v1420, 0
    %1489 = vmatpush.msra.mxu0 0.0
    %1490 = vmatpush.msra.mxu0 0.0
    %1491 = vmatpush.msra.mxu0 0.0
    %1492 = vmatpush.msra.mxu0 0.0
    %1493 = vmatpush.msra.mxu0 0.0
    %1494 = vmatpush.msra.mxu0 0.0
    %1495 = vmatpush.msra.mxu0 0.0
    %1496 = vmatpush.msra.mxu0 0.0
    %1497 = vmatpush.msra.mxu0 0.0
    %1498 = vmatpush.msra.mxu0 0.0
    %1499 = vmatpush.msra.mxu0 0.0
    %1500 = vmatpush.msra.mxu0 0.0
    %1501 = vmatpush.msra.mxu0 0.0
    %1502 = vmatpush.msra.mxu0 %v1476
    %1503 = vmatpush.msra.mxu0 %v1474
    %1504 = vmatpush.msra.mxu0 %v1472
    %1505 = vmatmul.f32.gmra.mxu0 %v1481
    %v1506 = vpop.f32.mrf.mxu0
    %v1507 = vadd.f32 0.0, %v1506
    %1508 = vmatmul.f32.gmra.mxu0 %v1484
    %v1509 = vpop.f32.mrf.mxu0
    %v1510 = vadd.f32 0.0, %v1509
    %1511 = vmatmul.f32.gmra.mxu0 %v1487
    %v1512 = vpop.f32.mrf.mxu0
    %v1513 = vadd.f32 0.0, %v1512
    %1514 = vdwg.mxu0
    %1515 = vrot.lane.b32.xlu0 %v1066, 48
    %v1516 = vpop.permute.xlu0 %1515
    %1517 = vrot.lane.b32.xlu0 %v1069, 48
    %v1518 = vpop.permute.xlu0 %1517
    %1519 = vrot.lane.b32.xlu0 %v1072, 48
    %v1520 = vpop.permute.xlu0 %1519
    %v1525 = vsel %vm427, %v1421, 0
    %v1528 = vsel %vm427, %v1422, 0
    %v1531 = vsel %vm427, %v1423, 0
    %1533 = vmatpush.msra.mxu0 0.0
    %1534 = vmatpush.msra.mxu0 0.0
    %1535 = vmatpush.msra.mxu0 0.0
    %1536 = vmatpush.msra.mxu0 0.0
    %1537 = vmatpush.msra.mxu0 0.0
    %1538 = vmatpush.msra.mxu0 0.0
    %1539 = vmatpush.msra.mxu0 0.0
    %1540 = vmatpush.msra.mxu0 0.0
    %1541 = vmatpush.msra.mxu0 0.0
    %1542 = vmatpush.msra.mxu0 0.0
    %1543 = vmatpush.msra.mxu0 0.0
    %1544 = vmatpush.msra.mxu0 0.0
    %1545 = vmatpush.msra.mxu0 0.0
    %1546 = vmatpush.msra.mxu0 %v1520
    %1547 = vmatpush.msra.mxu0 %v1518
    %1548 = vmatpush.msra.mxu0 %v1516
    %1549 = vmatmul.f32.gmra.mxu0 %v1525
    %v1550 = vpop.f32.mrf.mxu0
    %v1551 = vadd.f32 0.0, %v1550
    %1552 = vmatmul.f32.gmra.mxu0 %v1528
    %v1553 = vpop.f32.mrf.mxu0
    %v1554 = vadd.f32 0.0, %v1553
    %1555 = vmatmul.f32.gmra.mxu0 %v1531
    %v1556 = vpop.f32.mrf.mxu0
    %v1557 = vadd.f32 0.0, %v1556
    %1558 = vdwg.mxu0
    %1559 = vrot.lane.b32.xlu0 %v1066, 40
    %v1560 = vpop.permute.xlu0 %1559
    %1561 = vrot.lane.b32.xlu0 %v1069, 40
    %v1562 = vpop.permute.xlu0 %1561
    %1563 = vrot.lane.b32.xlu0 %v1072, 40
    %v1564 = vpop.permute.xlu0 %1563
    %v1569 = vsel %vm427, %v1424, 0
    %v1572 = vsel %vm427, %v1425, 0
    %v1575 = vsel %vm427, %v1426, 0
    %1577 = vmatpush.msra.mxu0 0.0
    %1578 = vmatpush.msra.mxu0 0.0
    %1579 = vmatpush.msra.mxu0 0.0
    %1580 = vmatpush.msra.mxu0 0.0
    %1581 = vmatpush.msra.mxu0 0.0
    %1582 = vmatpush.msra.mxu0 0.0
    %1583 = vmatpush.msra.mxu0 0.0
    %1584 = vmatpush.msra.mxu0 0.0
    %1585 = vmatpush.msra.mxu0 0.0
    %1586 = vmatpush.msra.mxu0 0.0
    %1587 = vmatpush.msra.mxu0 0.0
    %1588 = vmatpush.msra.mxu0 0.0
    %1589 = vmatpush.msra.mxu0 0.0
    %1590 = vmatpush.msra.mxu0 %v1564
    %1591 = vmatpush.msra.mxu0 %v1562
    %1592 = vmatpush.msra.mxu0 %v1560
    %1593 = vmatmul.f32.gmra.mxu0 %v1569
    %v1594 = vpop.f32.mrf.mxu0
    %v1595 = vadd.f32 0.0, %v1594
    %1596 = vmatmul.f32.gmra.mxu0 %v1572
    %v1597 = vpop.f32.mrf.mxu0
    %v1598 = vadd.f32 0.0, %v1597
    %1599 = vmatmul.f32.gmra.mxu0 %v1575
    %v1600 = vpop.f32.mrf.mxu0
    %v1601 = vadd.f32 0.0, %v1600
    %1602 = vdwg.mxu0
    %1606 = vrot.lane.b32.xlu0 %v1507, 8
    %v1607 = vpop.permute.xlu0 %1606
    %1608 = vrot.lane.b32.xlu0 %v1510, 8
    %v1609 = vpop.permute.xlu0 %1608
    %1610 = vrot.lane.b32.xlu0 %v1513, 8
    %v1611 = vpop.permute.xlu0 %1610
    %1618 = vrot.lane.b32.xlu0 %v1551, 16
    %v1619 = vpop.permute.xlu0 %1618
    %1620 = vrot.lane.b32.xlu0 %v1554, 16
    %v1621 = vpop.permute.xlu0 %1620
    %1622 = vrot.lane.b32.xlu0 %v1557, 16
    %v1623 = vpop.permute.xlu0 %1622
    %1630 = vrot.lane.b32.xlu0 %v1595, 24
    %v1631 = vpop.permute.xlu0 %1630
    %1632 = vrot.lane.b32.xlu0 %v1598, 24
    %v1633 = vpop.permute.xlu0 %1632
    %1634 = vrot.lane.b32.xlu0 %v1601, 24
    %v1635 = vpop.permute.xlu0 %1634
    %v1639 = vsel %vm214, %v1463, %v1607
    %v1640 = vsel %vm214, %v1466, %v1609
    %v1641 = vsel %vm214, %v1469, %v1611
    %v1642 = vsel %vm775, %v1639, %v1619
    %v1643 = vsel %vm775, %v1640, %v1621
    %v1644 = vsel %vm775, %v1641, %v1623
    %v1645 = vsel %vm427, %v1642, %v1631
    %v1646 = vsel %vm427, %v1643, %v1633
    %v1647 = vsel %vm427, %v1644, %v1635
    %s1648 = scalar_lea.vmem [#allocation5], 32
    %v1649 = vld [vmem:[%s1648] sm:$0xff]
    %v1650 = vld [vmem:[%s1648 + $0x8] sm:$0xff]
    %v1651 = vld [vmem:[%s1648 + $0x10] sm:$0xff]
    %v1652 = vld [vmem:[%s1648 + $0x18] sm:$0xff]
    %v1654 = vsel %vm106, %v1645, 0
    %v1657 = vsel %vm106, %v1646, 0
    %v1660 = vsel %vm106, %v1647, 0
    %1662 = vmatpush.msra.mxu0 0.0
    %1663 = vmatpush.msra.mxu0 0.0
    %1664 = vmatpush.msra.mxu0 0.0
    %1665 = vmatpush.msra.mxu0 0.0
    %1666 = vmatpush.msra.mxu0 0.0
    %1667 = vmatpush.msra.mxu0 0.0
    %1668 = vmatpush.msra.mxu0 0.0
    %1669 = vmatpush.msra.mxu0 0.0
    %1670 = vmatpush.msra.mxu0 0.0
    %1671 = vmatpush.msra.mxu0 0.0
    %1672 = vmatpush.msra.mxu0 0.0
    %1673 = vmatpush.msra.mxu0 0.0
    %1674 = vmatpush.msra.mxu0 %v1652
    %1675 = vmatpush.msra.mxu0 %v1651
    %1676 = vmatpush.msra.mxu0 %v1650
    %1677 = vmatpush.msra.mxu0 %v1649
    %1678 = vmatmul.f32.gmra.mxu0 %v1654
    %v1679 = vpop.f32.mrf.mxu0
    %v1680 = vadd.f32 0.0, %v1679
    %1681 = vmatmul.f32.gmra.mxu0 %v1657
    %v1682 = vpop.f32.mrf.mxu0
    %v1683 = vadd.f32 0.0, %v1682
    %1684 = vmatmul.f32.gmra.mxu0 %v1660
    %v1685 = vpop.f32.mrf.mxu0
    %v1686 = vadd.f32 0.0, %v1685
    %1687 = vdwg.mxu0
    %v1688 = vadd.f32 %v975, %v1680
    %v1689 = vadd.f32 %v976, %v1683
    %v1690 = vadd.f32 %v977, %v1686
    %v1691 = vld [vmem:[%s6 + $0x3] sm:$0x1]
    %v1692 = vmul.f32 %v1688, %v1688
    %v1693 = vmul.f32 %v1689, %v1689
    %v1694 = vmul.f32 %v1690, %v1690
    %v1695 = vsel %vm106, %v1692, 0.0
    %1696 = vadd.xlane.f32.xlu0 %v1695
    %v1697 = vpop.xlane.xlu0 %1696
    %v1698 = vsel %vm106, %v1693, 0.0
    %1699 = vadd.xlane.f32.xlu0 %v1698
    %v1700 = vpop.xlane.xlu0 %1699
    %v1701 = vsel %vm106, %v1694, 0.0
    %1702 = vadd.xlane.f32.xlu0 %v1701
    %v1703 = vpop.xlane.xlu0 %1702
    %v1704 = vmul.f32 %v1697, %v122
    %v1705 = vmul.f32 %v1700, %v122
    %v1706 = vmul.f32 %v1703, %v122
    %v1707 = vadd.f32 %v1704, 1e-06
    %v1708 = vadd.f32 %v1705, 1e-06
    %v1709 = vadd.f32 %v1706, 1e-06
    %v1710 = vrsqrt.pop %v1707
    %v1711 = vmul.f32 %v1710, %v1707
    %v1712 = vmul.f32 %v1711, %v1710
    %v1713 = vmul.f32 0.5, %v1712
    %v1714 = vsub.f32 1.5, %v1713
    %v1715 = vmul.f32 %v1710, %v1714
    %vm1716 = vweird.f32 %v1707
    %vm1717 = vweird.f32 %v1710
    %vm1718 = vmor %vm1716, %vm1717
    %v1719 = vsel %vm1718, %v1710, %v1715
    %v1720 = vrsqrt.pop %v1708
    %v1721 = vmul.f32 %v1720, %v1708
    %v1722 = vmul.f32 %v1721, %v1720
    %v1723 = vmul.f32 0.5, %v1722
    %v1724 = vsub.f32 1.5, %v1723
    %v1725 = vmul.f32 %v1720, %v1724
    %vm1726 = vweird.f32 %v1708
    %vm1727 = vweird.f32 %v1720
    %vm1728 = vmor %vm1726, %vm1727
    %v1729 = vsel %vm1728, %v1720, %v1725
    %v1730 = vrsqrt.pop %v1709
    %v1731 = vmul.f32 %v1730, %v1709
    %v1732 = vmul.f32 %v1731, %v1730
    %v1733 = vmul.f32 0.5, %v1732
    %v1734 = vsub.f32 1.5, %v1733
    %v1735 = vmul.f32 %v1730, %v1734
    %vm1736 = vweird.f32 %v1709
    %vm1737 = vweird.f32 %v1730
    %vm1738 = vmor %vm1736, %vm1737
    %v1739 = vsel %vm1738, %v1730, %v1735
    %v1740 = vmul.f32 %v1688, %v1719
    %v1741 = vmul.f32 %v1689, %v1729
    %v1742 = vmul.f32 %v1690, %v1739
    %v1743 = vperm.slane %v1691, 0
    %v1744 = vmul.f32 %v1740, %v1743
    %v1745 = vmul.f32 %v1741, %v1743
    %v1746 = vmul.f32 %v1742, %v1743
    %s1747 = scalar_lea.vmem %s7, 64
    %v1748 = vld [vmem:[%s1747] sm:$0xff]
    %v1749 = vld [vmem:[%s1747 + $0x8] sm:$0xff]
    %v1750 = vld [vmem:[%s1747 + $0x10] sm:$0xff]
    %v1751 = vld [vmem:[%s1747 + $0x18] sm:$0xff]
    %v1753 = vsel %vm106, %v1744, 0
    %v1756 = vsel %vm106, %v1745, 0
    %v1759 = vsel %vm106, %v1746, 0
    %1761 = vmatpush.msra.mxu0 0.0
    %1762 = vmatpush.msra.mxu0 0.0
    %1763 = vmatpush.msra.mxu0 0.0
    %1764 = vmatpush.msra.mxu0 0.0
    %1765 = vmatpush.msra.mxu0 0.0
    %1766 = vmatpush.msra.mxu0 0.0
    %1767 = vmatpush.msra.mxu0 0.0
    %1768 = vmatpush.msra.mxu0 0.0
    %1769 = vmatpush.msra.mxu0 0.0
    %1770 = vmatpush.msra.mxu0 0.0
    %1771 = vmatpush.msra.mxu0 0.0
    %1772 = vmatpush.msra.mxu0 0.0
    %1773 = vmatpush.msra.mxu0 %v1751
    %1774 = vmatpush.msra.mxu0 %v1750
    %1775 = vmatpush.msra.mxu0 %v1749
    %1776 = vmatpush.msra.mxu0 %v1748
    %1777 = vmatmul.f32.gmra.mxu0 %v1753
    %v1778 = vpop.f32.mrf.mxu0
    %v1779 = vadd.f32 0.0, %v1778
    %1780 = vmatmul.f32.gmra.mxu0 %v1756
    %v1781 = vpop.f32.mrf.mxu0
    %v1782 = vadd.f32 0.0, %v1781
    %1783 = vmatmul.f32.gmra.mxu0 %v1759
    %v1784 = vpop.f32.mrf.mxu0
    %v1785 = vadd.f32 0.0, %v1784
    %1786 = vdwg.mxu0
    %v1787 = vmax.f32 %v1779, 0.0
    %v1788 = vmax.f32 %v1782, 0.0
    %v1789 = vmax.f32 %v1785, 0.0
    %s1790 = scalar_lea.vmem %s7, 96
    %v1791 = vld [vmem:[%s1790] sm:$0xff]
    %v1792 = vld [vmem:[%s1790 + $0x8] sm:$0xff]
    %v1793 = vld [vmem:[%s1790 + $0x10] sm:$0xff]
    %v1794 = vld [vmem:[%s1790 + $0x18] sm:$0xff]
    %v1796 = vsel %vm927, %v1787, 0
    %v1799 = vsel %vm927, %v1788, 0
    %v1802 = vsel %vm927, %v1789, 0
    %v1805 = vsel %vm927, %v1791, 0
    %v1808 = vsel %vm927, %v1792, 0
    %v1811 = vsel %vm927, %v1793, 0
    %v1814 = vsel %vm927, %v1794, 0
    %1816 = vmatpush.xpose.msra.mxu0 0.0
    %1817 = vmatpush.xpose.msra.mxu0 0.0
    %1818 = vmatpush.xpose.msra.mxu0 0.0
    %1819 = vmatpush.xpose.msra.mxu0 0.0
    %1820 = vmatpush.xpose.msra.mxu0 0.0
    %1821 = vmatpush.xpose.msra.mxu0 0.0
    %1822 = vmatpush.xpose.msra.mxu0 0.0
    %1823 = vmatpush.xpose.msra.mxu0 0.0
    %1824 = vmatpush.xpose.msra.mxu0 0.0
    %1825 = vmatpush.xpose.msra.mxu0 0.0
    %1826 = vmatpush.xpose.msra.mxu0 0.0
    %1827 = vmatpush.xpose.msra.mxu0 0.0
    %1828 = vmatpush.xpose.msra.mxu0 %v1814
    %1829 = vmatpush.xpose.msra.mxu0 %v1811
    %1830 = vmatpush.xpose.msra.mxu0 %v1808
    %1831 = vmatpush.xpose.msra.mxu0 %v1805
    %1832 = vmatmul.f32.gmra.mxu0 %v1796
    %v1833 = vpop.f32.mrf.mxu0
    %v1834 = vadd.f32 0.0, %v1833
    %1835 = vmatmul.f32.gmra.mxu0 %v1799
    %v1836 = vpop.f32.mrf.mxu0
    %v1837 = vadd.f32 0.0, %v1836
    %1838 = vmatmul.f32.gmra.mxu0 %v1802
    %v1839 = vpop.f32.mrf.mxu0
    %v1840 = vadd.f32 0.0, %v1839
    %1841 = vdwg.mxu0
    %v1842 = vadd.f32 %v1688, %v1834
    %v1843 = vadd.f32 %v1689, %v1837
    %v1844 = vadd.f32 %v1690, %v1840
    %v1845 = vld [vmem:[%s6 + $0x4] sm:$0x1]
    %v1846 = vmul.f32 %v1842, %v1842
    %v1847 = vmul.f32 %v1843, %v1843
    %v1848 = vmul.f32 %v1844, %v1844
    %v1849 = vsel %vm106, %v1846, 0.0
    %1850 = vadd.xlane.f32.xlu0 %v1849
    %v1851 = vpop.xlane.xlu0 %1850
    %v1852 = vsel %vm106, %v1847, 0.0
    %1853 = vadd.xlane.f32.xlu0 %v1852
    %v1854 = vpop.xlane.xlu0 %1853
    %v1855 = vsel %vm106, %v1848, 0.0
    %1856 = vadd.xlane.f32.xlu0 %v1855
    %v1857 = vpop.xlane.xlu0 %1856
    %v1858 = vmul.f32 %v1851, %v122
    %v1859 = vmul.f32 %v1854, %v122
    %v1860 = vmul.f32 %v1857, %v122
    %v1861 = vadd.f32 %v1858, 1e-06
    %v1862 = vadd.f32 %v1859, 1e-06
    %v1863 = vadd.f32 %v1860, 1e-06
    %v1864 = vrsqrt.pop %v1861
    %v1865 = vmul.f32 %v1864, %v1861
    %v1866 = vmul.f32 %v1865, %v1864
    %v1867 = vmul.f32 0.5, %v1866
    %v1868 = vsub.f32 1.5, %v1867
    %v1869 = vmul.f32 %v1864, %v1868
    %vm1870 = vweird.f32 %v1861
    %vm1871 = vweird.f32 %v1864
    %vm1872 = vmor %vm1870, %vm1871
    %v1873 = vsel %vm1872, %v1864, %v1869
    %v1874 = vrsqrt.pop %v1862
    %v1875 = vmul.f32 %v1874, %v1862
    %v1876 = vmul.f32 %v1875, %v1874
    %v1877 = vmul.f32 0.5, %v1876
    %v1878 = vsub.f32 1.5, %v1877
    %v1879 = vmul.f32 %v1874, %v1878
    %vm1880 = vweird.f32 %v1862
    %vm1881 = vweird.f32 %v1874
    %vm1882 = vmor %vm1880, %vm1881
    %v1883 = vsel %vm1882, %v1874, %v1879
    %v1884 = vrsqrt.pop %v1863
    %v1885 = vmul.f32 %v1884, %v1863
    %v1886 = vmul.f32 %v1885, %v1884
    %v1887 = vmul.f32 0.5, %v1886
    %v1888 = vsub.f32 1.5, %v1887
    %v1889 = vmul.f32 %v1884, %v1888
    %vm1890 = vweird.f32 %v1863
    %vm1891 = vweird.f32 %v1884
    %vm1892 = vmor %vm1890, %vm1891
    %v1893 = vsel %vm1892, %v1884, %v1889
    %v1894 = vmul.f32 %v1842, %v1873
    %v1895 = vmul.f32 %v1843, %v1883
    %v1896 = vmul.f32 %v1844, %v1893
    %v1897 = vperm.slane %v1845, 0
    %v1898 = vmul.f32 %v1894, %v1897
    %v1899 = vmul.f32 %v1895, %v1897
    %v1900 = vmul.f32 %v1896, %v1897
    %s1901 = scalar_lea.vmem [#allocation2], 64
    %v1902 = vld [vmem:[%s1901] sm:$0xff]
    %v1903 = vld [vmem:[%s1901 + $0x8] sm:$0xff]
    %v1904 = vld [vmem:[%s1901 + $0x10] sm:$0xff]
    %v1905 = vld [vmem:[%s1901 + $0x18] sm:$0xff]
    %v1907 = vsel %vm106, %v1898, 0
    %v1910 = vsel %vm106, %v1899, 0
    %v1913 = vsel %vm106, %v1900, 0
    %1915 = vmatpush.msra.mxu0 0.0
    %1916 = vmatpush.msra.mxu0 0.0
    %1917 = vmatpush.msra.mxu0 0.0
    %1918 = vmatpush.msra.mxu0 0.0
    %1919 = vmatpush.msra.mxu0 0.0
    %1920 = vmatpush.msra.mxu0 0.0
    %1921 = vmatpush.msra.mxu0 0.0
    %1922 = vmatpush.msra.mxu0 0.0
    %1923 = vmatpush.msra.mxu0 0.0
    %1924 = vmatpush.msra.mxu0 0.0
    %1925 = vmatpush.msra.mxu0 0.0
    %1926 = vmatpush.msra.mxu0 0.0
    %1927 = vmatpush.msra.mxu0 %v1905
    %1928 = vmatpush.msra.mxu0 %v1904
    %1929 = vmatpush.msra.mxu0 %v1903
    %1930 = vmatpush.msra.mxu0 %v1902
    %1931 = vmatmul.f32.gmra.mxu0 %v1907
    %v1932 = vpop.f32.mrf.mxu0
    %v1933 = vadd.f32 0.0, %v1932
    %1934 = vmatmul.f32.gmra.mxu0 %v1910
    %v1935 = vpop.f32.mrf.mxu0
    %v1936 = vadd.f32 0.0, %v1935
    %1937 = vmatmul.f32.gmra.mxu0 %v1913
    %v1938 = vpop.f32.mrf.mxu0
    %v1939 = vadd.f32 0.0, %v1938
    %1940 = vdwg.mxu0
    %1944 = vrot.lane.b32.xlu0 %v1933, 96
    %v1945 = vpop.permute.xlu0 %1944
    %1946 = vrot.lane.b32.xlu0 %v1936, 96
    %v1947 = vpop.permute.xlu0 %1946
    %1948 = vrot.lane.b32.xlu0 %v1939, 96
    %v1949 = vpop.permute.xlu0 %1948
    %v1950 = vsel %vm214, %v1933, 0
    %v1952 = vsel %vm214, %v1936, 0
    %v1954 = vsel %vm214, %v1939, 0
    %v1956 = vsel %vm214, %v1945, 0
    %v1958 = vsel %vm214, %v1947, 0
    %v1960 = vsel %vm214, %v1949, 0
    %1962 = vmatpush.xpose.msra.mxu0 0.0
    %1963 = vmatpush.xpose.msra.mxu0 0.0
    %1964 = vmatpush.xpose.msra.mxu0 0.0
    %1965 = vmatpush.xpose.msra.mxu0 0.0
    %1966 = vmatpush.xpose.msra.mxu0 0.0
    %1967 = vmatpush.xpose.msra.mxu0 0.0
    %1968 = vmatpush.xpose.msra.mxu0 0.0
    %1969 = vmatpush.xpose.msra.mxu0 0.0
    %1970 = vmatpush.xpose.msra.mxu0 0.0
    %1971 = vmatpush.xpose.msra.mxu0 0.0
    %1972 = vmatpush.xpose.msra.mxu0 0.0
    %1973 = vmatpush.xpose.msra.mxu0 0.0
    %1974 = vmatpush.xpose.msra.mxu0 0.0
    %1975 = vmatpush.xpose.msra.mxu0 %v1960
    %1976 = vmatpush.xpose.msra.mxu0 %v1958
    %1977 = vmatpush.xpose.msra.mxu0 %v1956
    %1978 = vmatmul.f32.gmra.mxu0 %v1950
    %v1979 = vpop.f32.mrf.mxu0
    %v1980 = vadd.f32 0.0, %v1979
    %1981 = vmatmul.f32.gmra.mxu0 %v1952
    %v1982 = vpop.f32.mrf.mxu0
    %v1983 = vadd.f32 0.0, %v1982
    %1984 = vmatmul.f32.gmra.mxu0 %v1954
    %v1985 = vpop.f32.mrf.mxu0
    %v1986 = vadd.f32 0.0, %v1985
    %1987 = vdwg.mxu0
    %1988 = vrot.lane.b32.xlu0 %v1933, 120
    %v1989 = vpop.permute.xlu0 %1988
    %1990 = vrot.lane.b32.xlu0 %v1936, 120
    %v1991 = vpop.permute.xlu0 %1990
    %1992 = vrot.lane.b32.xlu0 %v1939, 120
    %v1993 = vpop.permute.xlu0 %1992
    %1994 = vrot.lane.b32.xlu0 %v1933, 88
    %v1995 = vpop.permute.xlu0 %1994
    %1996 = vrot.lane.b32.xlu0 %v1936, 88
    %v1997 = vpop.permute.xlu0 %1996
    %1998 = vrot.lane.b32.xlu0 %v1939, 88
    %v1999 = vpop.permute.xlu0 %1998
    %v2000 = vsel %vm214, %v1989, 0
    %v2002 = vsel %vm214, %v1991, 0
    %v2004 = vsel %vm214, %v1993, 0
    %v2006 = vsel %vm214, %v1995, 0
    %v2008 = vsel %vm214, %v1997, 0
    %v2010 = vsel %vm214, %v1999, 0
    %2012 = vmatpush.xpose.msra.mxu0 0.0
    %2013 = vmatpush.xpose.msra.mxu0 0.0
    %2014 = vmatpush.xpose.msra.mxu0 0.0
    %2015 = vmatpush.xpose.msra.mxu0 0.0
    %2016 = vmatpush.xpose.msra.mxu0 0.0
    %2017 = vmatpush.xpose.msra.mxu0 0.0
    %2018 = vmatpush.xpose.msra.mxu0 0.0
    %2019 = vmatpush.xpose.msra.mxu0 0.0
    %2020 = vmatpush.xpose.msra.mxu0 0.0
    %2021 = vmatpush.xpose.msra.mxu0 0.0
    %2022 = vmatpush.xpose.msra.mxu0 0.0
    %2023 = vmatpush.xpose.msra.mxu0 0.0
    %2024 = vmatpush.xpose.msra.mxu0 0.0
    %2025 = vmatpush.xpose.msra.mxu0 %v2010
    %2026 = vmatpush.xpose.msra.mxu0 %v2008
    %2027 = vmatpush.xpose.msra.mxu0 %v2006
    %2028 = vmatmul.f32.gmra.mxu0 %v2000
    %v2029 = vpop.f32.mrf.mxu0
    %v2030 = vadd.f32 0.0, %v2029
    %2031 = vmatmul.f32.gmra.mxu0 %v2002
    %v2032 = vpop.f32.mrf.mxu0
    %v2033 = vadd.f32 0.0, %v2032
    %2034 = vmatmul.f32.gmra.mxu0 %v2004
    %v2035 = vpop.f32.mrf.mxu0
    %v2036 = vadd.f32 0.0, %v2035
    %2037 = vdwg.mxu0
    %2038 = vrot.lane.b32.xlu0 %v1933, 112
    %v2039 = vpop.permute.xlu0 %2038
    %2040 = vrot.lane.b32.xlu0 %v1936, 112
    %v2041 = vpop.permute.xlu0 %2040
    %2042 = vrot.lane.b32.xlu0 %v1939, 112
    %v2043 = vpop.permute.xlu0 %2042
    %2044 = vrot.lane.b32.xlu0 %v1933, 80
    %v2045 = vpop.permute.xlu0 %2044
    %2046 = vrot.lane.b32.xlu0 %v1936, 80
    %v2047 = vpop.permute.xlu0 %2046
    %2048 = vrot.lane.b32.xlu0 %v1939, 80
    %v2049 = vpop.permute.xlu0 %2048
    %v2050 = vsel %vm214, %v2039, 0
    %v2052 = vsel %vm214, %v2041, 0
    %v2054 = vsel %vm214, %v2043, 0
    %v2056 = vsel %vm214, %v2045, 0
    %v2058 = vsel %vm214, %v2047, 0
    %v2060 = vsel %vm214, %v2049, 0
    %2062 = vmatpush.xpose.msra.mxu0 0.0
    %2063 = vmatpush.xpose.msra.mxu0 0.0
    %2064 = vmatpush.xpose.msra.mxu0 0.0
    %2065 = vmatpush.xpose.msra.mxu0 0.0
    %2066 = vmatpush.xpose.msra.mxu0 0.0
    %2067 = vmatpush.xpose.msra.mxu0 0.0
    %2068 = vmatpush.xpose.msra.mxu0 0.0
    %2069 = vmatpush.xpose.msra.mxu0 0.0
    %2070 = vmatpush.xpose.msra.mxu0 0.0
    %2071 = vmatpush.xpose.msra.mxu0 0.0
    %2072 = vmatpush.xpose.msra.mxu0 0.0
    %2073 = vmatpush.xpose.msra.mxu0 0.0
    %2074 = vmatpush.xpose.msra.mxu0 0.0
    %2075 = vmatpush.xpose.msra.mxu0 %v2060
    %2076 = vmatpush.xpose.msra.mxu0 %v2058
    %2077 = vmatpush.xpose.msra.mxu0 %v2056
    %2078 = vmatmul.f32.gmra.mxu0 %v2050
    %v2079 = vpop.f32.mrf.mxu0
    %v2080 = vadd.f32 0.0, %v2079
    %2081 = vmatmul.f32.gmra.mxu0 %v2052
    %v2082 = vpop.f32.mrf.mxu0
    %v2083 = vadd.f32 0.0, %v2082
    %2084 = vmatmul.f32.gmra.mxu0 %v2054
    %v2085 = vpop.f32.mrf.mxu0
    %v2086 = vadd.f32 0.0, %v2085
    %2087 = vdwg.mxu0
    %2088 = vrot.lane.b32.xlu0 %v1933, 104
    %v2089 = vpop.permute.xlu0 %2088
    %2090 = vrot.lane.b32.xlu0 %v1936, 104
    %v2091 = vpop.permute.xlu0 %2090
    %2092 = vrot.lane.b32.xlu0 %v1939, 104
    %v2093 = vpop.permute.xlu0 %2092
    %2094 = vrot.lane.b32.xlu0 %v1933, 72
    %v2095 = vpop.permute.xlu0 %2094
    %2096 = vrot.lane.b32.xlu0 %v1936, 72
    %v2097 = vpop.permute.xlu0 %2096
    %2098 = vrot.lane.b32.xlu0 %v1939, 72
    %v2099 = vpop.permute.xlu0 %2098
    %v2100 = vsel %vm214, %v2089, 0
    %v2102 = vsel %vm214, %v2091, 0
    %v2104 = vsel %vm214, %v2093, 0
    %v2106 = vsel %vm214, %v2095, 0
    %v2108 = vsel %vm214, %v2097, 0
    %v2110 = vsel %vm214, %v2099, 0
    %2112 = vmatpush.xpose.msra.mxu0 0.0
    %2113 = vmatpush.xpose.msra.mxu0 0.0
    %2114 = vmatpush.xpose.msra.mxu0 0.0
    %2115 = vmatpush.xpose.msra.mxu0 0.0
    %2116 = vmatpush.xpose.msra.mxu0 0.0
    %2117 = vmatpush.xpose.msra.mxu0 0.0
    %2118 = vmatpush.xpose.msra.mxu0 0.0
    %2119 = vmatpush.xpose.msra.mxu0 0.0
    %2120 = vmatpush.xpose.msra.mxu0 0.0
    %2121 = vmatpush.xpose.msra.mxu0 0.0
    %2122 = vmatpush.xpose.msra.mxu0 0.0
    %2123 = vmatpush.xpose.msra.mxu0 0.0
    %2124 = vmatpush.xpose.msra.mxu0 0.0
    %2125 = vmatpush.xpose.msra.mxu0 %v2110
    %2126 = vmatpush.xpose.msra.mxu0 %v2108
    %2127 = vmatpush.xpose.msra.mxu0 %v2106
    %2128 = vmatmul.f32.gmra.mxu0 %v2100
    %v2129 = vpop.f32.mrf.mxu0
    %v2130 = vadd.f32 0.0, %v2129
    %2131 = vmatmul.f32.gmra.mxu0 %v2102
    %v2132 = vpop.f32.mrf.mxu0
    %v2133 = vadd.f32 0.0, %v2132
    %2134 = vmatmul.f32.gmra.mxu0 %v2104
    %v2135 = vpop.f32.mrf.mxu0
    %v2136 = vadd.f32 0.0, %v2135
    %2137 = vdwg.mxu0
    %v2138 = vadd.f32 %v1980, %v1271
    %v2139 = vadd.f32 %v1983, %v1272
    %v2140 = vadd.f32 %v1986, %v1273
    %v2141 = vadd.f32 %v2030, %v1274
    %v2142 = vadd.f32 %v2033, %v1275
    %v2143 = vadd.f32 %v2036, %v1276
    %v2144 = vadd.f32 %v2080, %v1277
    %v2145 = vadd.f32 %v2083, %v1278
    %v2146 = vadd.f32 %v2086, %v1279
    %v2147 = vadd.f32 %v2130, %v1280
    %v2148 = vadd.f32 %v2133, %v1281
    %v2149 = vadd.f32 %v2136, %v1282
    %v2150 = vsel %vm427, %v2138, -inf
    %2151 = vmax.xlane.f32.xlu0 %v2150
    %v2152 = vpop.xlane.xlu0 %2151
    %v2153 = vsel %vm427, %v2139, -inf
    %2154 = vmax.xlane.f32.xlu0 %v2153
    %v2155 = vpop.xlane.xlu0 %2154
    %v2156 = vsel %vm427, %v2140, -inf
    %2157 = vmax.xlane.f32.xlu0 %v2156
    %v2158 = vpop.xlane.xlu0 %2157
    %v2159 = vsel %vm427, %v2141, -inf
    %2160 = vmax.xlane.f32.xlu0 %v2159
    %v2161 = vpop.xlane.xlu0 %2160
    %v2162 = vsel %vm427, %v2142, -inf
    %2163 = vmax.xlane.f32.xlu0 %v2162
    %v2164 = vpop.xlane.xlu0 %2163
    %v2165 = vsel %vm427, %v2143, -inf
    %2166 = vmax.xlane.f32.xlu0 %v2165
    %v2167 = vpop.xlane.xlu0 %2166
    %v2168 = vsel %vm427, %v2144, -inf
    %2169 = vmax.xlane.f32.xlu0 %v2168
    %v2170 = vpop.xlane.xlu0 %2169
    %v2171 = vsel %vm427, %v2145, -inf
    %2172 = vmax.xlane.f32.xlu0 %v2171
    %v2173 = vpop.xlane.xlu0 %2172
    %v2174 = vsel %vm427, %v2146, -inf
    %2175 = vmax.xlane.f32.xlu0 %v2174
    %v2176 = vpop.xlane.xlu0 %2175
    %v2177 = vsel %vm427, %v2147, -inf
    %2178 = vmax.xlane.f32.xlu0 %v2177
    %v2179 = vpop.xlane.xlu0 %2178
    %v2180 = vsel %vm427, %v2148, -inf
    %2181 = vmax.xlane.f32.xlu0 %v2180
    %v2182 = vpop.xlane.xlu0 %2181
    %v2183 = vsel %vm427, %v2149, -inf
    %2184 = vmax.xlane.f32.xlu0 %v2183
    %v2185 = vpop.xlane.xlu0 %2184
    %v2186 = vsub.f32 %v2138, %v2152
    %v2187 = vsub.f32 %v2139, %v2155
    %v2188 = vsub.f32 %v2140, %v2158
    %v2189 = vsub.f32 %v2141, %v2161
    %v2190 = vsub.f32 %v2142, %v2164
    %v2191 = vsub.f32 %v2143, %v2167
    %v2192 = vsub.f32 %v2144, %v2170
    %v2193 = vsub.f32 %v2145, %v2173
    %v2194 = vsub.f32 %v2146, %v2176
    %v2195 = vsub.f32 %v2147, %v2179
    %v2196 = vsub.f32 %v2148, %v2182
    %v2197 = vsub.f32 %v2149, %v2185
    %v2198 = vmul.f32 %v2186, 1.442695
    %v2199 = vpow.pop %v2198
    %v2200 = vmul.f32 %v2187, 1.442695
    %v2201 = vpow.pop %v2200
    %v2202 = vmul.f32 %v2188, 1.442695
    %v2203 = vpow.pop %v2202
    %v2204 = vmul.f32 %v2189, 1.442695
    %v2205 = vpow.pop %v2204
    %v2206 = vmul.f32 %v2190, 1.442695
    %v2207 = vpow.pop %v2206
    %v2208 = vmul.f32 %v2191, 1.442695
    %v2209 = vpow.pop %v2208
    %v2210 = vmul.f32 %v2192, 1.442695
    %v2211 = vpow.pop %v2210
    %v2212 = vmul.f32 %v2193, 1.442695
    %v2213 = vpow.pop %v2212
    %v2214 = vmul.f32 %v2194, 1.442695
    %v2215 = vpow.pop %v2214
    %v2216 = vmul.f32 %v2195, 1.442695
    %v2217 = vpow.pop %v2216
    %v2218 = vmul.f32 %v2196, 1.442695
    %v2219 = vpow.pop %v2218
    %v2220 = vmul.f32 %v2197, 1.442695
    %v2221 = vpow.pop %v2220
    %v2222 = vsel %vm427, %v2199, 0.0
    %2223 = vadd.xlane.f32.xlu0 %v2222
    %v2224 = vpop.xlane.xlu0 %2223
    %v2225 = vsel %vm427, %v2201, 0.0
    %2226 = vadd.xlane.f32.xlu0 %v2225
    %v2227 = vpop.xlane.xlu0 %2226
    %v2228 = vsel %vm427, %v2203, 0.0
    %2229 = vadd.xlane.f32.xlu0 %v2228
    %v2230 = vpop.xlane.xlu0 %2229
    %v2231 = vsel %vm427, %v2205, 0.0
    %2232 = vadd.xlane.f32.xlu0 %v2231
    %v2233 = vpop.xlane.xlu0 %2232
    %v2234 = vsel %vm427, %v2207, 0.0
    %2235 = vadd.xlane.f32.xlu0 %v2234
    %v2236 = vpop.xlane.xlu0 %2235
    %v2237 = vsel %vm427, %v2209, 0.0
    %2238 = vadd.xlane.f32.xlu0 %v2237
    %v2239 = vpop.xlane.xlu0 %2238
    %v2240 = vsel %vm427, %v2211, 0.0
    %2241 = vadd.xlane.f32.xlu0 %v2240
    %v2242 = vpop.xlane.xlu0 %2241
    %v2243 = vsel %vm427, %v2213, 0.0
    %2244 = vadd.xlane.f32.xlu0 %v2243
    %v2245 = vpop.xlane.xlu0 %2244
    %v2246 = vsel %vm427, %v2215, 0.0
    %2247 = vadd.xlane.f32.xlu0 %v2246
    %v2248 = vpop.xlane.xlu0 %2247
    %v2249 = vsel %vm427, %v2217, 0.0
    %2250 = vadd.xlane.f32.xlu0 %v2249
    %v2251 = vpop.xlane.xlu0 %2250
    %v2252 = vsel %vm427, %v2219, 0.0
    %2253 = vadd.xlane.f32.xlu0 %v2252
    %v2254 = vpop.xlane.xlu0 %2253
    %v2255 = vsel %vm427, %v2221, 0.0
    %2256 = vadd.xlane.f32.xlu0 %v2255
    %v2257 = vpop.xlane.xlu0 %2256
    %v2258 = vrcp.pop %v2224
    %v2259 = vrcp.pop %v2227
    %v2260 = vrcp.pop %v2230
    %v2261 = vrcp.pop %v2233
    %v2262 = vrcp.pop %v2236
    %v2263 = vrcp.pop %v2239
    %v2264 = vrcp.pop %v2242
    %v2265 = vrcp.pop %v2245
    %v2266 = vrcp.pop %v2248
    %v2267 = vrcp.pop %v2251
    %v2268 = vrcp.pop %v2254
    %v2269 = vrcp.pop %v2257
    %v2270 = vmul.f32 %v2199, %v2258
    %v2271 = vmul.f32 %v2201, %v2259
    %v2272 = vmul.f32 %v2203, %v2260
    %v2273 = vmul.f32 %v2205, %v2261
    %v2274 = vmul.f32 %v2207, %v2262
    %v2275 = vmul.f32 %v2209, %v2263
    %v2276 = vmul.f32 %v2211, %v2264
    %v2277 = vmul.f32 %v2213, %v2265
    %v2278 = vmul.f32 %v2215, %v2266
    %v2279 = vmul.f32 %v2217, %v2267
    %v2280 = vmul.f32 %v2219, %v2268
    %v2281 = vmul.f32 %v2221, %v2269
    %2282 = vrot.lane.b32.xlu0 %v1933, 64
    %v2283 = vpop.permute.xlu0 %2282
    %2284 = vrot.lane.b32.xlu0 %v1936, 64
    %v2285 = vpop.permute.xlu0 %2284
    %2286 = vrot.lane.b32.xlu0 %v1939, 64
    %v2287 = vpop.permute.xlu0 %2286
    %v2292 = vsel %vm427, %v2270, 0
    %v2295 = vsel %vm427, %v2271, 0
    %v2298 = vsel %vm427, %v2272, 0
    %2300 = vmatpush.msra.mxu0 0.0
    %2301 = vmatpush.msra.mxu0 0.0
    %2302 = vmatpush.msra.mxu0 0.0
    %2303 = vmatpush.msra.mxu0 0.0
    %2304 = vmatpush.msra.mxu0 0.0
    %2305 = vmatpush.msra.mxu0 0.0
    %2306 = vmatpush.msra.mxu0 0.0
    %2307 = vmatpush.msra.mxu0 0.0
    %2308 = vmatpush.msra.mxu0 0.0
    %2309 = vmatpush.msra.mxu0 0.0
    %2310 = vmatpush.msra.mxu0 0.0
    %2311 = vmatpush.msra.mxu0 0.0
    %2312 = vmatpush.msra.mxu0 0.0
    %2313 = vmatpush.msra.mxu0 %v2287
    %2314 = vmatpush.msra.mxu0 %v2285
    %2315 = vmatpush.msra.mxu0 %v2283
    %2316 = vmatmul.f32.gmra.mxu0 %v2292
    %v2317 = vpop.f32.mrf.mxu0
    %v2318 = vadd.f32 0.0, %v2317
    %2319 = vmatmul.f32.gmra.mxu0 %v2295
    %v2320 = vpop.f32.mrf.mxu0
    %v2321 = vadd.f32 0.0, %v2320
    %2322 = vmatmul.f32.gmra.mxu0 %v2298
    %v2323 = vpop.f32.mrf.mxu0
    %v2324 = vadd.f32 0.0, %v2323
    %2325 = vdwg.mxu0
    %2326 = vrot.lane.b32.xlu0 %v1933, 56
    %v2327 = vpop.permute.xlu0 %2326
    %2328 = vrot.lane.b32.xlu0 %v1936, 56
    %v2329 = vpop.permute.xlu0 %2328
    %2330 = vrot.lane.b32.xlu0 %v1939, 56
    %v2331 = vpop.permute.xlu0 %2330
    %v2336 = vsel %vm427, %v2273, 0
    %v2339 = vsel %vm427, %v2274, 0
    %v2342 = vsel %vm427, %v2275, 0
    %2344 = vmatpush.msra.mxu0 0.0
    %2345 = vmatpush.msra.mxu0 0.0
    %2346 = vmatpush.msra.mxu0 0.0
    %2347 = vmatpush.msra.mxu0 0.0
    %2348 = vmatpush.msra.mxu0 0.0
    %2349 = vmatpush.msra.mxu0 0.0
    %2350 = vmatpush.msra.mxu0 0.0
    %2351 = vmatpush.msra.mxu0 0.0
    %2352 = vmatpush.msra.mxu0 0.0
    %2353 = vmatpush.msra.mxu0 0.0
    %2354 = vmatpush.msra.mxu0 0.0
    %2355 = vmatpush.msra.mxu0 0.0
    %2356 = vmatpush.msra.mxu0 0.0
    %2357 = vmatpush.msra.mxu0 %v2331
    %2358 = vmatpush.msra.mxu0 %v2329
    %2359 = vmatpush.msra.mxu0 %v2327
    %2360 = vmatmul.f32.gmra.mxu0 %v2336
    %v2361 = vpop.f32.mrf.mxu0
    %v2362 = vadd.f32 0.0, %v2361
    %2363 = vmatmul.f32.gmra.mxu0 %v2339
    %v2364 = vpop.f32.mrf.mxu0
    %v2365 = vadd.f32 0.0, %v2364
    %2366 = vmatmul.f32.gmra.mxu0 %v2342
    %v2367 = vpop.f32.mrf.mxu0
    %v2368 = vadd.f32 0.0, %v2367
    %2369 = vdwg.mxu0
    %2370 = vrot.lane.b32.xlu0 %v1933, 48
    %v2371 = vpop.permute.xlu0 %2370
    %2372 = vrot.lane.b32.xlu0 %v1936, 48
    %v2373 = vpop.permute.xlu0 %2372
    %2374 = vrot.lane.b32.xlu0 %v1939, 48
    %v2375 = vpop.permute.xlu0 %2374
    %v2380 = vsel %vm427, %v2276, 0
    %v2383 = vsel %vm427, %v2277, 0
    %v2386 = vsel %vm427, %v2278, 0
    %2388 = vmatpush.msra.mxu0 0.0
    %2389 = vmatpush.msra.mxu0 0.0
    %2390 = vmatpush.msra.mxu0 0.0
    %2391 = vmatpush.msra.mxu0 0.0
    %2392 = vmatpush.msra.mxu0 0.0
    %2393 = vmatpush.msra.mxu0 0.0
    %2394 = vmatpush.msra.mxu0 0.0
    %2395 = vmatpush.msra.mxu0 0.0
    %2396 = vmatpush.msra.mxu0 0.0
    %2397 = vmatpush.msra.mxu0 0.0
    %2398 = vmatpush.msra.mxu0 0.0
    %2399 = vmatpush.msra.mxu0 0.0
    %2400 = vmatpush.msra.mxu0 0.0
    %2401 = vmatpush.msra.mxu0 %v2375
    %2402 = vmatpush.msra.mxu0 %v2373
    %2403 = vmatpush.msra.mxu0 %v2371
    %2404 = vmatmul.f32.gmra.mxu0 %v2380
    %v2405 = vpop.f32.mrf.mxu0
    %v2406 = vadd.f32 0.0, %v2405
    %2407 = vmatmul.f32.gmra.mxu0 %v2383
    %v2408 = vpop.f32.mrf.mxu0
    %v2409 = vadd.f32 0.0, %v2408
    %2410 = vmatmul.f32.gmra.mxu0 %v2386
    %v2411 = vpop.f32.mrf.mxu0
    %v2412 = vadd.f32 0.0, %v2411
    %2413 = vdwg.mxu0
    %2414 = vrot.lane.b32.xlu0 %v1933, 40
    %v2415 = vpop.permute.xlu0 %2414
    %2416 = vrot.lane.b32.xlu0 %v1936, 40
    %v2417 = vpop.permute.xlu0 %2416
    %2418 = vrot.lane.b32.xlu0 %v1939, 40
    %v2419 = vpop.permute.xlu0 %2418
    %v2424 = vsel %vm427, %v2279, 0
    %v2427 = vsel %vm427, %v2280, 0
    %v2430 = vsel %vm427, %v2281, 0
    %2432 = vmatpush.msra.mxu0 0.0
    %2433 = vmatpush.msra.mxu0 0.0
    %2434 = vmatpush.msra.mxu0 0.0
    %2435 = vmatpush.msra.mxu0 0.0
    %2436 = vmatpush.msra.mxu0 0.0
    %2437 = vmatpush.msra.mxu0 0.0
    %2438 = vmatpush.msra.mxu0 0.0
    %2439 = vmatpush.msra.mxu0 0.0
    %2440 = vmatpush.msra.mxu0 0.0
    %2441 = vmatpush.msra.mxu0 0.0
    %2442 = vmatpush.msra.mxu0 0.0
    %2443 = vmatpush.msra.mxu0 0.0
    %2444 = vmatpush.msra.mxu0 0.0
    %2445 = vmatpush.msra.mxu0 %v2419
    %2446 = vmatpush.msra.mxu0 %v2417
    %2447 = vmatpush.msra.mxu0 %v2415
    %2448 = vmatmul.f32.gmra.mxu0 %v2424
    %v2449 = vpop.f32.mrf.mxu0
    %v2450 = vadd.f32 0.0, %v2449
    %2451 = vmatmul.f32.gmra.mxu0 %v2427
    %v2452 = vpop.f32.mrf.mxu0
    %v2453 = vadd.f32 0.0, %v2452
    %2454 = vmatmul.f32.gmra.mxu0 %v2430
    %v2455 = vpop.f32.mrf.mxu0
    %v2456 = vadd.f32 0.0, %v2455
    %2457 = vdwg.mxu0
    %2461 = vrot.lane.b32.xlu0 %v2362, 8
    %v2462 = vpop.permute.xlu0 %2461
    %2463 = vrot.lane.b32.xlu0 %v2365, 8
    %v2464 = vpop.permute.xlu0 %2463
    %2465 = vrot.lane.b32.xlu0 %v2368, 8
    %v2466 = vpop.permute.xlu0 %2465
    %2473 = vrot.lane.b32.xlu0 %v2406, 16
    %v2474 = vpop.permute.xlu0 %2473
    %2475 = vrot.lane.b32.xlu0 %v2409, 16
    %v2476 = vpop.permute.xlu0 %2475
    %2477 = vrot.lane.b32.xlu0 %v2412, 16
    %v2478 = vpop.permute.xlu0 %2477
    %2485 = vrot.lane.b32.xlu0 %v2450, 24
    %v2486 = vpop.permute.xlu0 %2485
    %2487 = vrot.lane.b32.xlu0 %v2453, 24
    %v2488 = vpop.permute.xlu0 %2487
    %2489 = vrot.lane.b32.xlu0 %v2456, 24
    %v2490 = vpop.permute.xlu0 %2489
    %v2494 = vsel %vm214, %v2318, %v2462
    %v2495 = vsel %vm214, %v2321, %v2464
    %v2496 = vsel %vm214, %v2324, %v2466
    %v2497 = vsel %vm775, %v2494, %v2474
    %v2498 = vsel %vm775, %v2495, %v2476
    %v2499 = vsel %vm775, %v2496, %v2478
    %v2500 = vsel %vm427, %v2497, %v2486
    %v2501 = vsel %vm427, %v2498, %v2488
    %v2502 = vsel %vm427, %v2499, %v2490
    %s2503 = scalar_lea.vmem [#allocation5], 64
    %v2504 = vld [vmem:[%s2503] sm:$0xff]
    %v2505 = vld [vmem:[%s2503 + $0x8] sm:$0xff]
    %v2506 = vld [vmem:[%s2503 + $0x10] sm:$0xff]
    %v2507 = vld [vmem:[%s2503 + $0x18] sm:$0xff]
    %v2509 = vsel %vm106, %v2500, 0
    %v2512 = vsel %vm106, %v2501, 0
    %v2515 = vsel %vm106, %v2502, 0
    %2517 = vmatpush.msra.mxu0 0.0
    %2518 = vmatpush.msra.mxu0 0.0
    %2519 = vmatpush.msra.mxu0 0.0
    %2520 = vmatpush.msra.mxu0 0.0
    %2521 = vmatpush.msra.mxu0 0.0
    %2522 = vmatpush.msra.mxu0 0.0
    %2523 = vmatpush.msra.mxu0 0.0
    %2524 = vmatpush.msra.mxu0 0.0
    %2525 = vmatpush.msra.mxu0 0.0
    %2526 = vmatpush.msra.mxu0 0.0
    %2527 = vmatpush.msra.mxu0 0.0
    %2528 = vmatpush.msra.mxu0 0.0
    %2529 = vmatpush.msra.mxu0 %v2507
    %2530 = vmatpush.msra.mxu0 %v2506
    %2531 = vmatpush.msra.mxu0 %v2505
    %2532 = vmatpush.msra.mxu0 %v2504
    %2533 = vmatmul.f32.gmra.mxu0 %v2509
    %v2534 = vpop.f32.mrf.mxu0
    %v2535 = vadd.f32 0.0, %v2534
    %2536 = vmatmul.f32.gmra.mxu0 %v2512
    %v2537 = vpop.f32.mrf.mxu0
    %v2538 = vadd.f32 0.0, %v2537
    %2539 = vmatmul.f32.gmra.mxu0 %v2515
    %v2540 = vpop.f32.mrf.mxu0
    %v2541 = vadd.f32 0.0, %v2540
    %2542 = vdwg.mxu0
    %v2543 = vadd.f32 %v1842, %v2535
    %v2544 = vadd.f32 %v1843, %v2538
    %v2545 = vadd.f32 %v1844, %v2541
    %v2546 = vld [vmem:[%s6 + $0x5] sm:$0x1]
    %v2547 = vmul.f32 %v2543, %v2543
    %v2548 = vmul.f32 %v2544, %v2544
    %v2549 = vmul.f32 %v2545, %v2545
    %v2550 = vsel %vm106, %v2547, 0.0
    %2551 = vadd.xlane.f32.xlu0 %v2550
    %v2552 = vpop.xlane.xlu0 %2551
    %v2553 = vsel %vm106, %v2548, 0.0
    %2554 = vadd.xlane.f32.xlu0 %v2553
    %v2555 = vpop.xlane.xlu0 %2554
    %v2556 = vsel %vm106, %v2549, 0.0
    %2557 = vadd.xlane.f32.xlu0 %v2556
    %v2558 = vpop.xlane.xlu0 %2557
    %v2559 = vmul.f32 %v2552, %v122
    %v2560 = vmul.f32 %v2555, %v122
    %v2561 = vmul.f32 %v2558, %v122
    %v2562 = vadd.f32 %v2559, 1e-06
    %v2563 = vadd.f32 %v2560, 1e-06
    %v2564 = vadd.f32 %v2561, 1e-06
    %v2565 = vrsqrt.pop %v2562
    %v2566 = vmul.f32 %v2565, %v2562
    %v2567 = vmul.f32 %v2566, %v2565
    %v2568 = vmul.f32 0.5, %v2567
    %v2569 = vsub.f32 1.5, %v2568
    %v2570 = vmul.f32 %v2565, %v2569
    %vm2571 = vweird.f32 %v2562
    %vm2572 = vweird.f32 %v2565
    %vm2573 = vmor %vm2571, %vm2572
    %v2574 = vsel %vm2573, %v2565, %v2570
    %v2575 = vrsqrt.pop %v2563
    %v2576 = vmul.f32 %v2575, %v2563
    %v2577 = vmul.f32 %v2576, %v2575
    %v2578 = vmul.f32 0.5, %v2577
    %v2579 = vsub.f32 1.5, %v2578
    %v2580 = vmul.f32 %v2575, %v2579
    %vm2581 = vweird.f32 %v2563
    %vm2582 = vweird.f32 %v2575
    %vm2583 = vmor %vm2581, %vm2582
    %v2584 = vsel %vm2583, %v2575, %v2580
    %v2585 = vrsqrt.pop %v2564
    %v2586 = vmul.f32 %v2585, %v2564
    %v2587 = vmul.f32 %v2586, %v2585
    %v2588 = vmul.f32 0.5, %v2587
    %v2589 = vsub.f32 1.5, %v2588
    %v2590 = vmul.f32 %v2585, %v2589
    %vm2591 = vweird.f32 %v2564
    %vm2592 = vweird.f32 %v2585
    %vm2593 = vmor %vm2591, %vm2592
    %v2594 = vsel %vm2593, %v2585, %v2590
    %v2595 = vmul.f32 %v2543, %v2574
    %v2596 = vmul.f32 %v2544, %v2584
    %v2597 = vmul.f32 %v2545, %v2594
    %v2598 = vperm.slane %v2546, 0
    %v2599 = vmul.f32 %v2595, %v2598
    %v2600 = vmul.f32 %v2596, %v2598
    %v2601 = vmul.f32 %v2597, %v2598
    %s2602 = scalar_lea.vmem %s7, 128
    %v2603 = vld [vmem:[%s2602] sm:$0xff]
    %v2604 = vld [vmem:[%s2602 + $0x8] sm:$0xff]
    %v2605 = vld [vmem:[%s2602 + $0x10] sm:$0xff]
    %v2606 = vld [vmem:[%s2602 + $0x18] sm:$0xff]
    %v2608 = vsel %vm106, %v2599, 0
    %v2611 = vsel %vm106, %v2600, 0
    %v2614 = vsel %vm106, %v2601, 0
    %2616 = vmatpush.msra.mxu0 0.0
    %2617 = vmatpush.msra.mxu0 0.0
    %2618 = vmatpush.msra.mxu0 0.0
    %2619 = vmatpush.msra.mxu0 0.0
    %2620 = vmatpush.msra.mxu0 0.0
    %2621 = vmatpush.msra.mxu0 0.0
    %2622 = vmatpush.msra.mxu0 0.0
    %2623 = vmatpush.msra.mxu0 0.0
    %2624 = vmatpush.msra.mxu0 0.0
    %2625 = vmatpush.msra.mxu0 0.0
    %2626 = vmatpush.msra.mxu0 0.0
    %2627 = vmatpush.msra.mxu0 0.0
    %2628 = vmatpush.msra.mxu0 %v2606
    %2629 = vmatpush.msra.mxu0 %v2605
    %2630 = vmatpush.msra.mxu0 %v2604
    %2631 = vmatpush.msra.mxu0 %v2603
    %2632 = vmatmul.f32.gmra.mxu0 %v2608
    %v2633 = vpop.f32.mrf.mxu0
    %v2634 = vadd.f32 0.0, %v2633
    %2635 = vmatmul.f32.gmra.mxu0 %v2611
    %v2636 = vpop.f32.mrf.mxu0
    %v2637 = vadd.f32 0.0, %v2636
    %2638 = vmatmul.f32.gmra.mxu0 %v2614
    %v2639 = vpop.f32.mrf.mxu0
    %v2640 = vadd.f32 0.0, %v2639
    %2641 = vdwg.mxu0
    %v2642 = vmax.f32 %v2634, 0.0
    %v2643 = vmax.f32 %v2637, 0.0
    %v2644 = vmax.f32 %v2640, 0.0
    %s2645 = scalar_lea.vmem %s7, 160
    %v2646 = vld [vmem:[%s2645] sm:$0xff]
    %v2647 = vld [vmem:[%s2645 + $0x8] sm:$0xff]
    %v2648 = vld [vmem:[%s2645 + $0x10] sm:$0xff]
    %v2649 = vld [vmem:[%s2645 + $0x18] sm:$0xff]
    %v2651 = vsel %vm927, %v2642, 0
    %v2654 = vsel %vm927, %v2643, 0
    %v2657 = vsel %vm927, %v2644, 0
    %v2660 = vsel %vm927, %v2646, 0
    %v2663 = vsel %vm927, %v2647, 0
    %v2666 = vsel %vm927, %v2648, 0
    %v2669 = vsel %vm927, %v2649, 0
    %2671 = vmatpush.xpose.msra.mxu0 0.0
    %2672 = vmatpush.xpose.msra.mxu0 0.0
    %2673 = vmatpush.xpose.msra.mxu0 0.0
    %2674 = vmatpush.xpose.msra.mxu0 0.0
    %2675 = vmatpush.xpose.msra.mxu0 0.0
    %2676 = vmatpush.xpose.msra.mxu0 0.0
    %2677 = vmatpush.xpose.msra.mxu0 0.0
    %2678 = vmatpush.xpose.msra.mxu0 0.0
    %2679 = vmatpush.xpose.msra.mxu0 0.0
    %2680 = vmatpush.xpose.msra.mxu0 0.0
    %2681 = vmatpush.xpose.msra.mxu0 0.0
    %2682 = vmatpush.xpose.msra.mxu0 0.0
    %2683 = vmatpush.xpose.msra.mxu0 %v2669
    %2684 = vmatpush.xpose.msra.mxu0 %v2666
    %2685 = vmatpush.xpose.msra.mxu0 %v2663
    %2686 = vmatpush.xpose.msra.mxu0 %v2660
    %2687 = vmatmul.f32.gmra.mxu0 %v2651
    %v2688 = vpop.f32.mrf.mxu0
    %v2689 = vadd.f32 0.0, %v2688
    %2690 = vmatmul.f32.gmra.mxu0 %v2654
    %v2691 = vpop.f32.mrf.mxu0
    %v2692 = vadd.f32 0.0, %v2691
    %2693 = vmatmul.f32.gmra.mxu0 %v2657
    %v2694 = vpop.f32.mrf.mxu0
    %v2695 = vadd.f32 0.0, %v2694
    %2696 = vdwg.mxu0
    %v2697 = vadd.f32 %v2543, %v2689
    %v2698 = vadd.f32 %v2544, %v2692
    %v2699 = vadd.f32 %v2545, %v2695
    %vm2700 = vcmask 254976
    %2701 = vst.msk [vmem:[#allocation7] sm:$0x3] %vm2700, %v2697
    %vm2702 = vcmask 261122
    %2703 = vst.msk [vmem:[%s11 - $0x2] sm:$0xfc] %vm2702, %v2697
    %vm2704 = vcmask 257024
    %2705 = vst.msk [vmem:[%s11 + $0x6] sm:$0xf] %vm2704, %v2698
    %vm2706 = vcmask 259076
    %2707 = vst.msk [vmem:[#allocation8 - $0x4] sm:$0x30] %vm2706, %v2698
    %vm2708 = vcmask 261126
    %2709 = vst.msk [vmem:[%s13 - $0x6] sm:$0xc0] %vm2708, %v2698
    %2710 = vst.msk [vmem:[%s13 + $0x2] sm:$0xff] %vm106, %v2699
    // Predicated region
    $region50: #{transformer_backbone_forward.1} parent=1 // pred_check
      _
    $region51: #{transformer_backbone_forward.1} parent=1 // pred_check_branch
      %2712 = sbr.rel (0) target = $region53
    $region52: #{transformer_backbone_forward.1} parent=1 // pred_region
      %2714 = vsyncadd [#allocation4], 0
      %s2716 = sshll.u32 [#allocation7], 4
      %s2717 = int_to_ptr.vmem [resolvable:$true] %s2716
      %s2718 = sshll.u32 %s10, 4
      %s2719 = int_to_ptr.hbm [resolvable:$true] %s2718
      %2721 = dma.vmem_to_hbm [thread:$0]  %s2717, 32, %s2719, [#allocation4]
    $region53: #{transformer_backbone_forward.1} parent=1 // pred_fallthru
      _
    // Predicated region
    $region54: #{transformer_backbone_forward.1} parent=1 // pred_check
      _
    $region55: #{transformer_backbone_forward.1} parent=1 // pred_check_branch
      %2723 = sbr.rel (0) target = $region57
    $region56: #{transformer_backbone_forward.1} parent=1 // pred_region
      _
    $region57: #{transformer_backbone_forward.1} parent=1 // pred_fallthru
      _
    // Predicated region
    $region58: #{transformer_backbone_forward.1} parent=1 // pred_check
      _
    $region59: #{transformer_backbone_forward.1} parent=1 // pred_check_branch
      %2725 = sbr.rel (0) target = $region61
    $region60: #{transformer_backbone_forward.1} parent=1 // pred_region
      %2727 = vsyncadd [#allocation9], 0
      %s2729 = sshll.u32 [#allocation8], 4
      %s2730 = int_to_ptr.vmem [resolvable:$true] %s2729
      %s2731 = sshll.u32 %s12, 4
      %s2732 = int_to_ptr.hbm [resolvable:$true] %s2731
      %2734 = dma.vmem_to_hbm [thread:$0]  %s2730, 32, %s2732, [#allocation9]
    $region61: #{transformer_backbone_forward.1} parent=1 // pred_fallthru
      _
    // Predicated region
    $region62: #{transformer_backbone_forward.1} parent=1 // pred_check
      _
    $region63: #{transformer_backbone_forward.1} parent=1 // pred_check_branch
      %2736 = sbr.rel (0) target = $region65
    $region64: #{transformer_backbone_forward.1} parent=1 // pred_region
      _
    $region65: #{transformer_backbone_forward.1} parent=1 // pred_fallthru
      _
    // Predicated region
    $region66: #{transformer_backbone_forward.1} parent=1 // pred_check
      _
    $region67: #{transformer_backbone_forward.1} parent=1 // pred_check_branch
      %2738 = sbr.rel (0) target = $region69
    $region68: #{transformer_backbone_forward.1} parent=1 // pred_region
      %2740 = dma.done [#allocation4], 32
    $region69: #{transformer_backbone_forward.1} parent=1 // pred_fallthru
      _
    // Predicated region
    $region70: #{transformer_backbone_forward.1} parent=1 // pred_check
      _
    $region71: #{transformer_backbone_forward.1} parent=1 // pred_check_branch
      %2742 = sbr.rel (0) target = $region73
    $region72: #{transformer_backbone_forward.1} parent=1 // pred_region
      _
    $region73: #{transformer_backbone_forward.1} parent=1 // pred_fallthru
      _
    // Predicated region
    $region74: #{transformer_backbone_forward.1} parent=1 // pred_check
      _
    $region75: #{transformer_backbone_forward.1} parent=1 // pred_check_branch
      %2744 = sbr.rel (0) target = $region77
    $region76: #{transformer_backbone_forward.1} parent=1 // pred_region
      %2746 = dma.done [#allocation9], 32
    $region77: #{transformer_backbone_forward.1} parent=1 // pred_fallthru
      _
    // Predicated region
    $region78: #{transformer_backbone_forward.1} parent=1 // pred_check
      _
    $region79: #{transformer_backbone_forward.1} parent=1 // pred_check_branch
      %2748 = sbr.rel (0) target = $region81
    $region80: #{transformer_backbone_forward.1} parent=1 // pred_region
      _
    $region81: #{transformer_backbone_forward.1} parent=1 // pred_fallthru
      _
    %2749 = vsyncpa [#allocation3], 1
    %2750 = vsyncpa [#allocation6], 1
    %2751 = vsyncpa [#allocation4], 1
    %2752 = vsyncpa [#allocation9], 1

</llo_original>
